<compile_context>
chip_gen: v5e
topology: v5e:2x2
jax: 0.10.0
libtpu: 0.0.40
codegen_flags: <defaults>
</compile_context>

<pallas_src>
import functools

import jax
import jax.numpy as jnp
from jax.experimental import pallas as pl
from jax.experimental.pallas import tpu as pltpu

EPS = 1e-5
CP = 32      # per-parity padded output-channel lane group (nc=3 -> 32)
NPAR = 4     # output parities (ry, rx) of the final stride-2 ConvT


# ----------------------------- fused Pallas kernel ------------------------------ #
def _decoder_fused_kernel(x_ref, w1_ref, g1_ref, b1_ref, w2_ref, g2_ref, b2_ref,
                          w3_ref, o_ref, dil_ref, pad3_ref, *, B, c1, c2):
    f32 = jnp.float32

    # ---------------- Layer 1: ConvT(nz->c1, k4, s1, p0) on a 1x1 input ----------
    # Exactly a fully-connected matmul; w1 columns ordered (iy, ix, co).
    y1 = jnp.dot(x_ref[...], w1_ref[...], preferred_element_type=f32)   # (B, 16*c1)

    # BatchNorm (torch training mode, biased var) over all B*16 pixels/channel.
    # Single pass over 16 reused lane slices: var = E[x^2] - mean^2.
    n1 = B * 16
    pieces = [y1[:, p * c1:(p + 1) * c1] for p in range(16)]            # (B, c1) each
    s = jnp.zeros((1, c1), f32)
    ss = jnp.zeros((1, c1), f32)
    for p in pieces:
        s = s + jnp.sum(p, axis=0, keepdims=True)
        ss = ss + jnp.sum(p * p, axis=0, keepdims=True)
    mean1 = s * (1.0 / n1)
    var1 = ss * (1.0 / n1) - mean1 * mean1
    scale1 = g1_ref[...] * jax.lax.rsqrt(var1 + EPS)                    # (1, c1)
    shift1 = b1_ref[...] - mean1 * scale1

    # BN+ReLU'd layer-1 pixels scattered into the zero-dilated & padded layer-2
    # input (VMEM): h1[iy, ix] -> dil[2 + 2*iy, 2 + 2*ix].  Full memset is
    # required here because the dilation holes must be zero.
    dil_ref[...] = jnp.zeros_like(dil_ref)
    for pos in range(16):
        iy, ix = pos // 4, pos % 4
        dil_ref[:, 2 + 2 * iy, 2 + 2 * ix, :] = jnp.maximum(
            pieces[pos] * scale1 + shift1, 0.0)                         # (B, c1)

    # ---------------- Layer 2: ConvT(c1->c2, k4, s2, p1) -------------------------
    # ONE deep-K im2col matmul: patch columns ordered (ky, kx, ci) to match the
    # pre-flipped, pre-stacked weight w2_ref of shape (16*c1, c2).
    patch2 = jnp.concatenate(
        [dil_ref[:, ky:ky + 8, kx:kx + 8, :].reshape(B * 64, c1)
         for ky in range(4) for kx in range(4)], axis=1)                # (B*64, 16*c1)
    acc2 = jnp.dot(patch2, w2_ref[...], preferred_element_type=f32)     # (B*64, c2)

    # BatchNorm over the B*8*8 rows per channel + ReLU (two-pass, exact).
    n2 = B * 64
    mean2 = jnp.sum(acc2, axis=0, keepdims=True) * (1.0 / n2)
    d2 = acc2 - mean2
    var2 = jnp.sum(d2 * d2, axis=0, keepdims=True) * (1.0 / n2)
    h2 = jnp.maximum(d2 * (g2_ref[...] * jax.lax.rsqrt(var2 + EPS)) + b2_ref[...],
                     0.0)                                               # (B*64, c2)

    # Layer-3 padded input: zero ONLY the 1-pixel halo, interior fully written.
    pad3_ref[:, 0, :, :] = jnp.zeros((B, 10, c2), f32)
    pad3_ref[:, 9, :, :] = jnp.zeros((B, 10, c2), f32)
    pad3_ref[:, :, 0, :] = jnp.zeros((B, 10, c2), f32)
    pad3_ref[:, :, 9, :] = jnp.zeros((B, 10, c2), f32)
    pad3_ref[:, 1:9, 1:9, :] = h2.reshape(B, 8, 8, c2)

    # ---------------- Layer 3: ConvT(c2->nc, k4, s2, p1) + tanh ------------------
    # Subpixel decomposition; per parity ONE K=4*c2 matmul.  Output pixel
    # (2J+ry, 2I+rx) = sum_{dy,dx} pad3[J+ry+dy, I+rx+dx] . w3[:,:,3-2dy-ry,3-2dx-rx]
    # (that (dy,dx)-stacking is baked into w3_ref[p]).  The 4 parity results are
    # packed into disjoint 32-lane groups of one (B*64, 128) slab -> tanh once,
    # one lane-dense store.
    res = []
    for ry in range(2):
        for rx in range(2):
            patch3 = jnp.concatenate(
                [pad3_ref[:, ry + dy:ry + dy + 8,
                          rx + dx:rx + dx + 8, :].reshape(B * 64, c2)
                 for dy in range(2) for dx in range(2)], axis=1)        # (B*64, 4*c2)
            res.append(jnp.dot(patch3, w3_ref[ry * 2 + rx],
                               preferred_element_type=f32))             # (B*64, CP)
    o_ref[...] = jnp.tanh(jnp.concatenate(res, axis=1))                 # (B*64, 4*CP)


def _decoder_pallas(x2d, w1m, g1, b1, w2k, g2, b2, w3p, *, B, c1, c2):
    nz = x2d.shape[1]
    kernel = functools.partial(_decoder_fused_kernel, B=B, c1=c1, c2=c2)

    def full(*shape):
        return pl.BlockSpec(shape, lambda i, _s=shape: (0,) * len(_s))

    flops = (2 * B * nz * 16 * c1
             + 2 * (B * 64) * (16 * c1) * c2
             + NPAR * 2 * (B * 64) * (4 * c2) * CP)
    bytes_accessed = 4 * (x2d.size + w1m.size + g1.size + b1.size + w2k.size
                          + g2.size + b2.size + w3p.size + B * 64 * NPAR * CP)

    return pl.pallas_call(
        kernel,
        out_shape=jax.ShapeDtypeStruct((B * 64, NPAR * CP), jnp.float32),
        grid=(1,),
        in_specs=[
            full(B, nz),                  # latent (B, nz)
            full(nz, 16 * c1),            # layer-1 FC weight, cols (iy, ix, co)
            full(1, c1), full(1, c1),     # BN1 gamma/beta
            full(16 * c1, c2),            # layer-2 K-fused weight, rows (ky, kx, ci)
            full(1, c2), full(1, c2),     # BN2 gamma/beta
            full(NPAR, 4 * c2, CP),       # layer-3 per-parity K-fused weights
        ],
        out_specs=full(B * 64, NPAR * CP),
        scratch_shapes=[
            pltpu.VMEM((B, 11, 11, c1), jnp.float32),   # dilated/padded layer-2 input
            pltpu.VMEM((B, 10, 10, c2), jnp.float32),   # padded layer-3 input
        ],
        compiler_params=pltpu.CompilerParams(dimension_semantics=("arbitrary",)),
        cost_estimate=pl.CostEstimate(flops=flops,
                                      transcendentals=B * 64 * NPAR * CP,
                                      bytes_accessed=bytes_accessed),
    )(x2d, w1m, g1, b1, w2k, g2, b2, w3p)


# --------------------- one-time (hoisted) parameter preparation ------------------ #
def prepare_params(params):
    """Hoisted weight transposes/flips/padding -- run once, reuse every forward."""
    f32 = jnp.float32
    w1 = params["ct1_w"].astype(f32)   # (nz, c1, 4, 4)
    w2 = params["ct2_w"].astype(f32)   # (c1, c2, 4, 4)
    w3 = params["ct3_w"].astype(f32)   # (c2, nc, 4, 4)
    nz, c1 = w1.shape[0], w1.shape[1]
    c2, nc = w3.shape[0], w3.shape[1]

    # Layer 1: ConvT(4,1,0) on 1x1 input == FC; columns ordered (iy, ix, co).
    w1m = jnp.transpose(w1, (0, 2, 3, 1)).reshape(nz, 16 * c1)
    # Layer 2: correlation over the dilated input -> spatial flip, K-stacked
    # with rows ordered (ky, kx, ci) to match the in-kernel patch concat.
    w2k = jnp.transpose(w2[:, :, ::-1, ::-1], (2, 3, 0, 1)).reshape(16 * c1, c2)
    # Layer 3: subpixel form; per parity (ry,rx) stack (dy,dx) sub-kernels
    # (ky,kx) = (3-2dy-ry, 3-2dx-rx) along K; pad C_out to CP lanes.
    blocks = []
    for ry in range(2):
        for rx in range(2):
            rows = [w3[:, :, 3 - 2 * dy - ry, 3 - 2 * dx - rx]
                    for dy in range(2) for dx in range(2)]
            blocks.append(jnp.concatenate(rows, axis=0))         # (4*c2, nc)
    w3p = jnp.pad(jnp.stack(blocks, axis=0), ((0, 0), (0, 0), (0, CP - nc)))

    return {
        "w1m": w1m,
        "g1": params["ct1_gamma"].astype(f32), "b1": params["ct1_beta"].astype(f32),
        "w2k": w2k,
        "g2": params["ct2_gamma"].astype(f32), "b2": params["ct2_beta"].astype(f32),
        "w3p": w3p,
    }


# --------------------------------- wrapper -------------------------------------- #
@functools.partial(jax.jit, static_argnames=("nc",))
def generator_forward(x_nchw, prep, nc=3):
    """Generator.forward(x) == decoder(x).  NCHW (B, nz, 1, 1) -> NCHW image."""
    B, nz = x_nchw.shape[0], x_nchw.shape[1]
    x2d = x_nchw.reshape(B, nz).astype(jnp.float32)
    c1 = prep["g1"].shape[1]
    c2 = prep["g2"].shape[1]

    out = _decoder_pallas(x2d, prep["w1m"], prep["g1"], prep["b1"],
                          prep["w2k"], prep["g2"], prep["b2"], prep["w3p"],
                          B=B, c1=c1, c2=c2)
    # out: (B*64, NPAR*CP); rows ordered (b, J, I), lanes ordered (parity, co)
    out = out.reshape(B, 8, 8, 2, 2, CP)            # (b, J, I, RY, RX, co)
    # pixel shuffle: img[b, c, 2J+RY, 2I+RX] = out[b, J, I, RY, RX, c]
    img = jnp.transpose(out, (0, 5, 1, 3, 2, 4)).reshape(B, CP, 16, 16)
    return img[:, :nc]


# -------------------------- pure-JAX reference path ----------------------------- #
def _convT_patches(x_nhwc, k, stride, pad):
    B, H, W, C = x_nhwc.shape
    Hd = (H - 1) * stride + 1
    Wd = (W - 1) * stride + 1
    xd = jnp.zeros((B, Hd, Wd, C), x_nhwc.dtype).at[:, ::stride, ::stride, :].set(x_nhwc)
    p = k - 1 - pad
    xp = jnp.pad(xd, ((0, 0), (p, p), (p, p), (0, 0)))
    Ho = Hd + 2 * p - k + 1
    Wo = Wd + 2 * p - k + 1
    cols = []
    for kh in range(k):
        for kw in range(k):
            cols.append(xp[:, kh:kh + Ho, kw:kw + Wo, :])
    patches = jnp.concatenate(cols, axis=-1)
    return patches.reshape(B * Ho * Wo, k * k * C), (B, Ho, Wo)


def _convT_weight_matrix(w):
    Cin, Cout, kH, kW = w.shape
    wf = w[:, :, ::-1, ::-1]
    wf = jnp.transpose(wf, (2, 3, 0, 1))
    return wf.reshape(kH * kW * Cin, Cout)


def _layer_ref(patches, w2, gamma, beta, *, do_bn, act):
    y = jnp.dot(patches, w2, preferred_element_type=jnp.float32)
    if do_bn:
        mean = jnp.mean(y, axis=0, keepdims=True)
        var = jnp.mean(jnp.square(y - mean), axis=0, keepdims=True)
        y = (y - mean) * jax.lax.rsqrt(var + EPS)
        y = y * gamma + beta
    if act == "relu":
        y = jnp.maximum(y, 0.0)
    elif act == "tanh":
        y = jnp.tanh(y)
    return y


_LAYER_CFG = [
    ("ct1", 4, 1, 0, True, "relu"),
    ("ct2", 4, 2, 1, True, "relu"),
    ("ct3", 4, 2, 1, False, "tanh"),
]


def generator_forward_ref(x_nchw, params):
    x = jnp.transpose(x_nchw, (0, 2, 3, 1)).astype(jnp.float32)
    for name, k, s, p, do_bn, act in _LAYER_CFG:
        patches, (B, Ho, Wo) = _convT_patches(x, k, s, p)
        w2 = _convT_weight_matrix(params[name + "_w"])
        C = w2.shape[1]
        gamma = params.get(name + "_gamma", jnp.ones((1, C), jnp.float32))
        beta = params.get(name + "_beta", jnp.zeros((1, C), jnp.float32))
        y = _layer_ref(patches, w2, gamma, beta, do_bn=do_bn, act=act)
        x = y.reshape(B, Ho, Wo, C)
    return jnp.transpose(x, (0, 3, 1, 2))


# ------------------------------- parameter init ---------------------------------- #
def init_params(key, *, nz=8, nc=3, ngf=16, isize=16):
    cngf, tisize = ngf // 2, 4
    while tisize != isize:
        cngf *= 2
        tisize *= 2
    c1, c2 = cngf, cngf // 2                 # 32, 16 at these sizes
    k1, k2, k3 = jax.random.split(key, 3)

    def bn_gamma_beta(c):
        g = 1.0 + 0.01 * jnp.arange(c, dtype=jnp.float32).reshape(1, c)
        b = 0.01 * jnp.arange(c, dtype=jnp.float32).reshape(1, c)
        return g, b

    g1, b1 = bn_gamma_beta(c1)
    g2, b2 = bn_gamma_beta(c2)
    return {
        "ct1_w": 0.02 * jax.random.normal(k1, (nz, c1, 4, 4), jnp.float32),
        "ct1_gamma": g1, "ct1_beta": b1,
        "ct2_w": 0.02 * jax.random.normal(k2, (c1, c2, 4, 4), jnp.float32),
        "ct2_gamma": g2, "ct2_beta": b2,
        "ct3_w": 0.02 * jax.random.normal(k3, (c2, nc, 4, 4), jnp.float32),
    }


if __name__ == "__main__":
    key = jax.random.PRNGKey(0)
    kx, kp = jax.random.split(key)

    B, nz, nc, isize = 2, 8, 3, 16
    x = jax.random.normal(kx, (B, nz, 1, 1), jnp.float32)   # latent code, NCHW
    params = init_params(kp, nz=nz, nc=nc, ngf=16, isize=isize)

    prep = prepare_params(params)                            # one-time weight prep
    out = jax.block_until_ready(generator_forward(x, prep, nc=nc))
    assert out.shape == (B, nc, isize, isize), out.shape

    ref = jax.block_until_ready(generator_forward_ref(x, params))
    max_err = float(jnp.max(jnp.abs(out - ref)))
    assert jnp.allclose(out, ref, atol=1e-4, rtol=1e-4), f"mismatch, max|err|={max_err}"

    print("KERNEL_OK")
</pallas_src>

<mosaic_0001>
module attributes {stable_mosaic.version = 11 : i64} {
  func.func @_decoder_fused_kernel(%arg0: i32, %arg1: memref<2x8xf32, #tpu.memory_space<vmem>>, %arg2: memref<8x512xf32, #tpu.memory_space<vmem>>, %arg3: memref<1x32xf32, #tpu.memory_space<vmem>>, %arg4: memref<1x32xf32, #tpu.memory_space<vmem>>, %arg5: memref<512x16xf32, #tpu.memory_space<vmem>>, %arg6: memref<1x16xf32, #tpu.memory_space<vmem>>, %arg7: memref<1x16xf32, #tpu.memory_space<vmem>>, %arg8: memref<4x64x32xf32, #tpu.memory_space<vmem>>, %arg9: memref<128x128xf32, #tpu.memory_space<vmem>>, %arg10: memref<2x11x11x32xf32, #tpu.memory_space<vmem>>, %arg11: memref<2x10x10x16xf32, #tpu.memory_space<vmem>>) attributes {dimension_semantics = [#tpu.dimension_semantics<arbitrary>], iteration_bounds = array<i64: 1>, scalar_prefetch = 0 : i64, scratch_operands = 2 : i64, tpu.core_type = #tpu.core_type<tc>, window_params = [{pipeline_mode = #tpu.pipeline_mode<synchronous>, transform_indices = @transform_0, window_bounds = array<i64: 2, 8>}, {pipeline_mode = #tpu.pipeline_mode<synchronous>, transform_indices = @transform_1, window_bounds = array<i64: 8, 512>}, {pipeline_mode = #tpu.pipeline_mode<synchronous>, transform_indices = @transform_2, window_bounds = array<i64: 1, 32>}, {pipeline_mode = #tpu.pipeline_mode<synchronous>, transform_indices = @transform_3, window_bounds = array<i64: 1, 32>}, {pipeline_mode = #tpu.pipeline_mode<synchronous>, transform_indices = @transform_4, window_bounds = array<i64: 512, 16>}, {pipeline_mode = #tpu.pipeline_mode<synchronous>, transform_indices = @transform_5, window_bounds = array<i64: 1, 16>}, {pipeline_mode = #tpu.pipeline_mode<synchronous>, transform_indices = @transform_6, window_bounds = array<i64: 1, 16>}, {pipeline_mode = #tpu.pipeline_mode<synchronous>, transform_indices = @transform_7, window_bounds = array<i64: 4, 64, 32>}, {pipeline_mode = #tpu.pipeline_mode<synchronous>, transform_indices = @transform_8, window_bounds = array<i64: 128, 128>}]} {
    %c0 = arith.constant 0 : index
    %c0_0 = arith.constant 0 : index
    %0 = vector.load %arg1[%c0, %c0_0] : memref<2x8xf32, #tpu.memory_space<vmem>>, vector<2x8xf32>
    %c0_1 = arith.constant 0 : index
    %c0_2 = arith.constant 0 : index
    %1 = vector.load %arg2[%c0_1, %c0_2] : memref<8x512xf32, #tpu.memory_space<vmem>>, vector<8x512xf32>
    %cst = arith.constant dense<0.000000e+00> : vector<2x512xf32>
    %2 = tpu.matmul %0, %1, %cst {dimension_numbers = #tpu.dot_dimension_numbers<[1], [0], [0], [1], [0, 0, 1, 1], [], []>} : vector<2x8xf32>, vector<8x512xf32>, vector<2x512xf32> -> vector<2x512xf32>
    %3 = vector.extract_strided_slice %2 {offsets = [0, 0], sizes = [2, 32], strides = [1, 1]} : vector<2x512xf32> to vector<2x32xf32>
    %4 = vector.extract_strided_slice %2 {offsets = [0, 32], sizes = [2, 32], strides = [1, 1]} : vector<2x512xf32> to vector<2x32xf32>
    %5 = vector.extract_strided_slice %2 {offsets = [0, 64], sizes = [2, 32], strides = [1, 1]} : vector<2x512xf32> to vector<2x32xf32>
    %6 = vector.extract_strided_slice %2 {offsets = [0, 96], sizes = [2, 32], strides = [1, 1]} : vector<2x512xf32> to vector<2x32xf32>
    %7 = vector.extract_strided_slice %2 {offsets = [0, 128], sizes = [2, 32], strides = [1, 1]} : vector<2x512xf32> to vector<2x32xf32>
    %8 = vector.extract_strided_slice %2 {offsets = [0, 160], sizes = [2, 32], strides = [1, 1]} : vector<2x512xf32> to vector<2x32xf32>
    %9 = vector.extract_strided_slice %2 {offsets = [0, 192], sizes = [2, 32], strides = [1, 1]} : vector<2x512xf32> to vector<2x32xf32>
    %10 = vector.extract_strided_slice %2 {offsets = [0, 224], sizes = [2, 32], strides = [1, 1]} : vector<2x512xf32> to vector<2x32xf32>
    %11 = vector.extract_strided_slice %2 {offsets = [0, 256], sizes = [2, 32], strides = [1, 1]} : vector<2x512xf32> to vector<2x32xf32>
    %12 = vector.extract_strided_slice %2 {offsets = [0, 288], sizes = [2, 32], strides = [1, 1]} : vector<2x512xf32> to vector<2x32xf32>
    %13 = vector.extract_strided_slice %2 {offsets = [0, 320], sizes = [2, 32], strides = [1, 1]} : vector<2x512xf32> to vector<2x32xf32>
    %14 = vector.extract_strided_slice %2 {offsets = [0, 352], sizes = [2, 32], strides = [1, 1]} : vector<2x512xf32> to vector<2x32xf32>
    %15 = vector.extract_strided_slice %2 {offsets = [0, 384], sizes = [2, 32], strides = [1, 1]} : vector<2x512xf32> to vector<2x32xf32>
    %16 = vector.extract_strided_slice %2 {offsets = [0, 416], sizes = [2, 32], strides = [1, 1]} : vector<2x512xf32> to vector<2x32xf32>
    %17 = vector.extract_strided_slice %2 {offsets = [0, 448], sizes = [2, 32], strides = [1, 1]} : vector<2x512xf32> to vector<2x32xf32>
    %18 = vector.extract_strided_slice %2 {offsets = [0, 480], sizes = [2, 32], strides = [1, 1]} : vector<2x512xf32> to vector<2x32xf32>
    %cst_3 = arith.constant 0.000000e+00 : f32
    %19 = vector.broadcast %cst_3 : f32 to vector<1x32xf32>
    %cst_4 = arith.constant 0.000000e+00 : f32
    %20 = vector.broadcast %cst_4 : f32 to vector<1x32xf32>
    %cst_5 = arith.constant dense<0.000000e+00> : vector<32xf32>
    %21 = vector.multi_reduction <add>, %3, %cst_5 [0] : vector<2x32xf32> to vector<32xf32>
    %22 = vector.shape_cast %21 : vector<32xf32> to vector<1x32xf32>
    %23 = arith.addf %19, %22 : vector<1x32xf32>
    %24 = arith.mulf %3, %3 : vector<2x32xf32>
    %cst_6 = arith.constant dense<0.000000e+00> : vector<32xf32>
    %25 = vector.multi_reduction <add>, %24, %cst_6 [0] : vector<2x32xf32> to vector<32xf32>
    %26 = vector.shape_cast %25 : vector<32xf32> to vector<1x32xf32>
    %27 = arith.addf %20, %26 : vector<1x32xf32>
    %cst_7 = arith.constant dense<0.000000e+00> : vector<32xf32>
    %28 = vector.multi_reduction <add>, %4, %cst_7 [0] : vector<2x32xf32> to vector<32xf32>
    %29 = vector.shape_cast %28 : vector<32xf32> to vector<1x32xf32>
    %30 = arith.addf %23, %29 : vector<1x32xf32>
    %31 = arith.mulf %4, %4 : vector<2x32xf32>
    %cst_8 = arith.constant dense<0.000000e+00> : vector<32xf32>
    %32 = vector.multi_reduction <add>, %31, %cst_8 [0] : vector<2x32xf32> to vector<32xf32>
    %33 = vector.shape_cast %32 : vector<32xf32> to vector<1x32xf32>
    %34 = arith.addf %27, %33 : vector<1x32xf32>
    %cst_9 = arith.constant dense<0.000000e+00> : vector<32xf32>
    %35 = vector.multi_reduction <add>, %5, %cst_9 [0] : vector<2x32xf32> to vector<32xf32>
    %36 = vector.shape_cast %35 : vector<32xf32> to vector<1x32xf32>
    %37 = arith.addf %30, %36 : vector<1x32xf32>
    %38 = arith.mulf %5, %5 : vector<2x32xf32>
    %cst_10 = arith.constant dense<0.000000e+00> : vector<32xf32>
    %39 = vector.multi_reduction <add>, %38, %cst_10 [0] : vector<2x32xf32> to vector<32xf32>
    %40 = vector.shape_cast %39 : vector<32xf32> to vector<1x32xf32>
    %41 = arith.addf %34, %40 : vector<1x32xf32>
    %cst_11 = arith.constant dense<0.000000e+00> : vector<32xf32>
    %42 = vector.multi_reduction <add>, %6, %cst_11 [0] : vector<2x32xf32> to vector<32xf32>
    %43 = vector.shape_cast %42 : vector<32xf32> to vector<1x32xf32>
    %44 = arith.addf %37, %43 : vector<1x32xf32>
    %45 = arith.mulf %6, %6 : vector<2x32xf32>
    %cst_12 = arith.constant dense<0.000000e+00> : vector<32xf32>
    %46 = vector.multi_reduction <add>, %45, %cst_12 [0] : vector<2x32xf32> to vector<32xf32>
    %47 = vector.shape_cast %46 : vector<32xf32> to vector<1x32xf32>
    %48 = arith.addf %41, %47 : vector<1x32xf32>
    %cst_13 = arith.constant dense<0.000000e+00> : vector<32xf32>
    %49 = vector.multi_reduction <add>, %7, %cst_13 [0] : vector<2x32xf32> to vector<32xf32>
    %50 = vector.shape_cast %49 : vector<32xf32> to vector<1x32xf32>
    %51 = arith.addf %44, %50 : vector<1x32xf32>
    %52 = arith.mulf %7, %7 : vector<2x32xf32>
    %cst_14 = arith.constant dense<0.000000e+00> : vector<32xf32>
    %53 = vector.multi_reduction <add>, %52, %cst_14 [0] : vector<2x32xf32> to vector<32xf32>
    %54 = vector.shape_cast %53 : vector<32xf32> to vector<1x32xf32>
    %55 = arith.addf %48, %54 : vector<1x32xf32>
    %cst_15 = arith.constant dense<0.000000e+00> : vector<32xf32>
    %56 = vector.multi_reduction <add>, %8, %cst_15 [0] : vector<2x32xf32> to vector<32xf32>
    %57 = vector.shape_cast %56 : vector<32xf32> to vector<1x32xf32>
    %58 = arith.addf %51, %57 : vector<1x32xf32>
    %59 = arith.mulf %8, %8 : vector<2x32xf32>
    %cst_16 = arith.constant dense<0.000000e+00> : vector<32xf32>
    %60 = vector.multi_reduction <add>, %59, %cst_16 [0] : vector<2x32xf32> to vector<32xf32>
    %61 = vector.shape_cast %60 : vector<32xf32> to vector<1x32xf32>
    %62 = arith.addf %55, %61 : vector<1x32xf32>
    %cst_17 = arith.constant dense<0.000000e+00> : vector<32xf32>
    %63 = vector.multi_reduction <add>, %9, %cst_17 [0] : vector<2x32xf32> to vector<32xf32>
    %64 = vector.shape_cast %63 : vector<32xf32> to vector<1x32xf32>
    %65 = arith.addf %58, %64 : vector<1x32xf32>
    %66 = arith.mulf %9, %9 : vector<2x32xf32>
    %cst_18 = arith.constant dense<0.000000e+00> : vector<32xf32>
    %67 = vector.multi_reduction <add>, %66, %cst_18 [0] : vector<2x32xf32> to vector<32xf32>
    %68 = vector.shape_cast %67 : vector<32xf32> to vector<1x32xf32>
    %69 = arith.addf %62, %68 : vector<1x32xf32>
    %cst_19 = arith.constant dense<0.000000e+00> : vector<32xf32>
    %70 = vector.multi_reduction <add>, %10, %cst_19 [0] : vector<2x32xf32> to vector<32xf32>
    %71 = vector.shape_cast %70 : vector<32xf32> to vector<1x32xf32>
    %72 = arith.addf %65, %71 : vector<1x32xf32>
    %73 = arith.mulf %10, %10 : vector<2x32xf32>
    %cst_20 = arith.constant dense<0.000000e+00> : vector<32xf32>
    %74 = vector.multi_reduction <add>, %73, %cst_20 [0] : vector<2x32xf32> to vector<32xf32>
    %75 = vector.shape_cast %74 : vector<32xf32> to vector<1x32xf32>
    %76 = arith.addf %69, %75 : vector<1x32xf32>
    %cst_21 = arith.constant dense<0.000000e+00> : vector<32xf32>
    %77 = vector.multi_reduction <add>, %11, %cst_21 [0] : vector<2x32xf32> to vector<32xf32>
    %78 = vector.shape_cast %77 : vector<32xf32> to vector<1x32xf32>
    %79 = arith.addf %72, %78 : vector<1x32xf32>
    %80 = arith.mulf %11, %11 : vector<2x32xf32>
    %cst_22 = arith.constant dense<0.000000e+00> : vector<32xf32>
    %81 = vector.multi_reduction <add>, %80, %cst_22 [0] : vector<2x32xf32> to vector<32xf32>
    %82 = vector.shape_cast %81 : vector<32xf32> to vector<1x32xf32>
    %83 = arith.addf %76, %82 : vector<1x32xf32>
    %cst_23 = arith.constant dense<0.000000e+00> : vector<32xf32>
    %84 = vector.multi_reduction <add>, %12, %cst_23 [0] : vector<2x32xf32> to vector<32xf32>
    %85 = vector.shape_cast %84 : vector<32xf32> to vector<1x32xf32>
    %86 = arith.addf %79, %85 : vector<1x32xf32>
    %87 = arith.mulf %12, %12 : vector<2x32xf32>
    %cst_24 = arith.constant dense<0.000000e+00> : vector<32xf32>
    %88 = vector.multi_reduction <add>, %87, %cst_24 [0] : vector<2x32xf32> to vector<32xf32>
    %89 = vector.shape_cast %88 : vector<32xf32> to vector<1x32xf32>
    %90 = arith.addf %83, %89 : vector<1x32xf32>
    %cst_25 = arith.constant dense<0.000000e+00> : vector<32xf32>
    %91 = vector.multi_reduction <add>, %13, %cst_25 [0] : vector<2x32xf32> to vector<32xf32>
    %92 = vector.shape_cast %91 : vector<32xf32> to vector<1x32xf32>
    %93 = arith.addf %86, %92 : vector<1x32xf32>
    %94 = arith.mulf %13, %13 : vector<2x32xf32>
    %cst_26 = arith.constant dense<0.000000e+00> : vector<32xf32>
    %95 = vector.multi_reduction <add>, %94, %cst_26 [0] : vector<2x32xf32> to vector<32xf32>
    %96 = vector.shape_cast %95 : vector<32xf32> to vector<1x32xf32>
    %97 = arith.addf %90, %96 : vector<1x32xf32>
    %cst_27 = arith.constant dense<0.000000e+00> : vector<32xf32>
    %98 = vector.multi_reduction <add>, %14, %cst_27 [0] : vector<2x32xf32> to vector<32xf32>
    %99 = vector.shape_cast %98 : vector<32xf32> to vector<1x32xf32>
    %100 = arith.addf %93, %99 : vector<1x32xf32>
    %101 = arith.mulf %14, %14 : vector<2x32xf32>
    %cst_28 = arith.constant dense<0.000000e+00> : vector<32xf32>
    %102 = vector.multi_reduction <add>, %101, %cst_28 [0] : vector<2x32xf32> to vector<32xf32>
    %103 = vector.shape_cast %102 : vector<32xf32> to vector<1x32xf32>
    %104 = arith.addf %97, %103 : vector<1x32xf32>
    %cst_29 = arith.constant dense<0.000000e+00> : vector<32xf32>
    %105 = vector.multi_reduction <add>, %15, %cst_29 [0] : vector<2x32xf32> to vector<32xf32>
    %106 = vector.shape_cast %105 : vector<32xf32> to vector<1x32xf32>
    %107 = arith.addf %100, %106 : vector<1x32xf32>
    %108 = arith.mulf %15, %15 : vector<2x32xf32>
    %cst_30 = arith.constant dense<0.000000e+00> : vector<32xf32>
    %109 = vector.multi_reduction <add>, %108, %cst_30 [0] : vector<2x32xf32> to vector<32xf32>
    %110 = vector.shape_cast %109 : vector<32xf32> to vector<1x32xf32>
    %111 = arith.addf %104, %110 : vector<1x32xf32>
    %cst_31 = arith.constant dense<0.000000e+00> : vector<32xf32>
    %112 = vector.multi_reduction <add>, %16, %cst_31 [0] : vector<2x32xf32> to vector<32xf32>
    %113 = vector.shape_cast %112 : vector<32xf32> to vector<1x32xf32>
    %114 = arith.addf %107, %113 : vector<1x32xf32>
    %115 = arith.mulf %16, %16 : vector<2x32xf32>
    %cst_32 = arith.constant dense<0.000000e+00> : vector<32xf32>
    %116 = vector.multi_reduction <add>, %115, %cst_32 [0] : vector<2x32xf32> to vector<32xf32>
    %117 = vector.shape_cast %116 : vector<32xf32> to vector<1x32xf32>
    %118 = arith.addf %111, %117 : vector<1x32xf32>
    %cst_33 = arith.constant dense<0.000000e+00> : vector<32xf32>
    %119 = vector.multi_reduction <add>, %17, %cst_33 [0] : vector<2x32xf32> to vector<32xf32>
    %120 = vector.shape_cast %119 : vector<32xf32> to vector<1x32xf32>
    %121 = arith.addf %114, %120 : vector<1x32xf32>
    %122 = arith.mulf %17, %17 : vector<2x32xf32>
    %cst_34 = arith.constant dense<0.000000e+00> : vector<32xf32>
    %123 = vector.multi_reduction <add>, %122, %cst_34 [0] : vector<2x32xf32> to vector<32xf32>
    %124 = vector.shape_cast %123 : vector<32xf32> to vector<1x32xf32>
    %125 = arith.addf %118, %124 : vector<1x32xf32>
    %cst_35 = arith.constant dense<0.000000e+00> : vector<32xf32>
    %126 = vector.multi_reduction <add>, %18, %cst_35 [0] : vector<2x32xf32> to vector<32xf32>
    %127 = vector.shape_cast %126 : vector<32xf32> to vector<1x32xf32>
    %128 = arith.addf %121, %127 : vector<1x32xf32>
    %129 = arith.mulf %18, %18 : vector<2x32xf32>
    %cst_36 = arith.constant dense<0.000000e+00> : vector<32xf32>
    %130 = vector.multi_reduction <add>, %129, %cst_36 [0] : vector<2x32xf32> to vector<32xf32>
    %131 = vector.shape_cast %130 : vector<32xf32> to vector<1x32xf32>
    %132 = arith.addf %125, %131 : vector<1x32xf32>
    %cst_37 = arith.constant 3.125000e-02 : f32
    %133 = vector.broadcast %cst_37 : f32 to vector<1x32xf32>
    %134 = arith.mulf %128, %133 : vector<1x32xf32>
    %cst_38 = arith.constant 3.125000e-02 : f32
    %135 = vector.broadcast %cst_38 : f32 to vector<1x32xf32>
    %136 = arith.mulf %132, %135 : vector<1x32xf32>
    %137 = arith.mulf %134, %134 : vector<1x32xf32>
    %138 = arith.subf %136, %137 : vector<1x32xf32>
    %c0_39 = arith.constant 0 : index
    %c0_40 = arith.constant 0 : index
    %139 = vector.load %arg3[%c0_39, %c0_40] : memref<1x32xf32, #tpu.memory_space<vmem>>, vector<1x32xf32>
    %cst_41 = arith.constant 9.99999974E-6 : f32
    %140 = vector.broadcast %cst_41 : f32 to vector<1x32xf32>
    %141 = arith.addf %138, %140 : vector<1x32xf32>
    %142 = math.rsqrt %141 : vector<1x32xf32>
    %143 = arith.mulf %139, %142 : vector<1x32xf32>
    %c0_42 = arith.constant 0 : index
    %c0_43 = arith.constant 0 : index
    %144 = vector.load %arg4[%c0_42, %c0_43] : memref<1x32xf32, #tpu.memory_space<vmem>>, vector<1x32xf32>
    %145 = arith.mulf %134, %143 : vector<1x32xf32>
    %146 = arith.subf %144, %145 : vector<1x32xf32>
    %cst_44 = arith.constant 0.000000e+00 : f32
    %147 = vector.broadcast %cst_44 : f32 to vector<2x11x11x32xf32>
    %c0_45 = arith.constant 0 : index
    %c0_46 = arith.constant 0 : index
    %c0_47 = arith.constant 0 : index
    %c0_48 = arith.constant 0 : index
    %148 = vector.load %arg10[%c0_45, %c0_46, %c0_47, %c0_48] : memref<2x11x11x32xf32, #tpu.memory_space<vmem>>, vector<2x11x11x32xf32>
    tpu.vector_store %arg10[%c0_45, %c0_46, %c0_47, %c0_48], %147 {strides = array<i32>} : memref<2x11x11x32xf32, #tpu.memory_space<vmem>>, vector<2x11x11x32xf32>,
    %149 = vector.broadcast %143 : vector<1x32xf32> to vector<2x32xf32>
    %150 = arith.mulf %3, %149 : vector<2x32xf32>
    %151 = vector.broadcast %146 : vector<1x32xf32> to vector<2x32xf32>
    %152 = arith.addf %150, %151 : vector<2x32xf32>
    %cst_49 = arith.constant 0.000000e+00 : f32
    %153 = vector.broadcast %cst_49 : f32 to vector<2x32xf32>
    %154 = arith.maximumf %152, %153 : vector<2x32xf32>
    %c0_50 = arith.constant 0 : index
    %c2 = arith.constant 2 : index
    %c2_51 = arith.constant 2 : index
    %c0_52 = arith.constant 0 : index
    %155 = vector.load %arg10[%c0_50, %c2, %c2_51, %c0_52] : memref<2x11x11x32xf32, #tpu.memory_space<vmem>>, vector<2x1x1x32xf32>
    %156 = vector.shape_cast %155 : vector<2x1x1x32xf32> to vector<2x32xf32>
    %157 = vector.shape_cast %154 : vector<2x32xf32> to vector<2x1x1x32xf32>
    tpu.vector_store %arg10[%c0_50, %c2, %c2_51, %c0_52], %157 {strides = array<i32>} : memref<2x11x11x32xf32, #tpu.memory_space<vmem>>, vector<2x1x1x32xf32>,
    %158 = vector.broadcast %143 : vector<1x32xf32> to vector<2x32xf32>
    %159 = arith.mulf %4, %158 : vector<2x32xf32>
    %160 = vector.broadcast %146 : vector<1x32xf32> to vector<2x32xf32>
    %161 = arith.addf %159, %160 : vector<2x32xf32>
    %cst_53 = arith.constant 0.000000e+00 : f32
    %162 = vector.broadcast %cst_53 : f32 to vector<2x32xf32>
    %163 = arith.maximumf %161, %162 : vector<2x32xf32>
    %c0_54 = arith.constant 0 : index
    %c2_55 = arith.constant 2 : index
    %c4 = arith.constant 4 : index
    %c0_56 = arith.constant 0 : index
    %164 = vector.load %arg10[%c0_54, %c2_55, %c4, %c0_56] : memref<2x11x11x32xf32, #tpu.memory_space<vmem>>, vector<2x1x1x32xf32>
    %165 = vector.shape_cast %164 : vector<2x1x1x32xf32> to vector<2x32xf32>
    %166 = vector.shape_cast %163 : vector<2x32xf32> to vector<2x1x1x32xf32>
    tpu.vector_store %arg10[%c0_54, %c2_55, %c4, %c0_56], %166 {strides = array<i32>} : memref<2x11x11x32xf32, #tpu.memory_space<vmem>>, vector<2x1x1x32xf32>,
    %167 = vector.broadcast %143 : vector<1x32xf32> to vector<2x32xf32>
    %168 = arith.mulf %5, %167 : vector<2x32xf32>
    %169 = vector.broadcast %146 : vector<1x32xf32> to vector<2x32xf32>
    %170 = arith.addf %168, %169 : vector<2x32xf32>
    %cst_57 = arith.constant 0.000000e+00 : f32
    %171 = vector.broadcast %cst_57 : f32 to vector<2x32xf32>
    %172 = arith.maximumf %170, %171 : vector<2x32xf32>
    %c0_58 = arith.constant 0 : index
    %c2_59 = arith.constant 2 : index
    %c6 = arith.constant 6 : index
    %c0_60 = arith.constant 0 : index
    %173 = vector.load %arg10[%c0_58, %c2_59, %c6, %c0_60] : memref<2x11x11x32xf32, #tpu.memory_space<vmem>>, vector<2x1x1x32xf32>
    %174 = vector.shape_cast %173 : vector<2x1x1x32xf32> to vector<2x32xf32>
    %175 = vector.shape_cast %172 : vector<2x32xf32> to vector<2x1x1x32xf32>
    tpu.vector_store %arg10[%c0_58, %c2_59, %c6, %c0_60], %175 {strides = array<i32>} : memref<2x11x11x32xf32, #tpu.memory_space<vmem>>, vector<2x1x1x32xf32>,
    %176 = vector.broadcast %143 : vector<1x32xf32> to vector<2x32xf32>
    %177 = arith.mulf %6, %176 : vector<2x32xf32>
    %178 = vector.broadcast %146 : vector<1x32xf32> to vector<2x32xf32>
    %179 = arith.addf %177, %178 : vector<2x32xf32>
    %cst_61 = arith.constant 0.000000e+00 : f32
    %180 = vector.broadcast %cst_61 : f32 to vector<2x32xf32>
    %181 = arith.maximumf %179, %180 : vector<2x32xf32>
    %c0_62 = arith.constant 0 : index
    %c2_63 = arith.constant 2 : index
    %c8 = arith.constant 8 : index
    %c0_64 = arith.constant 0 : index
    %182 = vector.load %arg10[%c0_62, %c2_63, %c8, %c0_64] : memref<2x11x11x32xf32, #tpu.memory_space<vmem>>, vector<2x1x1x32xf32>
    %183 = vector.shape_cast %182 : vector<2x1x1x32xf32> to vector<2x32xf32>
    %184 = vector.shape_cast %181 : vector<2x32xf32> to vector<2x1x1x32xf32>
    tpu.vector_store %arg10[%c0_62, %c2_63, %c8, %c0_64], %184 {strides = array<i32>} : memref<2x11x11x32xf32, #tpu.memory_space<vmem>>, vector<2x1x1x32xf32>,
    %185 = vector.broadcast %143 : vector<1x32xf32> to vector<2x32xf32>
    %186 = arith.mulf %7, %185 : vector<2x32xf32>
    %187 = vector.broadcast %146 : vector<1x32xf32> to vector<2x32xf32>
    %188 = arith.addf %186, %187 : vector<2x32xf32>
    %cst_65 = arith.constant 0.000000e+00 : f32
    %189 = vector.broadcast %cst_65 : f32 to vector<2x32xf32>
    %190 = arith.maximumf %188, %189 : vector<2x32xf32>
    %c0_66 = arith.constant 0 : index
    %c4_67 = arith.constant 4 : index
    %c2_68 = arith.constant 2 : index
    %c0_69 = arith.constant 0 : index
    %191 = vector.load %arg10[%c0_66, %c4_67, %c2_68, %c0_69] : memref<2x11x11x32xf32, #tpu.memory_space<vmem>>, vector<2x1x1x32xf32>
    %192 = vector.shape_cast %191 : vector<2x1x1x32xf32> to vector<2x32xf32>
    %193 = vector.shape_cast %190 : vector<2x32xf32> to vector<2x1x1x32xf32>
    tpu.vector_store %arg10[%c0_66, %c4_67, %c2_68, %c0_69], %193 {strides = array<i32>} : memref<2x11x11x32xf32, #tpu.memory_space<vmem>>, vector<2x1x1x32xf32>,
    %194 = vector.broadcast %143 : vector<1x32xf32> to vector<2x32xf32>
    %195 = arith.mulf %8, %194 : vector<2x32xf32>
    %196 = vector.broadcast %146 : vector<1x32xf32> to vector<2x32xf32>
    %197 = arith.addf %195, %196 : vector<2x32xf32>
    %cst_70 = arith.constant 0.000000e+00 : f32
    %198 = vector.broadcast %cst_70 : f32 to vector<2x32xf32>
    %199 = arith.maximumf %197, %198 : vector<2x32xf32>
    %c0_71 = arith.constant 0 : index
    %c4_72 = arith.constant 4 : index
    %c4_73 = arith.constant 4 : index
    %c0_74 = arith.constant 0 : index
    %200 = vector.load %arg10[%c0_71, %c4_72, %c4_73, %c0_74] : memref<2x11x11x32xf32, #tpu.memory_space<vmem>>, vector<2x1x1x32xf32>
    %201 = vector.shape_cast %200 : vector<2x1x1x32xf32> to vector<2x32xf32>
    %202 = vector.shape_cast %199 : vector<2x32xf32> to vector<2x1x1x32xf32>
    tpu.vector_store %arg10[%c0_71, %c4_72, %c4_73, %c0_74], %202 {strides = array<i32>} : memref<2x11x11x32xf32, #tpu.memory_space<vmem>>, vector<2x1x1x32xf32>,
    %203 = vector.broadcast %143 : vector<1x32xf32> to vector<2x32xf32>
    %204 = arith.mulf %9, %203 : vector<2x32xf32>
    %205 = vector.broadcast %146 : vector<1x32xf32> to vector<2x32xf32>
    %206 = arith.addf %204, %205 : vector<2x32xf32>
    %cst_75 = arith.constant 0.000000e+00 : f32
    %207 = vector.broadcast %cst_75 : f32 to vector<2x32xf32>
    %208 = arith.maximumf %206, %207 : vector<2x32xf32>
    %c0_76 = arith.constant 0 : index
    %c4_77 = arith.constant 4 : index
    %c6_78 = arith.constant 6 : index
    %c0_79 = arith.constant 0 : index
    %209 = vector.load %arg10[%c0_76, %c4_77, %c6_78, %c0_79] : memref<2x11x11x32xf32, #tpu.memory_space<vmem>>, vector<2x1x1x32xf32>
    %210 = vector.shape_cast %209 : vector<2x1x1x32xf32> to vector<2x32xf32>
    %211 = vector.shape_cast %208 : vector<2x32xf32> to vector<2x1x1x32xf32>
    tpu.vector_store %arg10[%c0_76, %c4_77, %c6_78, %c0_79], %211 {strides = array<i32>} : memref<2x11x11x32xf32, #tpu.memory_space<vmem>>, vector<2x1x1x32xf32>,
    %212 = vector.broadcast %143 : vector<1x32xf32> to vector<2x32xf32>
    %213 = arith.mulf %10, %212 : vector<2x32xf32>
    %214 = vector.broadcast %146 : vector<1x32xf32> to vector<2x32xf32>
    %215 = arith.addf %213, %214 : vector<2x32xf32>
    %cst_80 = arith.constant 0.000000e+00 : f32
    %216 = vector.broadcast %cst_80 : f32 to vector<2x32xf32>
    %217 = arith.maximumf %215, %216 : vector<2x32xf32>
    %c0_81 = arith.constant 0 : index
    %c4_82 = arith.constant 4 : index
    %c8_83 = arith.constant 8 : index
    %c0_84 = arith.constant 0 : index
    %218 = vector.load %arg10[%c0_81, %c4_82, %c8_83, %c0_84] : memref<2x11x11x32xf32, #tpu.memory_space<vmem>>, vector<2x1x1x32xf32>
    %219 = vector.shape_cast %218 : vector<2x1x1x32xf32> to vector<2x32xf32>
    %220 = vector.shape_cast %217 : vector<2x32xf32> to vector<2x1x1x32xf32>
    tpu.vector_store %arg10[%c0_81, %c4_82, %c8_83, %c0_84], %220 {strides = array<i32>} : memref<2x11x11x32xf32, #tpu.memory_space<vmem>>, vector<2x1x1x32xf32>,
    %221 = vector.broadcast %143 : vector<1x32xf32> to vector<2x32xf32>
    %222 = arith.mulf %11, %221 : vector<2x32xf32>
    %223 = vector.broadcast %146 : vector<1x32xf32> to vector<2x32xf32>
    %224 = arith.addf %222, %223 : vector<2x32xf32>
    %cst_85 = arith.constant 0.000000e+00 : f32
    %225 = vector.broadcast %cst_85 : f32 to vector<2x32xf32>
    %226 = arith.maximumf %224, %225 : vector<2x32xf32>
    %c0_86 = arith.constant 0 : index
    %c6_87 = arith.constant 6 : index
    %c2_88 = arith.constant 2 : index
    %c0_89 = arith.constant 0 : index
    %227 = vector.load %arg10[%c0_86, %c6_87, %c2_88, %c0_89] : memref<2x11x11x32xf32, #tpu.memory_space<vmem>>, vector<2x1x1x32xf32>
    %228 = vector.shape_cast %227 : vector<2x1x1x32xf32> to vector<2x32xf32>
    %229 = vector.shape_cast %226 : vector<2x32xf32> to vector<2x1x1x32xf32>
    tpu.vector_store %arg10[%c0_86, %c6_87, %c2_88, %c0_89], %229 {strides = array<i32>} : memref<2x11x11x32xf32, #tpu.memory_space<vmem>>, vector<2x1x1x32xf32>,
    %230 = vector.broadcast %143 : vector<1x32xf32> to vector<2x32xf32>
    %231 = arith.mulf %12, %230 : vector<2x32xf32>
    %232 = vector.broadcast %146 : vector<1x32xf32> to vector<2x32xf32>
    %233 = arith.addf %231, %232 : vector<2x32xf32>
    %cst_90 = arith.constant 0.000000e+00 : f32
    %234 = vector.broadcast %cst_90 : f32 to vector<2x32xf32>
    %235 = arith.maximumf %233, %234 : vector<2x32xf32>
    %c0_91 = arith.constant 0 : index
    %c6_92 = arith.constant 6 : index
    %c4_93 = arith.constant 4 : index
    %c0_94 = arith.constant 0 : index
    %236 = vector.load %arg10[%c0_91, %c6_92, %c4_93, %c0_94] : memref<2x11x11x32xf32, #tpu.memory_space<vmem>>, vector<2x1x1x32xf32>
    %237 = vector.shape_cast %236 : vector<2x1x1x32xf32> to vector<2x32xf32>
    %238 = vector.shape_cast %235 : vector<2x32xf32> to vector<2x1x1x32xf32>
    tpu.vector_store %arg10[%c0_91, %c6_92, %c4_93, %c0_94], %238 {strides = array<i32>} : memref<2x11x11x32xf32, #tpu.memory_space<vmem>>, vector<2x1x1x32xf32>,
    %239 = vector.broadcast %143 : vector<1x32xf32> to vector<2x32xf32>
    %240 = arith.mulf %13, %239 : vector<2x32xf32>
    %241 = vector.broadcast %146 : vector<1x32xf32> to vector<2x32xf32>
    %242 = arith.addf %240, %241 : vector<2x32xf32>
    %cst_95 = arith.constant 0.000000e+00 : f32
    %243 = vector.broadcast %cst_95 : f32 to vector<2x32xf32>
    %244 = arith.maximumf %242, %243 : vector<2x32xf32>
    %c0_96 = arith.constant 0 : index
    %c6_97 = arith.constant 6 : index
    %c6_98 = arith.constant 6 : index
    %c0_99 = arith.constant 0 : index
    %245 = vector.load %arg10[%c0_96, %c6_97, %c6_98, %c0_99] : memref<2x11x11x32xf32, #tpu.memory_space<vmem>>, vector<2x1x1x32xf32>
    %246 = vector.shape_cast %245 : vector<2x1x1x32xf32> to vector<2x32xf32>
    %247 = vector.shape_cast %244 : vector<2x32xf32> to vector<2x1x1x32xf32>
    tpu.vector_store %arg10[%c0_96, %c6_97, %c6_98, %c0_99], %247 {strides = array<i32>} : memref<2x11x11x32xf32, #tpu.memory_space<vmem>>, vector<2x1x1x32xf32>,
    %248 = vector.broadcast %143 : vector<1x32xf32> to vector<2x32xf32>
    %249 = arith.mulf %14, %248 : vector<2x32xf32>
    %250 = vector.broadcast %146 : vector<1x32xf32> to vector<2x32xf32>
    %251 = arith.addf %249, %250 : vector<2x32xf32>
    %cst_100 = arith.constant 0.000000e+00 : f32
    %252 = vector.broadcast %cst_100 : f32 to vector<2x32xf32>
    %253 = arith.maximumf %251, %252 : vector<2x32xf32>
    %c0_101 = arith.constant 0 : index
    %c6_102 = arith.constant 6 : index
    %c8_103 = arith.constant 8 : index
    %c0_104 = arith.constant 0 : index
    %254 = vector.load %arg10[%c0_101, %c6_102, %c8_103, %c0_104] : memref<2x11x11x32xf32, #tpu.memory_space<vmem>>, vector<2x1x1x32xf32>
    %255 = vector.shape_cast %254 : vector<2x1x1x32xf32> to vector<2x32xf32>
    %256 = vector.shape_cast %253 : vector<2x32xf32> to vector<2x1x1x32xf32>
    tpu.vector_store %arg10[%c0_101, %c6_102, %c8_103, %c0_104], %256 {strides = array<i32>} : memref<2x11x11x32xf32, #tpu.memory_space<vmem>>, vector<2x1x1x32xf32>,
    %257 = vector.broadcast %143 : vector<1x32xf32> to vector<2x32xf32>
    %258 = arith.mulf %15, %257 : vector<2x32xf32>
    %259 = vector.broadcast %146 : vector<1x32xf32> to vector<2x32xf32>
    %260 = arith.addf %258, %259 : vector<2x32xf32>
    %cst_105 = arith.constant 0.000000e+00 : f32
    %261 = vector.broadcast %cst_105 : f32 to vector<2x32xf32>
    %262 = arith.maximumf %260, %261 : vector<2x32xf32>
    %c0_106 = arith.constant 0 : index
    %c8_107 = arith.constant 8 : index
    %c2_108 = arith.constant 2 : index
    %c0_109 = arith.constant 0 : index
    %263 = vector.load %arg10[%c0_106, %c8_107, %c2_108, %c0_109] : memref<2x11x11x32xf32, #tpu.memory_space<vmem>>, vector<2x1x1x32xf32>
    %264 = vector.shape_cast %263 : vector<2x1x1x32xf32> to vector<2x32xf32>
    %265 = vector.shape_cast %262 : vector<2x32xf32> to vector<2x1x1x32xf32>
    tpu.vector_store %arg10[%c0_106, %c8_107, %c2_108, %c0_109], %265 {strides = array<i32>} : memref<2x11x11x32xf32, #tpu.memory_space<vmem>>, vector<2x1x1x32xf32>,
    %266 = vector.broadcast %143 : vector<1x32xf32> to vector<2x32xf32>
    %267 = arith.mulf %16, %266 : vector<2x32xf32>
    %268 = vector.broadcast %146 : vector<1x32xf32> to vector<2x32xf32>
    %269 = arith.addf %267, %268 : vector<2x32xf32>
    %cst_110 = arith.constant 0.000000e+00 : f32
    %270 = vector.broadcast %cst_110 : f32 to vector<2x32xf32>
    %271 = arith.maximumf %269, %270 : vector<2x32xf32>
    %c0_111 = arith.constant 0 : index
    %c8_112 = arith.constant 8 : index
    %c4_113 = arith.constant 4 : index
    %c0_114 = arith.constant 0 : index
    %272 = vector.load %arg10[%c0_111, %c8_112, %c4_113, %c0_114] : memref<2x11x11x32xf32, #tpu.memory_space<vmem>>, vector<2x1x1x32xf32>
    %273 = vector.shape_cast %272 : vector<2x1x1x32xf32> to vector<2x32xf32>
    %274 = vector.shape_cast %271 : vector<2x32xf32> to vector<2x1x1x32xf32>
    tpu.vector_store %arg10[%c0_111, %c8_112, %c4_113, %c0_114], %274 {strides = array<i32>} : memref<2x11x11x32xf32, #tpu.memory_space<vmem>>, vector<2x1x1x32xf32>,
    %275 = vector.broadcast %143 : vector<1x32xf32> to vector<2x32xf32>
    %276 = arith.mulf %17, %275 : vector<2x32xf32>
    %277 = vector.broadcast %146 : vector<1x32xf32> to vector<2x32xf32>
    %278 = arith.addf %276, %277 : vector<2x32xf32>
    %cst_115 = arith.constant 0.000000e+00 : f32
    %279 = vector.broadcast %cst_115 : f32 to vector<2x32xf32>
    %280 = arith.maximumf %278, %279 : vector<2x32xf32>
    %c0_116 = arith.constant 0 : index
    %c8_117 = arith.constant 8 : index
    %c6_118 = arith.constant 6 : index
    %c0_119 = arith.constant 0 : index
    %281 = vector.load %arg10[%c0_116, %c8_117, %c6_118, %c0_119] : memref<2x11x11x32xf32, #tpu.memory_space<vmem>>, vector<2x1x1x32xf32>
    %282 = vector.shape_cast %281 : vector<2x1x1x32xf32> to vector<2x32xf32>
    %283 = vector.shape_cast %280 : vector<2x32xf32> to vector<2x1x1x32xf32>
    tpu.vector_store %arg10[%c0_116, %c8_117, %c6_118, %c0_119], %283 {strides = array<i32>} : memref<2x11x11x32xf32, #tpu.memory_space<vmem>>, vector<2x1x1x32xf32>,
    %284 = vector.broadcast %143 : vector<1x32xf32> to vector<2x32xf32>
    %285 = arith.mulf %18, %284 : vector<2x32xf32>
    %286 = vector.broadcast %146 : vector<1x32xf32> to vector<2x32xf32>
    %287 = arith.addf %285, %286 : vector<2x32xf32>
    %cst_120 = arith.constant 0.000000e+00 : f32
    %288 = vector.broadcast %cst_120 : f32 to vector<2x32xf32>
    %289 = arith.maximumf %287, %288 : vector<2x32xf32>
    %c0_121 = arith.constant 0 : index
    %c8_122 = arith.constant 8 : index
    %c8_123 = arith.constant 8 : index
    %c0_124 = arith.constant 0 : index
    %290 = vector.load %arg10[%c0_121, %c8_122, %c8_123, %c0_124] : memref<2x11x11x32xf32, #tpu.memory_space<vmem>>, vector<2x1x1x32xf32>
    %291 = vector.shape_cast %290 : vector<2x1x1x32xf32> to vector<2x32xf32>
    %292 = vector.shape_cast %289 : vector<2x32xf32> to vector<2x1x1x32xf32>
    tpu.vector_store %arg10[%c0_121, %c8_122, %c8_123, %c0_124], %292 {strides = array<i32>} : memref<2x11x11x32xf32, #tpu.memory_space<vmem>>, vector<2x1x1x32xf32>,
    %c0_125 = arith.constant 0 : index
    %c0_126 = arith.constant 0 : index
    %c0_127 = arith.constant 0 : index
    %c0_128 = arith.constant 0 : index
    %293 = vector.load %arg10[%c0_125, %c0_126, %c0_127, %c0_128] : memref<2x11x11x32xf32, #tpu.memory_space<vmem>>, vector<2x8x8x32xf32>
    %294 = vector.shape_cast %293 : vector<2x8x8x32xf32> to vector<128x32xf32>
    %c0_129 = arith.constant 0 : index
    %c0_130 = arith.constant 0 : index
    %c1 = arith.constant 1 : index
    %c0_131 = arith.constant 0 : index
    %295 = vector.load %arg10[%c0_129, %c0_130, %c1, %c0_131] : memref<2x11x11x32xf32, #tpu.memory_space<vmem>>, vector<2x8x8x32xf32>
    %296 = vector.shape_cast %295 : vector<2x8x8x32xf32> to vector<128x32xf32>
    %c0_132 = arith.constant 0 : index
    %c0_133 = arith.constant 0 : index
    %c2_134 = arith.constant 2 : index
    %c0_135 = arith.constant 0 : index
    %297 = vector.load %arg10[%c0_132, %c0_133, %c2_134, %c0_135] : memref<2x11x11x32xf32, #tpu.memory_space<vmem>>, vector<2x8x8x32xf32>
    %298 = vector.shape_cast %297 : vector<2x8x8x32xf32> to vector<128x32xf32>
    %c0_136 = arith.constant 0 : index
    %c0_137 = arith.constant 0 : index
    %c3 = arith.constant 3 : index
    %c0_138 = arith.constant 0 : index
    %299 = vector.load %arg10[%c0_136, %c0_137, %c3, %c0_138] : memref<2x11x11x32xf32, #tpu.memory_space<vmem>>, vector<2x8x8x32xf32>
    %300 = vector.shape_cast %299 : vector<2x8x8x32xf32> to vector<128x32xf32>
    %c0_139 = arith.constant 0 : index
    %c1_140 = arith.constant 1 : index
    %c0_141 = arith.constant 0 : index
    %c0_142 = arith.constant 0 : index
    %301 = vector.load %arg10[%c0_139, %c1_140, %c0_141, %c0_142] : memref<2x11x11x32xf32, #tpu.memory_space<vmem>>, vector<2x8x8x32xf32>
    %302 = vector.shape_cast %301 : vector<2x8x8x32xf32> to vector<128x32xf32>
    %c0_143 = arith.constant 0 : index
    %c1_144 = arith.constant 1 : index
    %c1_145 = arith.constant 1 : index
    %c0_146 = arith.constant 0 : index
    %303 = vector.load %arg10[%c0_143, %c1_144, %c1_145, %c0_146] : memref<2x11x11x32xf32, #tpu.memory_space<vmem>>, vector<2x8x8x32xf32>
    %304 = vector.shape_cast %303 : vector<2x8x8x32xf32> to vector<128x32xf32>
    %c0_147 = arith.constant 0 : index
    %c1_148 = arith.constant 1 : index
    %c2_149 = arith.constant 2 : index
    %c0_150 = arith.constant 0 : index
    %305 = vector.load %arg10[%c0_147, %c1_148, %c2_149, %c0_150] : memref<2x11x11x32xf32, #tpu.memory_space<vmem>>, vector<2x8x8x32xf32>
    %306 = vector.shape_cast %305 : vector<2x8x8x32xf32> to vector<128x32xf32>
    %c0_151 = arith.constant 0 : index
    %c1_152 = arith.constant 1 : index
    %c3_153 = arith.constant 3 : index
    %c0_154 = arith.constant 0 : index
    %307 = vector.load %arg10[%c0_151, %c1_152, %c3_153, %c0_154] : memref<2x11x11x32xf32, #tpu.memory_space<vmem>>, vector<2x8x8x32xf32>
    %308 = vector.shape_cast %307 : vector<2x8x8x32xf32> to vector<128x32xf32>
    %c0_155 = arith.constant 0 : index
    %c2_156 = arith.constant 2 : index
    %c0_157 = arith.constant 0 : index
    %c0_158 = arith.constant 0 : index
    %309 = vector.load %arg10[%c0_155, %c2_156, %c0_157, %c0_158] : memref<2x11x11x32xf32, #tpu.memory_space<vmem>>, vector<2x8x8x32xf32>
    %310 = vector.shape_cast %309 : vector<2x8x8x32xf32> to vector<128x32xf32>
    %c0_159 = arith.constant 0 : index
    %c2_160 = arith.constant 2 : index
    %c1_161 = arith.constant 1 : index
    %c0_162 = arith.constant 0 : index
    %311 = vector.load %arg10[%c0_159, %c2_160, %c1_161, %c0_162] : memref<2x11x11x32xf32, #tpu.memory_space<vmem>>, vector<2x8x8x32xf32>
    %312 = vector.shape_cast %311 : vector<2x8x8x32xf32> to vector<128x32xf32>
    %c0_163 = arith.constant 0 : index
    %c2_164 = arith.constant 2 : index
    %c2_165 = arith.constant 2 : index
    %c0_166 = arith.constant 0 : index
    %313 = vector.load %arg10[%c0_163, %c2_164, %c2_165, %c0_166] : memref<2x11x11x32xf32, #tpu.memory_space<vmem>>, vector<2x8x8x32xf32>
    %314 = vector.shape_cast %313 : vector<2x8x8x32xf32> to vector<128x32xf32>
    %c0_167 = arith.constant 0 : index
    %c2_168 = arith.constant 2 : index
    %c3_169 = arith.constant 3 : index
    %c0_170 = arith.constant 0 : index
    %315 = vector.load %arg10[%c0_167, %c2_168, %c3_169, %c0_170] : memref<2x11x11x32xf32, #tpu.memory_space<vmem>>, vector<2x8x8x32xf32>
    %316 = vector.shape_cast %315 : vector<2x8x8x32xf32> to vector<128x32xf32>
    %c0_171 = arith.constant 0 : index
    %c3_172 = arith.constant 3 : index
    %c0_173 = arith.constant 0 : index
    %c0_174 = arith.constant 0 : index
    %317 = vector.load %arg10[%c0_171, %c3_172, %c0_173, %c0_174] : memref<2x11x11x32xf32, #tpu.memory_space<vmem>>, vector<2x8x8x32xf32>
    %318 = vector.shape_cast %317 : vector<2x8x8x32xf32> to vector<128x32xf32>
    %c0_175 = arith.constant 0 : index
    %c3_176 = arith.constant 3 : index
    %c1_177 = arith.constant 1 : index
    %c0_178 = arith.constant 0 : index
    %319 = vector.load %arg10[%c0_175, %c3_176, %c1_177, %c0_178] : memref<2x11x11x32xf32, #tpu.memory_space<vmem>>, vector<2x8x8x32xf32>
    %320 = vector.shape_cast %319 : vector<2x8x8x32xf32> to vector<128x32xf32>
    %c0_179 = arith.constant 0 : index
    %c3_180 = arith.constant 3 : index
    %c2_181 = arith.constant 2 : index
    %c0_182 = arith.constant 0 : index
    %321 = vector.load %arg10[%c0_179, %c3_180, %c2_181, %c0_182] : memref<2x11x11x32xf32, #tpu.memory_space<vmem>>, vector<2x8x8x32xf32>
    %322 = vector.shape_cast %321 : vector<2x8x8x32xf32> to vector<128x32xf32>
    %c0_183 = arith.constant 0 : index
    %c3_184 = arith.constant 3 : index
    %c3_185 = arith.constant 3 : index
    %c0_186 = arith.constant 0 : index
    %323 = vector.load %arg10[%c0_183, %c3_184, %c3_185, %c0_186] : memref<2x11x11x32xf32, #tpu.memory_space<vmem>>, vector<2x8x8x32xf32>
    %324 = vector.shape_cast %323 : vector<2x8x8x32xf32> to vector<128x32xf32>
    %325 = tpu.concatenate %294, %296, %298, %300, %302, %304, %306, %308, %310, %312, %314, %316, %318, %320, %322, %324 in 1 : vector<128x32xf32>, vector<128x32xf32>, vector<128x32xf32>, vector<128x32xf32>, vector<128x32xf32>, vector<128x32xf32>, vector<128x32xf32>, vector<128x32xf32>, vector<128x32xf32>, vector<128x32xf32>, vector<128x32xf32>, vector<128x32xf32>, vector<128x32xf32>, vector<128x32xf32>, vector<128x32xf32>, vector<128x32xf32> -> vector<128x512xf32>
    %c0_187 = arith.constant 0 : index
    %c0_188 = arith.constant 0 : index
    %326 = vector.load %arg5[%c0_187, %c0_188] : memref<512x16xf32, #tpu.memory_space<vmem>>, vector<512x16xf32>
    %cst_189 = arith.constant dense<0.000000e+00> : vector<128x16xf32>
    %327 = tpu.matmul %325, %326, %cst_189 {dimension_numbers = #tpu.dot_dimension_numbers<[1], [0], [0], [1], [0, 0, 1, 1], [], []>} : vector<128x512xf32>, vector<512x16xf32>, vector<128x16xf32> -> vector<128x16xf32>
    %cst_190 = arith.constant dense<0.000000e+00> : vector<16xf32>
    %328 = vector.multi_reduction <add>, %327, %cst_190 [0] : vector<128x16xf32> to vector<16xf32>
    %329 = vector.shape_cast %328 : vector<16xf32> to vector<1x16xf32>
    %cst_191 = arith.constant 7.812500e-03 : f32
    %330 = vector.broadcast %cst_191 : f32 to vector<1x16xf32>
    %331 = arith.mulf %329, %330 : vector<1x16xf32>
    %332 = vector.broadcast %331 : vector<1x16xf32> to vector<128x16xf32>
    %333 = arith.subf %327, %332 : vector<128x16xf32>
    %334 = arith.mulf %333, %333 : vector<128x16xf32>
    %cst_192 = arith.constant dense<0.000000e+00> : vector<16xf32>
    %335 = vector.multi_reduction <add>, %334, %cst_192 [0] : vector<128x16xf32> to vector<16xf32>
    %336 = vector.shape_cast %335 : vector<16xf32> to vector<1x16xf32>
    %cst_193 = arith.constant 7.812500e-03 : f32
    %337 = vector.broadcast %cst_193 : f32 to vector<1x16xf32>
    %338 = arith.mulf %336, %337 : vector<1x16xf32>
    %c0_194 = arith.constant 0 : index
    %c0_195 = arith.constant 0 : index
    %339 = vector.load %arg6[%c0_194, %c0_195] : memref<1x16xf32, #tpu.memory_space<vmem>>, vector<1x16xf32>
    %cst_196 = arith.constant 9.99999974E-6 : f32
    %340 = vector.broadcast %cst_196 : f32 to vector<1x16xf32>
    %341 = arith.addf %338, %340 : vector<1x16xf32>
    %342 = math.rsqrt %341 : vector<1x16xf32>
    %343 = arith.mulf %339, %342 : vector<1x16xf32>
    %344 = vector.broadcast %343 : vector<1x16xf32> to vector<128x16xf32>
    %345 = arith.mulf %333, %344 : vector<128x16xf32>
    %c0_197 = arith.constant 0 : index
    %c0_198 = arith.constant 0 : index
    %346 = vector.load %arg7[%c0_197, %c0_198] : memref<1x16xf32, #tpu.memory_space<vmem>>, vector<1x16xf32>
    %347 = vector.broadcast %346 : vector<1x16xf32> to vector<128x16xf32>
    %348 = arith.addf %345, %347 : vector<128x16xf32>
    %cst_199 = arith.constant 0.000000e+00 : f32
    %349 = vector.broadcast %cst_199 : f32 to vector<128x16xf32>
    %350 = arith.maximumf %348, %349 : vector<128x16xf32>
    %cst_200 = arith.constant 0.000000e+00 : f32
    %351 = vector.broadcast %cst_200 : f32 to vector<2x10x16xf32>
    %c0_201 = arith.constant 0 : index
    %c0_202 = arith.constant 0 : index
    %c0_203 = arith.constant 0 : index
    %c0_204 = arith.constant 0 : index
    %352 = vector.load %arg11[%c0_201, %c0_202, %c0_203, %c0_204] : memref<2x10x10x16xf32, #tpu.memory_space<vmem>>, vector<2x1x10x16xf32>
    %353 = vector.shape_cast %352 : vector<2x1x10x16xf32> to vector<2x10x16xf32>
    %354 = vector.shape_cast %351 : vector<2x10x16xf32> to vector<2x1x10x16xf32>
    tpu.vector_store %arg11[%c0_201, %c0_202, %c0_203, %c0_204], %354 {strides = array<i32>} : memref<2x10x10x16xf32, #tpu.memory_space<vmem>>, vector<2x1x10x16xf32>,
    %cst_205 = arith.constant 0.000000e+00 : f32
    %355 = vector.broadcast %cst_205 : f32 to vector<2x10x16xf32>
    %c0_206 = arith.constant 0 : index
    %c9 = arith.constant 9 : index
    %c0_207 = arith.constant 0 : index
    %c0_208 = arith.constant 0 : index
    %356 = vector.load %arg11[%c0_206, %c9, %c0_207, %c0_208] : memref<2x10x10x16xf32, #tpu.memory_space<vmem>>, vector<2x1x10x16xf32>
    %357 = vector.shape_cast %356 : vector<2x1x10x16xf32> to vector<2x10x16xf32>
    %358 = vector.shape_cast %355 : vector<2x10x16xf32> to vector<2x1x10x16xf32>
    tpu.vector_store %arg11[%c0_206, %c9, %c0_207, %c0_208], %358 {strides = array<i32>} : memref<2x10x10x16xf32, #tpu.memory_space<vmem>>, vector<2x1x10x16xf32>,
    %cst_209 = arith.constant 0.000000e+00 : f32
    %359 = vector.broadcast %cst_209 : f32 to vector<2x10x16xf32>
    %c0_210 = arith.constant 0 : index
    %c0_211 = arith.constant 0 : index
    %c0_212 = arith.constant 0 : index
    %c0_213 = arith.constant 0 : index
    %360 = vector.load %arg11[%c0_210, %c0_211, %c0_212, %c0_213] : memref<2x10x10x16xf32, #tpu.memory_space<vmem>>, vector<2x10x1x16xf32>
    %361 = vector.shape_cast %360 : vector<2x10x1x16xf32> to vector<2x10x16xf32>
    %362 = vector.shape_cast %359 : vector<2x10x16xf32> to vector<2x10x1x16xf32>
    tpu.vector_store %arg11[%c0_210, %c0_211, %c0_212, %c0_213], %362 {strides = array<i32>} : memref<2x10x10x16xf32, #tpu.memory_space<vmem>>, vector<2x10x1x16xf32>,
    %cst_214 = arith.constant 0.000000e+00 : f32
    %363 = vector.broadcast %cst_214 : f32 to vector<2x10x16xf32>
    %c0_215 = arith.constant 0 : index
    %c0_216 = arith.constant 0 : index
    %c9_217 = arith.constant 9 : index
    %c0_218 = arith.constant 0 : index
    %364 = vector.load %arg11[%c0_215, %c0_216, %c9_217, %c0_218] : memref<2x10x10x16xf32, #tpu.memory_space<vmem>>, vector<2x10x1x16xf32>
    %365 = vector.shape_cast %364 : vector<2x10x1x16xf32> to vector<2x10x16xf32>
    %366 = vector.shape_cast %363 : vector<2x10x16xf32> to vector<2x10x1x16xf32>
    tpu.vector_store %arg11[%c0_215, %c0_216, %c9_217, %c0_218], %366 {strides = array<i32>} : memref<2x10x10x16xf32, #tpu.memory_space<vmem>>, vector<2x10x1x16xf32>,
    %367 = vector.shape_cast %350 : vector<128x16xf32> to vector<2x8x8x16xf32>
    %c0_219 = arith.constant 0 : index
    %c1_220 = arith.constant 1 : index
    %c1_221 = arith.constant 1 : index
    %c0_222 = arith.constant 0 : index
    %368 = vector.load %arg11[%c0_219, %c1_220, %c1_221, %c0_222] : memref<2x10x10x16xf32, #tpu.memory_space<vmem>>, vector<2x8x8x16xf32>
    tpu.vector_store %arg11[%c0_219, %c1_220, %c1_221, %c0_222], %367 {strides = array<i32>} : memref<2x10x10x16xf32, #tpu.memory_space<vmem>>, vector<2x8x8x16xf32>,
    %c0_223 = arith.constant 0 : index
    %c0_224 = arith.constant 0 : index
    %c0_225 = arith.constant 0 : index
    %c0_226 = arith.constant 0 : index
    %369 = vector.load %arg11[%c0_223, %c0_224, %c0_225, %c0_226] : memref<2x10x10x16xf32, #tpu.memory_space<vmem>>, vector<2x8x8x16xf32>
    %370 = vector.shape_cast %369 : vector<2x8x8x16xf32> to vector<128x16xf32>
    %c0_227 = arith.constant 0 : index
    %c0_228 = arith.constant 0 : index
    %c1_229 = arith.constant 1 : index
    %c0_230 = arith.constant 0 : index
    %371 = vector.load %arg11[%c0_227, %c0_228, %c1_229, %c0_230] : memref<2x10x10x16xf32, #tpu.memory_space<vmem>>, vector<2x8x8x16xf32>
    %372 = vector.shape_cast %371 : vector<2x8x8x16xf32> to vector<128x16xf32>
    %c0_231 = arith.constant 0 : index
    %c1_232 = arith.constant 1 : index
    %c0_233 = arith.constant 0 : index
    %c0_234 = arith.constant 0 : index
    %373 = vector.load %arg11[%c0_231, %c1_232, %c0_233, %c0_234] : memref<2x10x10x16xf32, #tpu.memory_space<vmem>>, vector<2x8x8x16xf32>
    %374 = vector.shape_cast %373 : vector<2x8x8x16xf32> to vector<128x16xf32>
    %c0_235 = arith.constant 0 : index
    %c1_236 = arith.constant 1 : index
    %c1_237 = arith.constant 1 : index
    %c0_238 = arith.constant 0 : index
    %375 = vector.load %arg11[%c0_235, %c1_236, %c1_237, %c0_238] : memref<2x10x10x16xf32, #tpu.memory_space<vmem>>, vector<2x8x8x16xf32>
    %376 = vector.shape_cast %375 : vector<2x8x8x16xf32> to vector<128x16xf32>
    %377 = tpu.concatenate %370, %372, %374, %376 in 1 : vector<128x16xf32>, vector<128x16xf32>, vector<128x16xf32>, vector<128x16xf32> -> vector<128x64xf32>
    %c0_239 = arith.constant 0 : index
    %c0_240 = arith.constant 0 : index
    %c0_241 = arith.constant 0 : index
    %378 = vector.load %arg8[%c0_239, %c0_240, %c0_241] : memref<4x64x32xf32, #tpu.memory_space<vmem>>, vector<1x64x32xf32>
    %379 = vector.shape_cast %378 : vector<1x64x32xf32> to vector<64x32xf32>
    %cst_242 = arith.constant dense<0.000000e+00> : vector<128x32xf32>
    %380 = tpu.matmul %377, %379, %cst_242 {dimension_numbers = #tpu.dot_dimension_numbers<[1], [0], [0], [1], [0, 0, 1, 1], [], []>} : vector<128x64xf32>, vector<64x32xf32>, vector<128x32xf32> -> vector<128x32xf32>
    %c0_243 = arith.constant 0 : index
    %c0_244 = arith.constant 0 : index
    %c1_245 = arith.constant 1 : index
    %c0_246 = arith.constant 0 : index
    %381 = vector.load %arg11[%c0_243, %c0_244, %c1_245, %c0_246] : memref<2x10x10x16xf32, #tpu.memory_space<vmem>>, vector<2x8x8x16xf32>
    %382 = vector.shape_cast %381 : vector<2x8x8x16xf32> to vector<128x16xf32>
    %c0_247 = arith.constant 0 : index
    %c0_248 = arith.constant 0 : index
    %c2_249 = arith.constant 2 : index
    %c0_250 = arith.constant 0 : index
    %383 = vector.load %arg11[%c0_247, %c0_248, %c2_249, %c0_250] : memref<2x10x10x16xf32, #tpu.memory_space<vmem>>, vector<2x8x8x16xf32>
    %384 = vector.shape_cast %383 : vector<2x8x8x16xf32> to vector<128x16xf32>
    %c0_251 = arith.constant 0 : index
    %c1_252 = arith.constant 1 : index
    %c1_253 = arith.constant 1 : index
    %c0_254 = arith.constant 0 : index
    %385 = vector.load %arg11[%c0_251, %c1_252, %c1_253, %c0_254] : memref<2x10x10x16xf32, #tpu.memory_space<vmem>>, vector<2x8x8x16xf32>
    %386 = vector.shape_cast %385 : vector<2x8x8x16xf32> to vector<128x16xf32>
    %c0_255 = arith.constant 0 : index
    %c1_256 = arith.constant 1 : index
    %c2_257 = arith.constant 2 : index
    %c0_258 = arith.constant 0 : index
    %387 = vector.load %arg11[%c0_255, %c1_256, %c2_257, %c0_258] : memref<2x10x10x16xf32, #tpu.memory_space<vmem>>, vector<2x8x8x16xf32>
    %388 = vector.shape_cast %387 : vector<2x8x8x16xf32> to vector<128x16xf32>
    %389 = tpu.concatenate %382, %384, %386, %388 in 1 : vector<128x16xf32>, vector<128x16xf32>, vector<128x16xf32>, vector<128x16xf32> -> vector<128x64xf32>
    %c1_259 = arith.constant 1 : index
    %c0_260 = arith.constant 0 : index
    %c0_261 = arith.constant 0 : index
    %390 = vector.load %arg8[%c1_259, %c0_260, %c0_261] : memref<4x64x32xf32, #tpu.memory_space<vmem>>, vector<1x64x32xf32>
    %391 = vector.shape_cast %390 : vector<1x64x32xf32> to vector<64x32xf32>
    %cst_262 = arith.constant dense<0.000000e+00> : vector<128x32xf32>
    %392 = tpu.matmul %389, %391, %cst_262 {dimension_numbers = #tpu.dot_dimension_numbers<[1], [0], [0], [1], [0, 0, 1, 1], [], []>} : vector<128x64xf32>, vector<64x32xf32>, vector<128x32xf32> -> vector<128x32xf32>
    %c0_263 = arith.constant 0 : index
    %c1_264 = arith.constant 1 : index
    %c0_265 = arith.constant 0 : index
    %c0_266 = arith.constant 0 : index
    %393 = vector.load %arg11[%c0_263, %c1_264, %c0_265, %c0_266] : memref<2x10x10x16xf32, #tpu.memory_space<vmem>>, vector<2x8x8x16xf32>
    %394 = vector.shape_cast %393 : vector<2x8x8x16xf32> to vector<128x16xf32>
    %c0_267 = arith.constant 0 : index
    %c1_268 = arith.constant 1 : index
    %c1_269 = arith.constant 1 : index
    %c0_270 = arith.constant 0 : index
    %395 = vector.load %arg11[%c0_267, %c1_268, %c1_269, %c0_270] : memref<2x10x10x16xf32, #tpu.memory_space<vmem>>, vector<2x8x8x16xf32>
    %396 = vector.shape_cast %395 : vector<2x8x8x16xf32> to vector<128x16xf32>
    %c0_271 = arith.constant 0 : index
    %c2_272 = arith.constant 2 : index
    %c0_273 = arith.constant 0 : index
    %c0_274 = arith.constant 0 : index
    %397 = vector.load %arg11[%c0_271, %c2_272, %c0_273, %c0_274] : memref<2x10x10x16xf32, #tpu.memory_space<vmem>>, vector<2x8x8x16xf32>
    %398 = vector.shape_cast %397 : vector<2x8x8x16xf32> to vector<128x16xf32>
    %c0_275 = arith.constant 0 : index
    %c2_276 = arith.constant 2 : index
    %c1_277 = arith.constant 1 : index
    %c0_278 = arith.constant 0 : index
    %399 = vector.load %arg11[%c0_275, %c2_276, %c1_277, %c0_278] : memref<2x10x10x16xf32, #tpu.memory_space<vmem>>, vector<2x8x8x16xf32>
    %400 = vector.shape_cast %399 : vector<2x8x8x16xf32> to vector<128x16xf32>
    %401 = tpu.concatenate %394, %396, %398, %400 in 1 : vector<128x16xf32>, vector<128x16xf32>, vector<128x16xf32>, vector<128x16xf32> -> vector<128x64xf32>
    %c2_279 = arith.constant 2 : index
    %c0_280 = arith.constant 0 : index
    %c0_281 = arith.constant 0 : index
    %402 = vector.load %arg8[%c2_279, %c0_280, %c0_281] : memref<4x64x32xf32, #tpu.memory_space<vmem>>, vector<1x64x32xf32>
    %403 = vector.shape_cast %402 : vector<1x64x32xf32> to vector<64x32xf32>
    %cst_282 = arith.constant dense<0.000000e+00> : vector<128x32xf32>
    %404 = tpu.matmul %401, %403, %cst_282 {dimension_numbers = #tpu.dot_dimension_numbers<[1], [0], [0], [1], [0, 0, 1, 1], [], []>} : vector<128x64xf32>, vector<64x32xf32>, vector<128x32xf32> -> vector<128x32xf32>
    %c0_283 = arith.constant 0 : index
    %c1_284 = arith.constant 1 : index
    %c1_285 = arith.constant 1 : index
    %c0_286 = arith.constant 0 : index
    %405 = vector.load %arg11[%c0_283, %c1_284, %c1_285, %c0_286] : memref<2x10x10x16xf32, #tpu.memory_space<vmem>>, vector<2x8x8x16xf32>
    %406 = vector.shape_cast %405 : vector<2x8x8x16xf32> to vector<128x16xf32>
    %c0_287 = arith.constant 0 : index
    %c1_288 = arith.constant 1 : index
    %c2_289 = arith.constant 2 : index
    %c0_290 = arith.constant 0 : index
    %407 = vector.load %arg11[%c0_287, %c1_288, %c2_289, %c0_290] : memref<2x10x10x16xf32, #tpu.memory_space<vmem>>, vector<2x8x8x16xf32>
    %408 = vector.shape_cast %407 : vector<2x8x8x16xf32> to vector<128x16xf32>
    %c0_291 = arith.constant 0 : index
    %c2_292 = arith.constant 2 : index
    %c1_293 = arith.constant 1 : index
    %c0_294 = arith.constant 0 : index
    %409 = vector.load %arg11[%c0_291, %c2_292, %c1_293, %c0_294] : memref<2x10x10x16xf32, #tpu.memory_space<vmem>>, vector<2x8x8x16xf32>
    %410 = vector.shape_cast %409 : vector<2x8x8x16xf32> to vector<128x16xf32>
    %c0_295 = arith.constant 0 : index
    %c2_296 = arith.constant 2 : index
    %c2_297 = arith.constant 2 : index
    %c0_298 = arith.constant 0 : index
    %411 = vector.load %arg11[%c0_295, %c2_296, %c2_297, %c0_298] : memref<2x10x10x16xf32, #tpu.memory_space<vmem>>, vector<2x8x8x16xf32>
    %412 = vector.shape_cast %411 : vector<2x8x8x16xf32> to vector<128x16xf32>
    %413 = tpu.concatenate %406, %408, %410, %412 in 1 : vector<128x16xf32>, vector<128x16xf32>, vector<128x16xf32>, vector<128x16xf32> -> vector<128x64xf32>
    %c3_299 = arith.constant 3 : index
    %c0_300 = arith.constant 0 : index
    %c0_301 = arith.constant 0 : index
    %414 = vector.load %arg8[%c3_299, %c0_300, %c0_301] : memref<4x64x32xf32, #tpu.memory_space<vmem>>, vector<1x64x32xf32>
    %415 = vector.shape_cast %414 : vector<1x64x32xf32> to vector<64x32xf32>
    %cst_302 = arith.constant dense<0.000000e+00> : vector<128x32xf32>
    %416 = tpu.matmul %413, %415, %cst_302 {dimension_numbers = #tpu.dot_dimension_numbers<[1], [0], [0], [1], [0, 0, 1, 1], [], []>} : vector<128x64xf32>, vector<64x32xf32>, vector<128x32xf32> -> vector<128x32xf32>
    %417 = tpu.concatenate %380, %392, %404, %416 in 1 : vector<128x32xf32>, vector<128x32xf32>, vector<128x32xf32>, vector<128x32xf32> -> vector<128x128xf32>
    %418 = math.tanh %417 : vector<128x128xf32>
    %c0_303 = arith.constant 0 : index
    %c0_304 = arith.constant 0 : index
    %419 = vector.load %arg9[%c0_303, %c0_304] : memref<128x128xf32, #tpu.memory_space<vmem>>, vector<128x128xf32>
    tpu.vector_store %arg9[%c0_303, %c0_304], %418 {strides = array<i32>} : memref<128x128xf32, #tpu.memory_space<vmem>>, vector<128x128xf32>,
    return
  }
  func.func @transform_0(%arg0: i32) -> (i32, i32) {
    %c0_i32 = arith.constant 0 : i32
    %c0_i32_0 = arith.constant 0 : i32
    %c0_i32_1 = arith.constant 0 : i32
    return %c0_i32, %c0_i32_0 : i32, i32
  }
  func.func @transform_1(%arg0: i32) -> (i32, i32) {
    %c0_i32 = arith.constant 0 : i32
    %c0_i32_0 = arith.constant 0 : i32
    %c0_i32_1 = arith.constant 0 : i32
    return %c0_i32, %c0_i32_0 : i32, i32
  }
  func.func @transform_2(%arg0: i32) -> (i32, i32) {
    %c0_i32 = arith.constant 0 : i32
    %c0_i32_0 = arith.constant 0 : i32
    %c0_i32_1 = arith.constant 0 : i32
    return %c0_i32, %c0_i32_0 : i32, i32
  }
  func.func @transform_3(%arg0: i32) -> (i32, i32) {
    %c0_i32 = arith.constant 0 : i32
    %c0_i32_0 = arith.constant 0 : i32
    %c0_i32_1 = arith.constant 0 : i32
    return %c0_i32, %c0_i32_0 : i32, i32
  }
  func.func @transform_4(%arg0: i32) -> (i32, i32) {
    %c0_i32 = arith.constant 0 : i32
    %c0_i32_0 = arith.constant 0 : i32
    %c0_i32_1 = arith.constant 0 : i32
    return %c0_i32, %c0_i32_0 : i32, i32
  }
  func.func @transform_5(%arg0: i32) -> (i32, i32) {
    %c0_i32 = arith.constant 0 : i32
    %c0_i32_0 = arith.constant 0 : i32
    %c0_i32_1 = arith.constant 0 : i32
    return %c0_i32, %c0_i32_0 : i32, i32
  }
  func.func @transform_6(%arg0: i32) -> (i32, i32) {
    %c0_i32 = arith.constant 0 : i32
    %c0_i32_0 = arith.constant 0 : i32
    %c0_i32_1 = arith.constant 0 : i32
    return %c0_i32, %c0_i32_0 : i32, i32
  }
  func.func @transform_7(%arg0: i32) -> (i32, i32, i32) {
    %c0_i32 = arith.constant 0 : i32
    %c0_i32_0 = arith.constant 0 : i32
    %c0_i32_1 = arith.constant 0 : i32
    %c0_i32_2 = arith.constant 0 : i32
    return %c0_i32, %c0_i32_0, %c0_i32_1 : i32, i32, i32
  }
  func.func @transform_8(%arg0: i32) -> (i32, i32) {
    %c0_i32 = arith.constant 0 : i32
    %c0_i32_0 = arith.constant 0 : i32
    %c0_i32_1 = arith.constant 0 : i32
    return %c0_i32, %c0_i32_0 : i32, i32
  }
}

</mosaic_0001>

<llo_original>
// kernel: generator_forward.1
$region0: #{generator_forward.1}
  #allocation0 [shape = 'u32[]', space=smem, size = 0x4, offset = 0x4, fixed_abs, tag = 'smem constant byte address 0x4 - core index']
  #allocation1 [shape = 'u32[72,128]{1,0:T(1,128)}', space=vmem, size = 0x9000, scoped, tag = 'internal scratch']
  #allocation2 [shape = 'f32[2,11,11,32]{3,2,1,0:T(8,128)}', space=vmem, size = 0x2c000, scoped, tag = 'scratch operand']
  #allocation3 [shape = 'f32[2,10,10,16]{3,2,1,0:T(8,128)}', space=vmem, size = 0x28000, scoped, tag = 'scratch operand']
  %s0 = inlined_call_operand.vmem [shape: f32[2,8], index: 0, kind: input, shape index: {}]
  %s1 = inlined_call_operand.vmem [shape: f32[8,512], index: 1, kind: input, shape index: {}]
  %s2 = inlined_call_operand.vmem [shape: f32[1,32], index: 2, kind: input, shape index: {}]
  %s3 = inlined_call_operand.vmem [shape: f32[1,32], index: 3, kind: input, shape index: {}]
  %s4 = inlined_call_operand.vmem [shape: f32[512,16], index: 4, kind: input, shape index: {}]
  %s5 = inlined_call_operand.vmem [shape: f32[1,16], index: 5, kind: input, shape index: {}]
  %s6 = inlined_call_operand.vmem [shape: f32[1,16], index: 6, kind: input, shape index: {}]
  %s7 = inlined_call_operand.vmem [shape: f32[4,64,32], index: 7, kind: input, shape index: {}]
  %s8 = inlined_call_operand.vmem [shape: f32[128,128], index: 8, kind: output, shape index: {}]
  %s9 = sld [smem:[#allocation0]]
  $region42: #{generator_forward.1} parent=0
    _
  %s11 = ssub.s32 1, %s9
  %s12 = scalar_select 0, %s11, %s9
  // Predicated region
  $region2: #{generator_forward.1} parent=0 // pred_check
    _
  $region3: #{generator_forward.1} parent=0 // pred_check_branch
    %14 = sbr.rel (0) target = $region5
  $region4: #{generator_forward.1} parent=0 // pred_region
    _
  $region5: #{generator_forward.1} parent=0 // pred_fallthru
    _
  // Predicated region
  $region6: #{generator_forward.1} parent=0 // pred_check
    _
  $region7: #{generator_forward.1} parent=0 // pred_check_branch
    %16 = sbr.rel (0) target = $region9
  $region8: #{generator_forward.1} parent=0 // pred_region
    _
  $region9: #{generator_forward.1} parent=0 // pred_fallthru
    _
  // Predicated region
  $region10: #{generator_forward.1} parent=0 // pred_check
    _
  $region11: #{generator_forward.1} parent=0 // pred_check_branch
    %18 = sbr.rel (0) target = $region13
  $region12: #{generator_forward.1} parent=0 // pred_region
    _
  $region13: #{generator_forward.1} parent=0 // pred_fallthru
    _
  // Predicated region
  $region14: #{generator_forward.1} parent=0 // pred_check
    _
  $region15: #{generator_forward.1} parent=0 // pred_check_branch
    %20 = sbr.rel (0) target = $region17
  $region16: #{generator_forward.1} parent=0 // pred_region
    _
  $region17: #{generator_forward.1} parent=0 // pred_fallthru
    _
  // Predicated region
  $region18: #{generator_forward.1} parent=0 // pred_check
    _
  $region19: #{generator_forward.1} parent=0 // pred_check_branch
    %22 = sbr.rel (0) target = $region21
  $region20: #{generator_forward.1} parent=0 // pred_region
    _
  $region21: #{generator_forward.1} parent=0 // pred_fallthru
    _
  // Predicated region
  $region22: #{generator_forward.1} parent=0 // pred_check
    _
  $region23: #{generator_forward.1} parent=0 // pred_check_branch
    %24 = sbr.rel (0) target = $region25
  $region24: #{generator_forward.1} parent=0 // pred_region
    _
  $region25: #{generator_forward.1} parent=0 // pred_fallthru
    _
  // Predicated region
  $region26: #{generator_forward.1} parent=0 // pred_check
    _
  $region27: #{generator_forward.1} parent=0 // pred_check_branch
    %26 = sbr.rel (0) target = $region29
  $region28: #{generator_forward.1} parent=0 // pred_region
    _
  $region29: #{generator_forward.1} parent=0 // pred_fallthru
    _
  // Predicated region
  $region30: #{generator_forward.1} parent=0 // pred_check
    _
  $region31: #{generator_forward.1} parent=0 // pred_check_branch
    %28 = sbr.rel (0) target = $region33
  $region32: #{generator_forward.1} parent=0 // pred_region
    _
  $region33: #{generator_forward.1} parent=0 // pred_fallthru
    _
  %v29 = vld [vmem:[%s0] sm:$0x3]
  %v30 = vld [vmem:[%s1] sm:$0xff]
  %v31 = vld [vmem:[%s1 + $0x8] sm:$0xff]
  %v32 = vld [vmem:[%s1 + $0x10] sm:$0xff]
  %v33 = vld [vmem:[%s1 + $0x18] sm:$0xff]
  %vm34 = vcmask 64512
  %v36 = vsel %vm34, %v29, 0
  %38 = vmatpush.msra.mxu0 0.0
  %39 = vmatpush.msra.mxu0 0.0
  %40 = vmatpush.msra.mxu0 0.0
  %41 = vmatpush.msra.mxu0 0.0
  %42 = vmatpush.msra.mxu0 0.0
  %43 = vmatpush.msra.mxu0 0.0
  %44 = vmatpush.msra.mxu0 0.0
  %45 = vmatpush.msra.mxu0 0.0
  %46 = vmatpush.msra.mxu0 0.0
  %47 = vmatpush.msra.mxu0 0.0
  %48 = vmatpush.msra.mxu0 0.0
  %49 = vmatpush.msra.mxu0 0.0
  %50 = vmatpush.msra.mxu0 0.0
  %51 = vmatpush.msra.mxu0 0.0
  %52 = vmatpush.msra.mxu0 0.0
  %53 = vmatpush.msra.mxu0 %v30
  %54 = vmatmul.f32.gmra.mxu0 %v36
  %v55 = vpop.f32.mrf.mxu0
  %v56 = vadd.f32 0.0, %v55
  %57 = vdwg.mxu0
  %58 = vmatpush.msra.mxu0 0.0
  %59 = vmatpush.msra.mxu0 0.0
  %60 = vmatpush.msra.mxu0 0.0
  %61 = vmatpush.msra.mxu0 0.0
  %62 = vmatpush.msra.mxu0 0.0
  %63 = vmatpush.msra.mxu0 0.0
  %64 = vmatpush.msra.mxu0 0.0
  %65 = vmatpush.msra.mxu0 0.0
  %66 = vmatpush.msra.mxu0 0.0
  %67 = vmatpush.msra.mxu0 0.0
  %68 = vmatpush.msra.mxu0 0.0
  %69 = vmatpush.msra.mxu0 0.0
  %70 = vmatpush.msra.mxu0 0.0
  %71 = vmatpush.msra.mxu0 0.0
  %72 = vmatpush.msra.mxu0 0.0
  %73 = vmatpush.msra.mxu0 %v31
  %74 = vmatmul.f32.gmra.mxu0 %v36
  %v75 = vpop.f32.mrf.mxu0
  %v76 = vadd.f32 0.0, %v75
  %77 = vdwg.mxu0
  %78 = vmatpush.msra.mxu0 0.0
  %79 = vmatpush.msra.mxu0 0.0
  %80 = vmatpush.msra.mxu0 0.0
  %81 = vmatpush.msra.mxu0 0.0
  %82 = vmatpush.msra.mxu0 0.0
  %83 = vmatpush.msra.mxu0 0.0
  %84 = vmatpush.msra.mxu0 0.0
  %85 = vmatpush.msra.mxu0 0.0
  %86 = vmatpush.msra.mxu0 0.0
  %87 = vmatpush.msra.mxu0 0.0
  %88 = vmatpush.msra.mxu0 0.0
  %89 = vmatpush.msra.mxu0 0.0
  %90 = vmatpush.msra.mxu0 0.0
  %91 = vmatpush.msra.mxu0 0.0
  %92 = vmatpush.msra.mxu0 0.0
  %93 = vmatpush.msra.mxu0 %v32
  %94 = vmatmul.f32.gmra.mxu0 %v36
  %v95 = vpop.f32.mrf.mxu0
  %v96 = vadd.f32 0.0, %v95
  %97 = vdwg.mxu0
  %98 = vmatpush.msra.mxu0 0.0
  %99 = vmatpush.msra.mxu0 0.0
  %100 = vmatpush.msra.mxu0 0.0
  %101 = vmatpush.msra.mxu0 0.0
  %102 = vmatpush.msra.mxu0 0.0
  %103 = vmatpush.msra.mxu0 0.0
  %104 = vmatpush.msra.mxu0 0.0
  %105 = vmatpush.msra.mxu0 0.0
  %106 = vmatpush.msra.mxu0 0.0
  %107 = vmatpush.msra.mxu0 0.0
  %108 = vmatpush.msra.mxu0 0.0
  %109 = vmatpush.msra.mxu0 0.0
  %110 = vmatpush.msra.mxu0 0.0
  %111 = vmatpush.msra.mxu0 0.0
  %112 = vmatpush.msra.mxu0 0.0
  %113 = vmatpush.msra.mxu0 %v33
  %114 = vmatmul.f32.gmra.mxu0 %v36
  %v115 = vpop.f32.mrf.mxu0
  %v116 = vadd.f32 0.0, %v115
  %117 = vdwg.mxu0
  %vm118 = vcmask 254976
  %v119 = vsel %vm118, %v56, 0.0
  %v120 = vrot.slane %v119, 4
  %v121 = vadd.f32 %v119, %v120
  %v122 = vrot.slane %v121, 2
  %v123 = vadd.f32 %v121, %v122
  %v124 = vrot.slane %v123, 1
  %v125 = vadd.f32 %v123, %v124
  %v126 = vadd.f32 %v125, 0.0
  %v127 = vmul.f32 %v56, %v56
  %v128 = vsel %vm118, %v127, 0.0
  %v129 = vrot.slane %v128, 4
  %v130 = vadd.f32 %v128, %v129
  %v131 = vrot.slane %v130, 2
  %v132 = vadd.f32 %v130, %v131
  %v133 = vrot.slane %v132, 1
  %v134 = vadd.f32 %v132, %v133
  %v135 = vadd.f32 %v134, 0.0
  %vm136 = vcmask 517376
  %v137 = vsel %vm136, %v56, 0.0
  %v138 = vrot.slane %v137, 4
  %v139 = vadd.f32 %v137, %v138
  %v140 = vrot.slane %v139, 2
  %v141 = vadd.f32 %v139, %v140
  %v142 = vrot.slane %v141, 1
  %v143 = vadd.f32 %v141, %v142
  %145 = vrot.lane.b32.xlu0 %v143, 96
  %v146 = vpop.permute.xlu0 %145
  %v148 = vadd.f32 %v126, %v146
  %v149 = vsel %vm136, %v127, 0.0
  %v150 = vrot.slane %v149, 4
  %v151 = vadd.f32 %v149, %v150
  %v152 = vrot.slane %v151, 2
  %v153 = vadd.f32 %v151, %v152
  %v154 = vrot.slane %v153, 1
  %v155 = vadd.f32 %v153, %v154
  %157 = vrot.lane.b32.xlu0 %v155, 96
  %v158 = vpop.permute.xlu0 %157
  %v160 = vadd.f32 %v135, %v158
  %vm161 = vcmask 779776
  %v162 = vsel %vm161, %v56, 0.0
  %v163 = vrot.slane %v162, 4
  %v164 = vadd.f32 %v162, %v163
  %v165 = vrot.slane %v164, 2
  %v166 = vadd.f32 %v164, %v165
  %v167 = vrot.slane %v166, 1
  %v168 = vadd.f32 %v166, %v167
  %170 = vrot.lane.b32.xlu0 %v168, 64
  %v171 = vpop.permute.xlu0 %170
  %v173 = vadd.f32 %v148, %v171
  %v174 = vsel %vm161, %v127, 0.0
  %v175 = vrot.slane %v174, 4
  %v176 = vadd.f32 %v174, %v175
  %v177 = vrot.slane %v176, 2
  %v178 = vadd.f32 %v176, %v177
  %v179 = vrot.slane %v178, 1
  %v180 = vadd.f32 %v178, %v179
  %182 = vrot.lane.b32.xlu0 %v180, 64
  %v183 = vpop.permute.xlu0 %182
  %v185 = vadd.f32 %v160, %v183
  %vm186 = vcmask 1042176
  %v187 = vsel %vm186, %v56, 0.0
  %v188 = vrot.slane %v187, 4
  %v189 = vadd.f32 %v187, %v188
  %v190 = vrot.slane %v189, 2
  %v191 = vadd.f32 %v189, %v190
  %v192 = vrot.slane %v191, 1
  %v193 = vadd.f32 %v191, %v192
  %195 = vrot.lane.b32.xlu0 %v193, 32
  %v196 = vpop.permute.xlu0 %195
  %v198 = vadd.f32 %v173, %v196
  %v199 = vsel %vm186, %v127, 0.0
  %v200 = vrot.slane %v199, 4
  %v201 = vadd.f32 %v199, %v200
  %v202 = vrot.slane %v201, 2
  %v203 = vadd.f32 %v201, %v202
  %v204 = vrot.slane %v203, 1
  %v205 = vadd.f32 %v203, %v204
  %207 = vrot.lane.b32.xlu0 %v205, 32
  %v208 = vpop.permute.xlu0 %207
  %v210 = vadd.f32 %v185, %v208
  %v211 = vsel %vm118, %v76, 0.0
  %v212 = vrot.slane %v211, 4
  %v213 = vadd.f32 %v211, %v212
  %v214 = vrot.slane %v213, 2
  %v215 = vadd.f32 %v213, %v214
  %v216 = vrot.slane %v215, 1
  %v217 = vadd.f32 %v215, %v216
  %v218 = vadd.f32 %v198, %v217
  %v219 = vmul.f32 %v76, %v76
  %v220 = vsel %vm118, %v219, 0.0
  %v221 = vrot.slane %v220, 4
  %v222 = vadd.f32 %v220, %v221
  %v223 = vrot.slane %v222, 2
  %v224 = vadd.f32 %v222, %v223
  %v225 = vrot.slane %v224, 1
  %v226 = vadd.f32 %v224, %v225
  %v227 = vadd.f32 %v210, %v226
  %v228 = vsel %vm136, %v76, 0.0
  %v229 = vrot.slane %v228, 4
  %v230 = vadd.f32 %v228, %v229
  %v231 = vrot.slane %v230, 2
  %v232 = vadd.f32 %v230, %v231
  %v233 = vrot.slane %v232, 1
  %v234 = vadd.f32 %v232, %v233
  %236 = vrot.lane.b32.xlu0 %v234, 96
  %v237 = vpop.permute.xlu0 %236
  %v239 = vadd.f32 %v218, %v237
  %v240 = vsel %vm136, %v219, 0.0
  %v241 = vrot.slane %v240, 4
  %v242 = vadd.f32 %v240, %v241
  %v243 = vrot.slane %v242, 2
  %v244 = vadd.f32 %v242, %v243
  %v245 = vrot.slane %v244, 1
  %v246 = vadd.f32 %v244, %v245
  %248 = vrot.lane.b32.xlu0 %v246, 96
  %v249 = vpop.permute.xlu0 %248
  %v251 = vadd.f32 %v227, %v249
  %v252 = vsel %vm161, %v76, 0.0
  %v253 = vrot.slane %v252, 4
  %v254 = vadd.f32 %v252, %v253
  %v255 = vrot.slane %v254, 2
  %v256 = vadd.f32 %v254, %v255
  %v257 = vrot.slane %v256, 1
  %v258 = vadd.f32 %v256, %v257
  %260 = vrot.lane.b32.xlu0 %v258, 64
  %v261 = vpop.permute.xlu0 %260
  %v263 = vadd.f32 %v239, %v261
  %v264 = vsel %vm161, %v219, 0.0
  %v265 = vrot.slane %v264, 4
  %v266 = vadd.f32 %v264, %v265
  %v267 = vrot.slane %v266, 2
  %v268 = vadd.f32 %v266, %v267
  %v269 = vrot.slane %v268, 1
  %v270 = vadd.f32 %v268, %v269
  %272 = vrot.lane.b32.xlu0 %v270, 64
  %v273 = vpop.permute.xlu0 %272
  %v275 = vadd.f32 %v251, %v273
  %v276 = vsel %vm186, %v76, 0.0
  %v277 = vrot.slane %v276, 4
  %v278 = vadd.f32 %v276, %v277
  %v279 = vrot.slane %v278, 2
  %v280 = vadd.f32 %v278, %v279
  %v281 = vrot.slane %v280, 1
  %v282 = vadd.f32 %v280, %v281
  %284 = vrot.lane.b32.xlu0 %v282, 32
  %v285 = vpop.permute.xlu0 %284
  %v287 = vadd.f32 %v263, %v285
  %v288 = vsel %vm186, %v219, 0.0
  %v289 = vrot.slane %v288, 4
  %v290 = vadd.f32 %v288, %v289
  %v291 = vrot.slane %v290, 2
  %v292 = vadd.f32 %v290, %v291
  %v293 = vrot.slane %v292, 1
  %v294 = vadd.f32 %v292, %v293
  %296 = vrot.lane.b32.xlu0 %v294, 32
  %v297 = vpop.permute.xlu0 %296
  %v299 = vadd.f32 %v275, %v297
  %v300 = vsel %vm118, %v96, 0.0
  %v301 = vrot.slane %v300, 4
  %v302 = vadd.f32 %v300, %v301
  %v303 = vrot.slane %v302, 2
  %v304 = vadd.f32 %v302, %v303
  %v305 = vrot.slane %v304, 1
  %v306 = vadd.f32 %v304, %v305
  %v307 = vadd.f32 %v287, %v306
  %v308 = vmul.f32 %v96, %v96
  %v309 = vsel %vm118, %v308, 0.0
  %v310 = vrot.slane %v309, 4
  %v311 = vadd.f32 %v309, %v310
  %v312 = vrot.slane %v311, 2
  %v313 = vadd.f32 %v311, %v312
  %v314 = vrot.slane %v313, 1
  %v315 = vadd.f32 %v313, %v314
  %v316 = vadd.f32 %v299, %v315
  %v317 = vsel %vm136, %v96, 0.0
  %v318 = vrot.slane %v317, 4
  %v319 = vadd.f32 %v317, %v318
  %v320 = vrot.slane %v319, 2
  %v321 = vadd.f32 %v319, %v320
  %v322 = vrot.slane %v321, 1
  %v323 = vadd.f32 %v321, %v322
  %325 = vrot.lane.b32.xlu0 %v323, 96
  %v326 = vpop.permute.xlu0 %325
  %v328 = vadd.f32 %v307, %v326
  %v329 = vsel %vm136, %v308, 0.0
  %v330 = vrot.slane %v329, 4
  %v331 = vadd.f32 %v329, %v330
  %v332 = vrot.slane %v331, 2
  %v333 = vadd.f32 %v331, %v332
  %v334 = vrot.slane %v333, 1
  %v335 = vadd.f32 %v333, %v334
  %337 = vrot.lane.b32.xlu0 %v335, 96
  %v338 = vpop.permute.xlu0 %337
  %v340 = vadd.f32 %v316, %v338
  %v341 = vsel %vm161, %v96, 0.0
  %v342 = vrot.slane %v341, 4
  %v343 = vadd.f32 %v341, %v342
  %v344 = vrot.slane %v343, 2
  %v345 = vadd.f32 %v343, %v344
  %v346 = vrot.slane %v345, 1
  %v347 = vadd.f32 %v345, %v346
  %349 = vrot.lane.b32.xlu0 %v347, 64
  %v350 = vpop.permute.xlu0 %349
  %v352 = vadd.f32 %v328, %v350
  %v353 = vsel %vm161, %v308, 0.0
  %v354 = vrot.slane %v353, 4
  %v355 = vadd.f32 %v353, %v354
  %v356 = vrot.slane %v355, 2
  %v357 = vadd.f32 %v355, %v356
  %v358 = vrot.slane %v357, 1
  %v359 = vadd.f32 %v357, %v358
  %361 = vrot.lane.b32.xlu0 %v359, 64
  %v362 = vpop.permute.xlu0 %361
  %v364 = vadd.f32 %v340, %v362
  %v365 = vsel %vm186, %v96, 0.0
  %v366 = vrot.slane %v365, 4
  %v367 = vadd.f32 %v365, %v366
  %v368 = vrot.slane %v367, 2
  %v369 = vadd.f32 %v367, %v368
  %v370 = vrot.slane %v369, 1
  %v371 = vadd.f32 %v369, %v370
  %373 = vrot.lane.b32.xlu0 %v371, 32
  %v374 = vpop.permute.xlu0 %373
  %v376 = vadd.f32 %v352, %v374
  %v377 = vsel %vm186, %v308, 0.0
  %v378 = vrot.slane %v377, 4
  %v379 = vadd.f32 %v377, %v378
  %v380 = vrot.slane %v379, 2
  %v381 = vadd.f32 %v379, %v380
  %v382 = vrot.slane %v381, 1
  %v383 = vadd.f32 %v381, %v382
  %385 = vrot.lane.b32.xlu0 %v383, 32
  %v386 = vpop.permute.xlu0 %385
  %v388 = vadd.f32 %v364, %v386
  %v389 = vsel %vm118, %v116, 0.0
  %v390 = vrot.slane %v389, 4
  %v391 = vadd.f32 %v389, %v390
  %v392 = vrot.slane %v391, 2
  %v393 = vadd.f32 %v391, %v392
  %v394 = vrot.slane %v393, 1
  %v395 = vadd.f32 %v393, %v394
  %v396 = vadd.f32 %v376, %v395
  %v397 = vmul.f32 %v116, %v116
  %v398 = vsel %vm118, %v397, 0.0
  %v399 = vrot.slane %v398, 4
  %v400 = vadd.f32 %v398, %v399
  %v401 = vrot.slane %v400, 2
  %v402 = vadd.f32 %v400, %v401
  %v403 = vrot.slane %v402, 1
  %v404 = vadd.f32 %v402, %v403
  %v405 = vadd.f32 %v388, %v404
  %v406 = vsel %vm136, %v116, 0.0
  %v407 = vrot.slane %v406, 4
  %v408 = vadd.f32 %v406, %v407
  %v409 = vrot.slane %v408, 2
  %v410 = vadd.f32 %v408, %v409
  %v411 = vrot.slane %v410, 1
  %v412 = vadd.f32 %v410, %v411
  %414 = vrot.lane.b32.xlu0 %v412, 96
  %v415 = vpop.permute.xlu0 %414
  %v417 = vadd.f32 %v396, %v415
  %v418 = vsel %vm136, %v397, 0.0
  %v419 = vrot.slane %v418, 4
  %v420 = vadd.f32 %v418, %v419
  %v421 = vrot.slane %v420, 2
  %v422 = vadd.f32 %v420, %v421
  %v423 = vrot.slane %v422, 1
  %v424 = vadd.f32 %v422, %v423
  %426 = vrot.lane.b32.xlu0 %v424, 96
  %v427 = vpop.permute.xlu0 %426
  %v429 = vadd.f32 %v405, %v427
  %v430 = vsel %vm161, %v116, 0.0
  %v431 = vrot.slane %v430, 4
  %v432 = vadd.f32 %v430, %v431
  %v433 = vrot.slane %v432, 2
  %v434 = vadd.f32 %v432, %v433
  %v435 = vrot.slane %v434, 1
  %v436 = vadd.f32 %v434, %v435
  %438 = vrot.lane.b32.xlu0 %v436, 64
  %v439 = vpop.permute.xlu0 %438
  %v441 = vadd.f32 %v417, %v439
  %v442 = vsel %vm161, %v397, 0.0
  %v443 = vrot.slane %v442, 4
  %v444 = vadd.f32 %v442, %v443
  %v445 = vrot.slane %v444, 2
  %v446 = vadd.f32 %v444, %v445
  %v447 = vrot.slane %v446, 1
  %v448 = vadd.f32 %v446, %v447
  %450 = vrot.lane.b32.xlu0 %v448, 64
  %v451 = vpop.permute.xlu0 %450
  %v453 = vadd.f32 %v429, %v451
  %v454 = vsel %vm186, %v116, 0.0
  %v455 = vrot.slane %v454, 4
  %v456 = vadd.f32 %v454, %v455
  %v457 = vrot.slane %v456, 2
  %v458 = vadd.f32 %v456, %v457
  %v459 = vrot.slane %v458, 1
  %v460 = vadd.f32 %v458, %v459
  %462 = vrot.lane.b32.xlu0 %v460, 32
  %v463 = vpop.permute.xlu0 %462
  %v465 = vadd.f32 %v441, %v463
  %v466 = vsel %vm186, %v397, 0.0
  %v467 = vrot.slane %v466, 4
  %v468 = vadd.f32 %v466, %v467
  %v469 = vrot.slane %v468, 2
  %v470 = vadd.f32 %v468, %v469
  %v471 = vrot.slane %v470, 1
  %v472 = vadd.f32 %v470, %v471
  %474 = vrot.lane.b32.xlu0 %v472, 32
  %v475 = vpop.permute.xlu0 %474
  %v477 = vadd.f32 %v453, %v475
  %v478 = vmul.f32 %v465, 0.03125
  %v479 = vmul.f32 %v477, 0.03125
  %v480 = vmul.f32 %v478, %v478
  %v481 = vsub.f32 %v479, %v480
  %v482 = vld [vmem:[%s2] sm:$0x1]
  %v483 = vadd.f32 %v481, 1e-05
  %v484 = vrsqrt.pop %v483
  %v485 = vmul.f32 %v484, %v483
  %v486 = vmul.f32 %v485, %v484
  %v487 = vmul.f32 0.5, %v486
  %v488 = vsub.f32 1.5, %v487
  %v489 = vmul.f32 %v484, %v488
  %vm490 = vweird.f32 %v483
  %vm491 = vweird.f32 %v484
  %vm492 = vmor %vm490, %vm491
  %v493 = vsel %vm492, %v484, %v489
  %v494 = vmul.f32 %v482, %v493
  %v495 = vld [vmem:[%s3] sm:$0x1]
  %v496 = vmul.f32 %v478, %v494
  %v497 = vsub.f32 %v495, %v496
  %vm498 = vcmask 261120
  %499 = vst.msk [vmem:[#allocation2] sm:$0xff] %vm498, 0.0
  %vm500 = vcmask 256000
  %501 = vst.msk [vmem:[#allocation2 + $0x8] sm:$0x7] %vm500, 0.0
  %502 = vst.msk [vmem:[#allocation2 + $0x10] sm:$0xff] %vm498, 0.0
  %503 = vst.msk [vmem:[#allocation2 + $0x18] sm:$0x7] %vm500, 0.0
  %504 = vst.msk [vmem:[#allocation2 + $0x20] sm:$0xff] %vm498, 0.0
  %505 = vst.msk [vmem:[#allocation2 + $0x28] sm:$0x7] %vm500, 0.0
  %506 = vst.msk [vmem:[#allocation2 + $0x30] sm:$0xff] %vm498, 0.0
  %507 = vst.msk [vmem:[#allocation2 + $0x38] sm:$0x7] %vm500, 0.0
  %508 = vst.msk [vmem:[#allocation2 + $0x40] sm:$0xff] %vm498, 0.0
  %509 = vst.msk [vmem:[#allocation2 + $0x48] sm:$0x7] %vm500, 0.0
  %510 = vst.msk [vmem:[#allocation2 + $0x50] sm:$0xff] %vm498, 0.0
  %511 = vst.msk [vmem:[#allocation2 + $0x58] sm:$0x7] %vm500, 0.0
  %512 = vst.msk [vmem:[#allocation2 + $0x60] sm:$0xff] %vm498, 0.0
  %513 = vst.msk [vmem:[#allocation2 + $0x68] sm:$0x7] %vm500, 0.0
  %514 = vst.msk [vmem:[#allocation2 + $0x70] sm:$0xff] %vm498, 0.0
  %515 = vst.msk [vmem:[#allocation2 + $0x78] sm:$0x7] %vm500, 0.0
  %516 = vst.msk [vmem:[#allocation2 + $0x80] sm:$0xff] %vm498, 0.0
  %517 = vst.msk [vmem:[#allocation2 + $0x88] sm:$0x7] %vm500, 0.0
  %518 = vst.msk [vmem:[#allocation2 + $0x90] sm:$0xff] %vm498, 0.0
  %519 = vst.msk [vmem:[#allocation2 + $0x98] sm:$0x7] %vm500, 0.0
  %520 = vst.msk [vmem:[#allocation2 + $0xa0] sm:$0xff] %vm498, 0.0
  %521 = vst.msk [vmem:[#allocation2 + $0xa8] sm:$0x7] %vm500, 0.0
  %522 = vst.msk [vmem:[#allocation2 + $0xb0] sm:$0xff] %vm498, 0.0
  %523 = vst.msk [vmem:[#allocation2 + $0xb8] sm:$0x7] %vm500, 0.0
  %524 = vst.msk [vmem:[#allocation2 + $0xc0] sm:$0xff] %vm498, 0.0
  %525 = vst.msk [vmem:[#allocation2 + $0xc8] sm:$0x7] %vm500, 0.0
  %526 = vst.msk [vmem:[#allocation2 + $0xd0] sm:$0xff] %vm498, 0.0
  %527 = vst.msk [vmem:[#allocation2 + $0xd8] sm:$0x7] %vm500, 0.0
  %528 = vst.msk [vmem:[#allocation2 + $0xe0] sm:$0xff] %vm498, 0.0
  %529 = vst.msk [vmem:[#allocation2 + $0xe8] sm:$0x7] %vm500, 0.0
  %530 = vst.msk [vmem:[#allocation2 + $0xf0] sm:$0xff] %vm498, 0.0
  %531 = vst.msk [vmem:[#allocation2 + $0xf8] sm:$0x7] %vm500, 0.0
  %532 = vst.msk [vmem:[#allocation2 + $0x100] sm:$0xff] %vm498, 0.0
  %533 = vst.msk [vmem:[#allocation2 + $0x108] sm:$0x7] %vm500, 0.0
  %534 = vst.msk [vmem:[#allocation2 + $0x110] sm:$0xff] %vm498, 0.0
  %535 = vst.msk [vmem:[#allocation2 + $0x118] sm:$0x7] %vm500, 0.0
  %536 = vst.msk [vmem:[#allocation2 + $0x120] sm:$0xff] %vm498, 0.0
  %537 = vst.msk [vmem:[#allocation2 + $0x128] sm:$0x7] %vm500, 0.0
  %538 = vst.msk [vmem:[#allocation2 + $0x130] sm:$0xff] %vm498, 0.0
  %539 = vst.msk [vmem:[#allocation2 + $0x138] sm:$0x7] %vm500, 0.0
  %540 = vst.msk [vmem:[#allocation2 + $0x140] sm:$0xff] %vm498, 0.0
  %541 = vst.msk [vmem:[#allocation2 + $0x148] sm:$0x7] %vm500, 0.0
  %542 = vst.msk [vmem:[#allocation2 + $0x150] sm:$0xff] %vm498, 0.0
  %543 = vst.msk [vmem:[#allocation2 + $0x158] sm:$0x7] %vm500, 0.0
  %v545 = vperm.slane %v494, 0
  %v547 = vmul.f32 %v56, %v545
  %v549 = vperm.slane %v497, 0
  %v551 = vadd.f32 %v547, %v549
  %v552 = vmax.f32 %v551, 0.0
  %v554 = vrot.slane %v552, 1
  %s556 = scalar_lea.vmem [#allocation2], 32
  %vm557 = vcmask 253952
  %558 = vst.msk [vmem:[%s556 + $0x2] sm:$0x1] %vm557, %v552
  %559 = vst.msk [vmem:[%s556 + $0xb2] sm:$0x1] %vm557, %v554
  %560 = vrot.lane.b32.xlu0 %v545, 32
  %v561 = vpop.permute.xlu0 %560
  %v563 = vmul.f32 %v56, %v561
  %564 = vrot.lane.b32.xlu0 %v549, 32
  %v565 = vpop.permute.xlu0 %564
  %v567 = vadd.f32 %v563, %v565
  %v568 = vmax.f32 %v567, 0.0
  %v570 = vrot.slane %v568, 1
  %v571 = vperm.slane %v568, 0
  %v572 = vperm.slane %v570, 0
  %573 = vrot.lane.b32.xlu0 %v571, 96
  %v574 = vpop.permute.xlu0 %573
  %575 = vrot.lane.b32.xlu0 %v572, 96
  %v576 = vpop.permute.xlu0 %575
  %579 = vst.msk [vmem:[%s556 + $0x4] sm:$0x1] %vm557, %v574
  %580 = vst.msk [vmem:[%s556 + $0xb4] sm:$0x1] %vm557, %v576
  %581 = vrot.lane.b32.xlu0 %v545, 64
  %v582 = vpop.permute.xlu0 %581
  %v584 = vmul.f32 %v56, %v582
  %585 = vrot.lane.b32.xlu0 %v549, 64
  %v586 = vpop.permute.xlu0 %585
  %v588 = vadd.f32 %v584, %v586
  %v589 = vmax.f32 %v588, 0.0
  %v591 = vrot.slane %v589, 1
  %v592 = vperm.slane %v589, 0
  %v593 = vperm.slane %v591, 0
  %594 = vrot.lane.b32.xlu0 %v592, 64
  %v595 = vpop.permute.xlu0 %594
  %596 = vrot.lane.b32.xlu0 %v593, 64
  %v597 = vpop.permute.xlu0 %596
  %600 = vst.msk [vmem:[%s556 + $0x6] sm:$0x1] %vm557, %v595
  %601 = vst.msk [vmem:[%s556 + $0xb6] sm:$0x1] %vm557, %v597
  %602 = vrot.lane.b32.xlu0 %v545, 96
  %v603 = vpop.permute.xlu0 %602
  %v605 = vmul.f32 %v56, %v603
  %606 = vrot.lane.b32.xlu0 %v549, 96
  %v607 = vpop.permute.xlu0 %606
  %v609 = vadd.f32 %v605, %v607
  %v610 = vmax.f32 %v609, 0.0
  %v612 = vrot.slane %v610, 1
  %v613 = vperm.slane %v610, 0
  %v614 = vperm.slane %v612, 0
  %615 = vrot.lane.b32.xlu0 %v613, 32
  %v616 = vpop.permute.xlu0 %615
  %617 = vrot.lane.b32.xlu0 %v614, 32
  %v618 = vpop.permute.xlu0 %617
  %621 = vst.msk [vmem:[%s556 + $0x8] sm:$0x1] %vm557, %v616
  %622 = vst.msk [vmem:[%s556 + $0xb8] sm:$0x1] %vm557, %v618
  %v623 = vmul.f32 %v76, %v545
  %v624 = vadd.f32 %v623, %v549
  %v625 = vmax.f32 %v624, 0.0
  %v627 = vrot.slane %v625, 1
  %s629 = scalar_lea.vmem [#allocation2], 64
  %630 = vst.msk [vmem:[%s629 + $0x2] sm:$0x1] %vm557, %v625
  %631 = vst.msk [vmem:[%s629 + $0xb2] sm:$0x1] %vm557, %v627
  %v632 = vmul.f32 %v76, %v561
  %v633 = vadd.f32 %v632, %v565
  %v634 = vmax.f32 %v633, 0.0
  %v636 = vrot.slane %v634, 1
  %v637 = vperm.slane %v634, 0
  %v638 = vperm.slane %v636, 0
  %639 = vrot.lane.b32.xlu0 %v637, 96
  %v640 = vpop.permute.xlu0 %639
  %641 = vrot.lane.b32.xlu0 %v638, 96
  %v642 = vpop.permute.xlu0 %641
  %645 = vst.msk [vmem:[%s629 + $0x4] sm:$0x1] %vm557, %v640
  %646 = vst.msk [vmem:[%s629 + $0xb4] sm:$0x1] %vm557, %v642
  %v647 = vmul.f32 %v76, %v582
  %v648 = vadd.f32 %v647, %v586
  %v649 = vmax.f32 %v648, 0.0
  %v651 = vrot.slane %v649, 1
  %v652 = vperm.slane %v649, 0
  %v653 = vperm.slane %v651, 0
  %654 = vrot.lane.b32.xlu0 %v652, 64
  %v655 = vpop.permute.xlu0 %654
  %656 = vrot.lane.b32.xlu0 %v653, 64
  %v657 = vpop.permute.xlu0 %656
  %660 = vst.msk [vmem:[%s629 + $0x6] sm:$0x1] %vm557, %v655
  %661 = vst.msk [vmem:[%s629 + $0xb6] sm:$0x1] %vm557, %v657
  %v662 = vmul.f32 %v76, %v603
  %v663 = vadd.f32 %v662, %v607
  %v664 = vmax.f32 %v663, 0.0
  %v666 = vrot.slane %v664, 1
  %v667 = vperm.slane %v664, 0
  %v668 = vperm.slane %v666, 0
  %669 = vrot.lane.b32.xlu0 %v667, 32
  %v670 = vpop.permute.xlu0 %669
  %671 = vrot.lane.b32.xlu0 %v668, 32
  %v672 = vpop.permute.xlu0 %671
  %675 = vst.msk [vmem:[%s629 + $0x8] sm:$0x1] %vm557, %v670
  %676 = vst.msk [vmem:[%s629 + $0xb8] sm:$0x1] %vm557, %v672
  %v677 = vmul.f32 %v96, %v545
  %v678 = vadd.f32 %v677, %v549
  %v679 = vmax.f32 %v678, 0.0
  %v681 = vrot.slane %v679, 1
  %s683 = scalar_lea.vmem [#allocation2], 96
  %684 = vst.msk [vmem:[%s683 + $0x2] sm:$0x1] %vm557, %v679
  %685 = vst.msk [vmem:[%s683 + $0xb2] sm:$0x1] %vm557, %v681
  %v686 = vmul.f32 %v96, %v561
  %v687 = vadd.f32 %v686, %v565
  %v688 = vmax.f32 %v687, 0.0
  %v690 = vrot.slane %v688, 1
  %v691 = vperm.slane %v688, 0
  %v692 = vperm.slane %v690, 0
  %693 = vrot.lane.b32.xlu0 %v691, 96
  %v694 = vpop.permute.xlu0 %693
  %695 = vrot.lane.b32.xlu0 %v692, 96
  %v696 = vpop.permute.xlu0 %695
  %699 = vst.msk [vmem:[%s683 + $0x4] sm:$0x1] %vm557, %v694
  %700 = vst.msk [vmem:[%s683 + $0xb4] sm:$0x1] %vm557, %v696
  %v701 = vmul.f32 %v96, %v582
  %v702 = vadd.f32 %v701, %v586
  %v703 = vmax.f32 %v702, 0.0
  %v705 = vrot.slane %v703, 1
  %v706 = vperm.slane %v703, 0
  %v707 = vperm.slane %v705, 0
  %708 = vrot.lane.b32.xlu0 %v706, 64
  %v709 = vpop.permute.xlu0 %708
  %710 = vrot.lane.b32.xlu0 %v707, 64
  %v711 = vpop.permute.xlu0 %710
  %714 = vst.msk [vmem:[%s683 + $0x6] sm:$0x1] %vm557, %v709
  %715 = vst.msk [vmem:[%s683 + $0xb6] sm:$0x1] %vm557, %v711
  %v716 = vmul.f32 %v96, %v603
  %v717 = vadd.f32 %v716, %v607
  %v718 = vmax.f32 %v717, 0.0
  %v720 = vrot.slane %v718, 1
  %v721 = vperm.slane %v718, 0
  %v722 = vperm.slane %v720, 0
  %723 = vrot.lane.b32.xlu0 %v721, 32
  %v724 = vpop.permute.xlu0 %723
  %725 = vrot.lane.b32.xlu0 %v722, 32
  %v726 = vpop.permute.xlu0 %725
  %729 = vst.msk [vmem:[%s683 + $0x8] sm:$0x1] %vm557, %v724
  %730 = vst.msk [vmem:[%s683 + $0xb8] sm:$0x1] %vm557, %v726
  %v731 = vmul.f32 %v116, %v545
  %v732 = vadd.f32 %v731, %v549
  %v733 = vmax.f32 %v732, 0.0
  %v735 = vrot.slane %v733, 1
  %s737 = scalar_lea.vmem [#allocation2], 128
  %738 = vst.msk [vmem:[%s737 + $0x2] sm:$0x1] %vm557, %v733
  %739 = vst.msk [vmem:[%s737 + $0xb2] sm:$0x1] %vm557, %v735
  %v740 = vmul.f32 %v116, %v561
  %v741 = vadd.f32 %v740, %v565
  %v742 = vmax.f32 %v741, 0.0
  %v744 = vrot.slane %v742, 1
  %v745 = vperm.slane %v742, 0
  %v746 = vperm.slane %v744, 0
  %747 = vrot.lane.b32.xlu0 %v745, 96
  %v748 = vpop.permute.xlu0 %747
  %749 = vrot.lane.b32.xlu0 %v746, 96
  %v750 = vpop.permute.xlu0 %749
  %753 = vst.msk [vmem:[%s737 + $0x4] sm:$0x1] %vm557, %v748
  %754 = vst.msk [vmem:[%s737 + $0xb4] sm:$0x1] %vm557, %v750
  %v755 = vmul.f32 %v116, %v582
  %v756 = vadd.f32 %v755, %v586
  %v757 = vmax.f32 %v756, 0.0
  %v759 = vrot.slane %v757, 1
  %v760 = vperm.slane %v757, 0
  %v761 = vperm.slane %v759, 0
  %762 = vrot.lane.b32.xlu0 %v760, 64
  %v763 = vpop.permute.xlu0 %762
  %764 = vrot.lane.b32.xlu0 %v761, 64
  %v765 = vpop.permute.xlu0 %764
  %768 = vst.msk [vmem:[%s737 + $0x6] sm:$0x1] %vm557, %v763
  %769 = vst.msk [vmem:[%s737 + $0xb6] sm:$0x1] %vm557, %v765
  %v770 = vmul.f32 %v116, %v603
  %v771 = vadd.f32 %v770, %v607
  %v772 = vmax.f32 %v771, 0.0
  %v774 = vrot.slane %v772, 1
  %v775 = vperm.slane %v772, 0
  %v776 = vperm.slane %v774, 0
  %777 = vrot.lane.b32.xlu0 %v775, 32
  %v778 = vpop.permute.xlu0 %777
  %779 = vrot.lane.b32.xlu0 %v776, 32
  %v780 = vpop.permute.xlu0 %779
  %783 = vst.msk [vmem:[%s737 + $0x8] sm:$0x1] %vm557, %v778
  %784 = vst.msk [vmem:[%s737 + $0xb8] sm:$0x1] %vm557, %v780
  %v785 = vld [vmem:[#allocation2] sm:$0xff]
  %v786 = vld [vmem:[#allocation2 + $0x10] sm:$0xff]
  %v787 = vld [vmem:[#allocation2 + $0x20] sm:$0xff]
  %v788 = vld [vmem:[#allocation2 + $0x30] sm:$0xff]
  %v789 = vld [vmem:[#allocation2 + $0x40] sm:$0xff]
  %v790 = vld [vmem:[#allocation2 + $0x50] sm:$0xff]
  %v791 = vld [vmem:[#allocation2 + $0x60] sm:$0xff]
  %v792 = vld [vmem:[#allocation2 + $0x70] sm:$0xff]
  %v793 = vld [vmem:[#allocation2 + $0xb0] sm:$0xff]
  %v794 = vld [vmem:[#allocation2 + $0xc0] sm:$0xff]
  %v795 = vld [vmem:[#allocation2 + $0xd0] sm:$0xff]
  %v796 = vld [vmem:[#allocation2 + $0xe0] sm:$0xff]
  %v797 = vld [vmem:[#allocation2 + $0xf0] sm:$0xff]
  %v798 = vld [vmem:[#allocation2 + $0x100] sm:$0xff]
  %v799 = vld [vmem:[#allocation2 + $0x110] sm:$0xff]
  %v800 = vld [vmem:[#allocation2 + $0x120] sm:$0xff]
  %v801 = vld [vmem:[#allocation2 + $0x1] sm:$0xff]
  %v802 = vld [vmem:[#allocation2 + $0x11] sm:$0xff]
  %v803 = vld [vmem:[#allocation2 + $0x21] sm:$0xff]
  %v804 = vld [vmem:[#allocation2 + $0x31] sm:$0xff]
  %v805 = vld [vmem:[#allocation2 + $0x41] sm:$0xff]
  %v806 = vld [vmem:[#allocation2 + $0x51] sm:$0xff]
  %v807 = vld [vmem:[#allocation2 + $0x61] sm:$0xff]
  %v808 = vld [vmem:[#allocation2 + $0x71] sm:$0xff]
  %v809 = vld [vmem:[#allocation2 + $0xb1] sm:$0xff]
  %v810 = vld [vmem:[#allocation2 + $0xc1] sm:$0xff]
  %v811 = vld [vmem:[#allocation2 + $0xd1] sm:$0xff]
  %v812 = vld [vmem:[#allocation2 + $0xe1] sm:$0xff]
  %v813 = vld [vmem:[#allocation2 + $0xf1] sm:$0xff]
  %v814 = vld [vmem:[#allocation2 + $0x101] sm:$0xff]
  %v815 = vld [vmem:[#allocation2 + $0x111] sm:$0xff]
  %v816 = vld [vmem:[#allocation2 + $0x121] sm:$0xff]
  %v817 = vld [vmem:[#allocation2 + $0x2] sm:$0xff]
  %v818 = vld [vmem:[#allocation2 + $0x12] sm:$0xff]
  %v819 = vld [vmem:[#allocation2 + $0x22] sm:$0xff]
  %v820 = vld [vmem:[#allocation2 + $0x32] sm:$0xff]
  %v821 = vld [vmem:[#allocation2 + $0x42] sm:$0xff]
  %v822 = vld [vmem:[#allocation2 + $0x52] sm:$0xff]
  %v823 = vld [vmem:[#allocation2 + $0x62] sm:$0xff]
  %v824 = vld [vmem:[#allocation2 + $0x72] sm:$0xff]
  %v825 = vld [vmem:[#allocation2 + $0xb2] sm:$0xff]
  %v826 = vld [vmem:[#allocation2 + $0xc2] sm:$0xff]
  %v827 = vld [vmem:[#allocation2 + $0xd2] sm:$0xff]
  %v828 = vld [vmem:[#allocation2 + $0xe2] sm:$0xff]
  %v829 = vld [vmem:[#allocation2 + $0xf2] sm:$0xff]
  %v830 = vld [vmem:[#allocation2 + $0x102] sm:$0xff]
  %v831 = vld [vmem:[#allocation2 + $0x112] sm:$0xff]
  %v832 = vld [vmem:[#allocation2 + $0x122] sm:$0xff]
  %v833 = vld [vmem:[#allocation2 + $0x3] sm:$0xff]
  %v834 = vld [vmem:[#allocation2 + $0x13] sm:$0xff]
  %v835 = vld [vmem:[#allocation2 + $0x23] sm:$0xff]
  %v836 = vld [vmem:[#allocation2 + $0x33] sm:$0xff]
  %v837 = vld [vmem:[#allocation2 + $0x43] sm:$0xff]
  %v838 = vld [vmem:[#allocation2 + $0x53] sm:$0xff]
  %v839 = vld [vmem:[#allocation2 + $0x63] sm:$0xff]
  %v840 = vld [vmem:[#allocation2 + $0x73] sm:$0xff]
  %v841 = vld [vmem:[#allocation2 + $0xb3] sm:$0xff]
  %v842 = vld [vmem:[#allocation2 + $0xc3] sm:$0xff]
  %v843 = vld [vmem:[#allocation2 + $0xd3] sm:$0xff]
  %v844 = vld [vmem:[#allocation2 + $0xe3] sm:$0xff]
  %v845 = vld [vmem:[#allocation2 + $0xf3] sm:$0xff]
  %v846 = vld [vmem:[#allocation2 + $0x103] sm:$0xff]
  %v847 = vld [vmem:[#allocation2 + $0x113] sm:$0xff]
  %v848 = vld [vmem:[#allocation2 + $0x123] sm:$0xff]
  %s849 = scalar_lea.vmem [#allocation2], 16
  %v850 = vld [vmem:[%s849] sm:$0xff]
  %v851 = vld [vmem:[%s849 + $0x10] sm:$0xff]
  %v852 = vld [vmem:[%s849 + $0x20] sm:$0xff]
  %v853 = vld [vmem:[%s849 + $0x30] sm:$0xff]
  %v854 = vld [vmem:[%s849 + $0x40] sm:$0xff]
  %v855 = vld [vmem:[%s849 + $0x50] sm:$0xff]
  %v856 = vld [vmem:[%s849 + $0x60] sm:$0xff]
  %v857 = vld [vmem:[%s849 + $0x70] sm:$0xff]
  %v858 = vld [vmem:[%s849 + $0xb0] sm:$0xff]
  %v859 = vld [vmem:[%s849 + $0xc0] sm:$0xff]
  %v860 = vld [vmem:[%s849 + $0xd0] sm:$0xff]
  %v861 = vld [vmem:[%s849 + $0xe0] sm:$0xff]
  %v862 = vld [vmem:[%s849 + $0xf0] sm:$0xff]
  %v863 = vld [vmem:[%s849 + $0x100] sm:$0xff]
  %v864 = vld [vmem:[%s849 + $0x110] sm:$0xff]
  %v865 = vld [vmem:[%s849 + $0x120] sm:$0xff]
  %v866 = vld [vmem:[%s849 + $0x1] sm:$0xff]
  %v867 = vld [vmem:[%s849 + $0x11] sm:$0xff]
  %v868 = vld [vmem:[%s849 + $0x21] sm:$0xff]
  %v869 = vld [vmem:[%s849 + $0x31] sm:$0xff]
  %v870 = vld [vmem:[%s849 + $0x41] sm:$0xff]
  %v871 = vld [vmem:[%s849 + $0x51] sm:$0xff]
  %v872 = vld [vmem:[%s849 + $0x61] sm:$0xff]
  %v873 = vld [vmem:[%s849 + $0x71] sm:$0xff]
  %v874 = vld [vmem:[%s849 + $0xb1] sm:$0xff]
  %v875 = vld [vmem:[%s849 + $0xc1] sm:$0xff]
  %v876 = vld [vmem:[%s849 + $0xd1] sm:$0xff]
  %v877 = vld [vmem:[%s849 + $0xe1] sm:$0xff]
  %v878 = vld [vmem:[%s849 + $0xf1] sm:$0xff]
  %v879 = vld [vmem:[%s849 + $0x101] sm:$0xff]
  %v880 = vld [vmem:[%s849 + $0x111] sm:$0xff]
  %v881 = vld [vmem:[%s849 + $0x121] sm:$0xff]
  %v882 = vld [vmem:[%s849 + $0x2] sm:$0xff]
  %v883 = vld [vmem:[%s849 + $0x12] sm:$0xff]
  %v884 = vld [vmem:[%s849 + $0x22] sm:$0xff]
  %v885 = vld [vmem:[%s849 + $0x32] sm:$0xff]
  %v886 = vld [vmem:[%s849 + $0x42] sm:$0xff]
  %v887 = vld [vmem:[%s849 + $0x52] sm:$0xff]
  %v888 = vld [vmem:[%s849 + $0x62] sm:$0xff]
  %v889 = vld [vmem:[%s849 + $0x72] sm:$0xff]
  %v890 = vld [vmem:[%s849 + $0xb2] sm:$0xff]
  %v891 = vld [vmem:[%s849 + $0xc2] sm:$0xff]
  %v892 = vld [vmem:[%s849 + $0xd2] sm:$0xff]
  %v893 = vld [vmem:[%s849 + $0xe2] sm:$0xff]
  %v894 = vld [vmem:[%s849 + $0xf2] sm:$0xff]
  %v895 = vld [vmem:[%s849 + $0x102] sm:$0xff]
  %v896 = vld [vmem:[%s849 + $0x112] sm:$0xff]
  %v897 = vld [vmem:[%s849 + $0x122] sm:$0xff]
  %v898 = vld [vmem:[%s849 + $0x3] sm:$0xff]
  %v899 = vld [vmem:[%s849 + $0x13] sm:$0xff]
  %v900 = vld [vmem:[%s849 + $0x23] sm:$0xff]
  %v901 = vld [vmem:[%s849 + $0x33] sm:$0xff]
  %v902 = vld [vmem:[%s849 + $0x43] sm:$0xff]
  %v903 = vld [vmem:[%s849 + $0x53] sm:$0xff]
  %v904 = vld [vmem:[%s849 + $0x63] sm:$0xff]
  %v905 = vld [vmem:[%s849 + $0x73] sm:$0xff]
  %v906 = vld [vmem:[%s849 + $0xb3] sm:$0xff]
  %v907 = vld [vmem:[%s849 + $0xc3] sm:$0xff]
  %v908 = vld [vmem:[%s849 + $0xd3] sm:$0xff]
  %v909 = vld [vmem:[%s849 + $0xe3] sm:$0xff]
  %v910 = vld [vmem:[%s849 + $0xf3] sm:$0xff]
  %v911 = vld [vmem:[%s849 + $0x103] sm:$0xff]
  %v912 = vld [vmem:[%s849 + $0x113] sm:$0xff]
  %v913 = vld [vmem:[%s849 + $0x123] sm:$0xff]
  %v914 = vld [vmem:[%s556] sm:$0xff]
  %v915 = vld [vmem:[%s556 + $0x10] sm:$0xff]
  %v916 = vld [vmem:[%s556 + $0x20] sm:$0xff]
  %v917 = vld [vmem:[%s556 + $0x30] sm:$0xff]
  %v918 = vld [vmem:[%s556 + $0x40] sm:$0xff]
  %v919 = vld [vmem:[%s556 + $0x50] sm:$0xff]
  %v920 = vld [vmem:[%s556 + $0x60] sm:$0xff]
  %v921 = vld [vmem:[%s556 + $0x70] sm:$0xff]
  %v922 = vld [vmem:[%s556 + $0xb0] sm:$0xff]
  %v923 = vld [vmem:[%s556 + $0xc0] sm:$0xff]
  %v924 = vld [vmem:[%s556 + $0xd0] sm:$0xff]
  %v925 = vld [vmem:[%s556 + $0xe0] sm:$0xff]
  %v926 = vld [vmem:[%s556 + $0xf0] sm:$0xff]
  %v927 = vld [vmem:[%s556 + $0x100] sm:$0xff]
  %v928 = vld [vmem:[%s556 + $0x110] sm:$0xff]
  %v929 = vld [vmem:[%s556 + $0x120] sm:$0xff]
  %v930 = vld [vmem:[%s556 + $0x1] sm:$0xff]
  %v931 = vld [vmem:[%s556 + $0x11] sm:$0xff]
  %v932 = vld [vmem:[%s556 + $0x21] sm:$0xff]
  %v933 = vld [vmem:[%s556 + $0x31] sm:$0xff]
  %v934 = vld [vmem:[%s556 + $0x41] sm:$0xff]
  %v935 = vld [vmem:[%s556 + $0x51] sm:$0xff]
  %v936 = vld [vmem:[%s556 + $0x61] sm:$0xff]
  %v937 = vld [vmem:[%s556 + $0x71] sm:$0xff]
  %v938 = vld [vmem:[%s556 + $0xb1] sm:$0xff]
  %v939 = vld [vmem:[%s556 + $0xc1] sm:$0xff]
  %v940 = vld [vmem:[%s556 + $0xd1] sm:$0xff]
  %v941 = vld [vmem:[%s556 + $0xe1] sm:$0xff]
  %v942 = vld [vmem:[%s556 + $0xf1] sm:$0xff]
  %v943 = vld [vmem:[%s556 + $0x101] sm:$0xff]
  %v944 = vld [vmem:[%s556 + $0x111] sm:$0xff]
  %v945 = vld [vmem:[%s556 + $0x121] sm:$0xff]
  %v946 = vld [vmem:[%s556 + $0x2] sm:$0xff]
  %v947 = vld [vmem:[%s556 + $0x12] sm:$0xff]
  %v948 = vld [vmem:[%s556 + $0x22] sm:$0xff]
  %v949 = vld [vmem:[%s556 + $0x32] sm:$0xff]
  %v950 = vld [vmem:[%s556 + $0x42] sm:$0xff]
  %v951 = vld [vmem:[%s556 + $0x52] sm:$0xff]
  %v952 = vld [vmem:[%s556 + $0x62] sm:$0xff]
  %v953 = vld [vmem:[%s556 + $0x72] sm:$0xff]
  %v954 = vld [vmem:[%s556 + $0xb2] sm:$0xff]
  %v955 = vld [vmem:[%s556 + $0xc2] sm:$0xff]
  %v956 = vld [vmem:[%s556 + $0xd2] sm:$0xff]
  %v957 = vld [vmem:[%s556 + $0xe2] sm:$0xff]
  %v958 = vld [vmem:[%s556 + $0xf2] sm:$0xff]
  %v959 = vld [vmem:[%s556 + $0x102] sm:$0xff]
  %v960 = vld [vmem:[%s556 + $0x112] sm:$0xff]
  %v961 = vld [vmem:[%s556 + $0x122] sm:$0xff]
  %v962 = vld [vmem:[%s556 + $0x3] sm:$0xff]
  %v963 = vld [vmem:[%s556 + $0x13] sm:$0xff]
  %v964 = vld [vmem:[%s556 + $0x23] sm:$0xff]
  %v965 = vld [vmem:[%s556 + $0x33] sm:$0xff]
  %v966 = vld [vmem:[%s556 + $0x43] sm:$0xff]
  %v967 = vld [vmem:[%s556 + $0x53] sm:$0xff]
  %v968 = vld [vmem:[%s556 + $0x63] sm:$0xff]
  %v969 = vld [vmem:[%s556 + $0x73] sm:$0xff]
  %v970 = vld [vmem:[%s556 + $0xb3] sm:$0xff]
  %v971 = vld [vmem:[%s556 + $0xc3] sm:$0xff]
  %v972 = vld [vmem:[%s556 + $0xd3] sm:$0xff]
  %v973 = vld [vmem:[%s556 + $0xe3] sm:$0xff]
  %v974 = vld [vmem:[%s556 + $0xf3] sm:$0xff]
  %v975 = vld [vmem:[%s556 + $0x103] sm:$0xff]
  %v976 = vld [vmem:[%s556 + $0x113] sm:$0xff]
  %v977 = vld [vmem:[%s556 + $0x123] sm:$0xff]
  %s978 = scalar_lea.vmem [#allocation2], 48
  %v979 = vld [vmem:[%s978] sm:$0xff]
  %v980 = vld [vmem:[%s978 + $0x10] sm:$0xff]
  %v981 = vld [vmem:[%s978 + $0x20] sm:$0xff]
  %v982 = vld [vmem:[%s978 + $0x30] sm:$0xff]
  %v983 = vld [vmem:[%s978 + $0x40] sm:$0xff]
  %v984 = vld [vmem:[%s978 + $0x50] sm:$0xff]
  %v985 = vld [vmem:[%s978 + $0x60] sm:$0xff]
  %v986 = vld [vmem:[%s978 + $0x70] sm:$0xff]
  %v987 = vld [vmem:[%s978 + $0xb0] sm:$0xff]
  %v988 = vld [vmem:[%s978 + $0xc0] sm:$0xff]
  %v989 = vld [vmem:[%s978 + $0xd0] sm:$0xff]
  %v990 = vld [vmem:[%s978 + $0xe0] sm:$0xff]
  %v991 = vld [vmem:[%s978 + $0xf0] sm:$0xff]
  %v992 = vld [vmem:[%s978 + $0x100] sm:$0xff]
  %v993 = vld [vmem:[%s978 + $0x110] sm:$0xff]
  %v994 = vld [vmem:[%s978 + $0x120] sm:$0xff]
  %v995 = vld [vmem:[%s978 + $0x1] sm:$0xff]
  %v996 = vld [vmem:[%s978 + $0x11] sm:$0xff]
  %v997 = vld [vmem:[%s978 + $0x21] sm:$0xff]
  %v998 = vld [vmem:[%s978 + $0x31] sm:$0xff]
  %v999 = vld [vmem:[%s978 + $0x41] sm:$0xff]
  %v1000 = vld [vmem:[%s978 + $0x51] sm:$0xff]
  %v1001 = vld [vmem:[%s978 + $0x61] sm:$0xff]
  %v1002 = vld [vmem:[%s978 + $0x71] sm:$0xff]
  %v1003 = vld [vmem:[%s978 + $0xb1] sm:$0xff]
  %v1004 = vld [vmem:[%s978 + $0xc1] sm:$0xff]
  %v1005 = vld [vmem:[%s978 + $0xd1] sm:$0xff]
  %v1006 = vld [vmem:[%s978 + $0xe1] sm:$0xff]
  %v1007 = vld [vmem:[%s978 + $0xf1] sm:$0xff]
  %v1008 = vld [vmem:[%s978 + $0x101] sm:$0xff]
  %v1009 = vld [vmem:[%s978 + $0x111] sm:$0xff]
  %v1010 = vld [vmem:[%s978 + $0x121] sm:$0xff]
  %v1011 = vld [vmem:[%s978 + $0x2] sm:$0xff]
  %v1012 = vld [vmem:[%s978 + $0x12] sm:$0xff]
  %v1013 = vld [vmem:[%s978 + $0x22] sm:$0xff]
  %v1014 = vld [vmem:[%s978 + $0x32] sm:$0xff]
  %v1015 = vld [vmem:[%s978 + $0x42] sm:$0xff]
  %v1016 = vld [vmem:[%s978 + $0x52] sm:$0xff]
  %v1017 = vld [vmem:[%s978 + $0x62] sm:$0xff]
  %v1018 = vld [vmem:[%s978 + $0x72] sm:$0xff]
  %v1019 = vld [vmem:[%s978 + $0xb2] sm:$0xff]
  %v1020 = vld [vmem:[%s978 + $0xc2] sm:$0xff]
  %v1021 = vld [vmem:[%s978 + $0xd2] sm:$0xff]
  %v1022 = vld [vmem:[%s978 + $0xe2] sm:$0xff]
  %v1023 = vld [vmem:[%s978 + $0xf2] sm:$0xff]
  %v1024 = vld [vmem:[%s978 + $0x102] sm:$0xff]
  %v1025 = vld [vmem:[%s978 + $0x112] sm:$0xff]
  %v1026 = vld [vmem:[%s978 + $0x122] sm:$0xff]
  %v1027 = vld [vmem:[%s978 + $0x3] sm:$0xff]
  %v1028 = vld [vmem:[%s978 + $0x13] sm:$0xff]
  %v1029 = vld [vmem:[%s978 + $0x23] sm:$0xff]
  %v1030 = vld [vmem:[%s978 + $0x33] sm:$0xff]
  %v1031 = vld [vmem:[%s978 + $0x43] sm:$0xff]
  %v1032 = vld [vmem:[%s978 + $0x53] sm:$0xff]
  %v1033 = vld [vmem:[%s978 + $0x63] sm:$0xff]
  %v1034 = vld [vmem:[%s978 + $0x73] sm:$0xff]
  %v1035 = vld [vmem:[%s978 + $0xb3] sm:$0xff]
  %v1036 = vld [vmem:[%s978 + $0xc3] sm:$0xff]
  %v1037 = vld [vmem:[%s978 + $0xd3] sm:$0xff]
  %v1038 = vld [vmem:[%s978 + $0xe3] sm:$0xff]
  %v1039 = vld [vmem:[%s978 + $0xf3] sm:$0xff]
  %v1040 = vld [vmem:[%s978 + $0x103] sm:$0xff]
  %v1041 = vld [vmem:[%s978 + $0x113] sm:$0xff]
  %v1042 = vld [vmem:[%s978 + $0x123] sm:$0xff]
  %1059 = vrot.lane.b32.xlu0 %v801, 32
  %v1060 = vpop.permute.xlu0 %1059
  %1061 = vrot.lane.b32.xlu0 %v802, 32
  %v1062 = vpop.permute.xlu0 %1061
  %1063 = vrot.lane.b32.xlu0 %v803, 32
  %v1064 = vpop.permute.xlu0 %1063
  %1065 = vrot.lane.b32.xlu0 %v804, 32
  %v1066 = vpop.permute.xlu0 %1065
  %1067 = vrot.lane.b32.xlu0 %v805, 32
  %v1068 = vpop.permute.xlu0 %1067
  %1069 = vrot.lane.b32.xlu0 %v806, 32
  %v1070 = vpop.permute.xlu0 %1069
  %1071 = vrot.lane.b32.xlu0 %v807, 32
  %v1072 = vpop.permute.xlu0 %1071
  %1073 = vrot.lane.b32.xlu0 %v808, 32
  %v1074 = vpop.permute.xlu0 %1073
  %1075 = vrot.lane.b32.xlu0 %v809, 32
  %v1076 = vpop.permute.xlu0 %1075
  %1077 = vrot.lane.b32.xlu0 %v810, 32
  %v1078 = vpop.permute.xlu0 %1077
  %1079 = vrot.lane.b32.xlu0 %v811, 32
  %v1080 = vpop.permute.xlu0 %1079
  %1081 = vrot.lane.b32.xlu0 %v812, 32
  %v1082 = vpop.permute.xlu0 %1081
  %1083 = vrot.lane.b32.xlu0 %v813, 32
  %v1084 = vpop.permute.xlu0 %1083
  %1085 = vrot.lane.b32.xlu0 %v814, 32
  %v1086 = vpop.permute.xlu0 %1085
  %1087 = vrot.lane.b32.xlu0 %v815, 32
  %v1088 = vpop.permute.xlu0 %1087
  %1089 = vrot.lane.b32.xlu0 %v816, 32
  %v1090 = vpop.permute.xlu0 %1089
  %1123 = vrot.lane.b32.xlu0 %v817, 64
  %v1124 = vpop.permute.xlu0 %1123
  %1125 = vrot.lane.b32.xlu0 %v818, 64
  %v1126 = vpop.permute.xlu0 %1125
  %1127 = vrot.lane.b32.xlu0 %v819, 64
  %v1128 = vpop.permute.xlu0 %1127
  %1129 = vrot.lane.b32.xlu0 %v820, 64
  %v1130 = vpop.permute.xlu0 %1129
  %1131 = vrot.lane.b32.xlu0 %v821, 64
  %v1132 = vpop.permute.xlu0 %1131
  %1133 = vrot.lane.b32.xlu0 %v822, 64
  %v1134 = vpop.permute.xlu0 %1133
  %1135 = vrot.lane.b32.xlu0 %v823, 64
  %v1136 = vpop.permute.xlu0 %1135
  %1137 = vrot.lane.b32.xlu0 %v824, 64
  %v1138 = vpop.permute.xlu0 %1137
  %1139 = vrot.lane.b32.xlu0 %v825, 64
  %v1140 = vpop.permute.xlu0 %1139
  %1141 = vrot.lane.b32.xlu0 %v826, 64
  %v1142 = vpop.permute.xlu0 %1141
  %1143 = vrot.lane.b32.xlu0 %v827, 64
  %v1144 = vpop.permute.xlu0 %1143
  %1145 = vrot.lane.b32.xlu0 %v828, 64
  %v1146 = vpop.permute.xlu0 %1145
  %1147 = vrot.lane.b32.xlu0 %v829, 64
  %v1148 = vpop.permute.xlu0 %1147
  %1149 = vrot.lane.b32.xlu0 %v830, 64
  %v1150 = vpop.permute.xlu0 %1149
  %1151 = vrot.lane.b32.xlu0 %v831, 64
  %v1152 = vpop.permute.xlu0 %1151
  %1153 = vrot.lane.b32.xlu0 %v832, 64
  %v1154 = vpop.permute.xlu0 %1153
  %1187 = vrot.lane.b32.xlu0 %v833, 96
  %v1188 = vpop.permute.xlu0 %1187
  %1189 = vrot.lane.b32.xlu0 %v834, 96
  %v1190 = vpop.permute.xlu0 %1189
  %1191 = vrot.lane.b32.xlu0 %v835, 96
  %v1192 = vpop.permute.xlu0 %1191
  %1193 = vrot.lane.b32.xlu0 %v836, 96
  %v1194 = vpop.permute.xlu0 %1193
  %1195 = vrot.lane.b32.xlu0 %v837, 96
  %v1196 = vpop.permute.xlu0 %1195
  %1197 = vrot.lane.b32.xlu0 %v838, 96
  %v1198 = vpop.permute.xlu0 %1197
  %1199 = vrot.lane.b32.xlu0 %v839, 96
  %v1200 = vpop.permute.xlu0 %1199
  %1201 = vrot.lane.b32.xlu0 %v840, 96
  %v1202 = vpop.permute.xlu0 %1201
  %1203 = vrot.lane.b32.xlu0 %v841, 96
  %v1204 = vpop.permute.xlu0 %1203
  %1205 = vrot.lane.b32.xlu0 %v842, 96
  %v1206 = vpop.permute.xlu0 %1205
  %1207 = vrot.lane.b32.xlu0 %v843, 96
  %v1208 = vpop.permute.xlu0 %1207
  %1209 = vrot.lane.b32.xlu0 %v844, 96
  %v1210 = vpop.permute.xlu0 %1209
  %1211 = vrot.lane.b32.xlu0 %v845, 96
  %v1212 = vpop.permute.xlu0 %1211
  %1213 = vrot.lane.b32.xlu0 %v846, 96
  %v1214 = vpop.permute.xlu0 %1213
  %1215 = vrot.lane.b32.xlu0 %v847, 96
  %v1216 = vpop.permute.xlu0 %1215
  %1217 = vrot.lane.b32.xlu0 %v848, 96
  %v1218 = vpop.permute.xlu0 %1217
  %1251 = vrot.lane.b32.xlu0 %v866, 32
  %v1252 = vpop.permute.xlu0 %1251
  %1253 = vrot.lane.b32.xlu0 %v867, 32
  %v1254 = vpop.permute.xlu0 %1253
  %1255 = vrot.lane.b32.xlu0 %v868, 32
  %v1256 = vpop.permute.xlu0 %1255
  %1257 = vrot.lane.b32.xlu0 %v869, 32
  %v1258 = vpop.permute.xlu0 %1257
  %1259 = vrot.lane.b32.xlu0 %v870, 32
  %v1260 = vpop.permute.xlu0 %1259
  %1261 = vrot.lane.b32.xlu0 %v871, 32
  %v1262 = vpop.permute.xlu0 %1261
  %1263 = vrot.lane.b32.xlu0 %v872, 32
  %v1264 = vpop.permute.xlu0 %1263
  %1265 = vrot.lane.b32.xlu0 %v873, 32
  %v1266 = vpop.permute.xlu0 %1265
  %1267 = vrot.lane.b32.xlu0 %v874, 32
  %v1268 = vpop.permute.xlu0 %1267
  %1269 = vrot.lane.b32.xlu0 %v875, 32
  %v1270 = vpop.permute.xlu0 %1269
  %1271 = vrot.lane.b32.xlu0 %v876, 32
  %v1272 = vpop.permute.xlu0 %1271
  %1273 = vrot.lane.b32.xlu0 %v877, 32
  %v1274 = vpop.permute.xlu0 %1273
  %1275 = vrot.lane.b32.xlu0 %v878, 32
  %v1276 = vpop.permute.xlu0 %1275
  %1277 = vrot.lane.b32.xlu0 %v879, 32
  %v1278 = vpop.permute.xlu0 %1277
  %1279 = vrot.lane.b32.xlu0 %v880, 32
  %v1280 = vpop.permute.xlu0 %1279
  %1281 = vrot.lane.b32.xlu0 %v881, 32
  %v1282 = vpop.permute.xlu0 %1281
  %1315 = vrot.lane.b32.xlu0 %v882, 64
  %v1316 = vpop.permute.xlu0 %1315
  %1317 = vrot.lane.b32.xlu0 %v883, 64
  %v1318 = vpop.permute.xlu0 %1317
  %1319 = vrot.lane.b32.xlu0 %v884, 64
  %v1320 = vpop.permute.xlu0 %1319
  %1321 = vrot.lane.b32.xlu0 %v885, 64
  %v1322 = vpop.permute.xlu0 %1321
  %1323 = vrot.lane.b32.xlu0 %v886, 64
  %v1324 = vpop.permute.xlu0 %1323
  %1325 = vrot.lane.b32.xlu0 %v887, 64
  %v1326 = vpop.permute.xlu0 %1325
  %1327 = vrot.lane.b32.xlu0 %v888, 64
  %v1328 = vpop.permute.xlu0 %1327
  %1329 = vrot.lane.b32.xlu0 %v889, 64
  %v1330 = vpop.permute.xlu0 %1329
  %1331 = vrot.lane.b32.xlu0 %v890, 64
  %v1332 = vpop.permute.xlu0 %1331
  %1333 = vrot.lane.b32.xlu0 %v891, 64
  %v1334 = vpop.permute.xlu0 %1333
  %1335 = vrot.lane.b32.xlu0 %v892, 64
  %v1336 = vpop.permute.xlu0 %1335
  %1337 = vrot.lane.b32.xlu0 %v893, 64
  %v1338 = vpop.permute.xlu0 %1337
  %1339 = vrot.lane.b32.xlu0 %v894, 64
  %v1340 = vpop.permute.xlu0 %1339
  %1341 = vrot.lane.b32.xlu0 %v895, 64
  %v1342 = vpop.permute.xlu0 %1341
  %1343 = vrot.lane.b32.xlu0 %v896, 64
  %v1344 = vpop.permute.xlu0 %1343
  %1345 = vrot.lane.b32.xlu0 %v897, 64
  %v1346 = vpop.permute.xlu0 %1345
  %1379 = vrot.lane.b32.xlu0 %v898, 96
  %v1380 = vpop.permute.xlu0 %1379
  %1381 = vrot.lane.b32.xlu0 %v899, 96
  %v1382 = vpop.permute.xlu0 %1381
  %1383 = vrot.lane.b32.xlu0 %v900, 96
  %v1384 = vpop.permute.xlu0 %1383
  %1385 = vrot.lane.b32.xlu0 %v901, 96
  %v1386 = vpop.permute.xlu0 %1385
  %1387 = vrot.lane.b32.xlu0 %v902, 96
  %v1388 = vpop.permute.xlu0 %1387
  %1389 = vrot.lane.b32.xlu0 %v903, 96
  %v1390 = vpop.permute.xlu0 %1389
  %1391 = vrot.lane.b32.xlu0 %v904, 96
  %v1392 = vpop.permute.xlu0 %1391
  %1393 = vrot.lane.b32.xlu0 %v905, 96
  %v1394 = vpop.permute.xlu0 %1393
  %1395 = vrot.lane.b32.xlu0 %v906, 96
  %v1396 = vpop.permute.xlu0 %1395
  %1397 = vrot.lane.b32.xlu0 %v907, 96
  %v1398 = vpop.permute.xlu0 %1397
  %1399 = vrot.lane.b32.xlu0 %v908, 96
  %v1400 = vpop.permute.xlu0 %1399
  %1401 = vrot.lane.b32.xlu0 %v909, 96
  %v1402 = vpop.permute.xlu0 %1401
  %1403 = vrot.lane.b32.xlu0 %v910, 96
  %v1404 = vpop.permute.xlu0 %1403
  %1405 = vrot.lane.b32.xlu0 %v911, 96
  %v1406 = vpop.permute.xlu0 %1405
  %1407 = vrot.lane.b32.xlu0 %v912, 96
  %v1408 = vpop.permute.xlu0 %1407
  %1409 = vrot.lane.b32.xlu0 %v913, 96
  %v1410 = vpop.permute.xlu0 %1409
  %1443 = vrot.lane.b32.xlu0 %v930, 32
  %v1444 = vpop.permute.xlu0 %1443
  %1445 = vrot.lane.b32.xlu0 %v931, 32
  %v1446 = vpop.permute.xlu0 %1445
  %1447 = vrot.lane.b32.xlu0 %v932, 32
  %v1448 = vpop.permute.xlu0 %1447
  %1449 = vrot.lane.b32.xlu0 %v933, 32
  %v1450 = vpop.permute.xlu0 %1449
  %1451 = vrot.lane.b32.xlu0 %v934, 32
  %v1452 = vpop.permute.xlu0 %1451
  %1453 = vrot.lane.b32.xlu0 %v935, 32
  %v1454 = vpop.permute.xlu0 %1453
  %1455 = vrot.lane.b32.xlu0 %v936, 32
  %v1456 = vpop.permute.xlu0 %1455
  %1457 = vrot.lane.b32.xlu0 %v937, 32
  %v1458 = vpop.permute.xlu0 %1457
  %1459 = vrot.lane.b32.xlu0 %v938, 32
  %v1460 = vpop.permute.xlu0 %1459
  %1461 = vrot.lane.b32.xlu0 %v939, 32
  %v1462 = vpop.permute.xlu0 %1461
  %1463 = vrot.lane.b32.xlu0 %v940, 32
  %v1464 = vpop.permute.xlu0 %1463
  %1465 = vrot.lane.b32.xlu0 %v941, 32
  %v1466 = vpop.permute.xlu0 %1465
  %1467 = vrot.lane.b32.xlu0 %v942, 32
  %v1468 = vpop.permute.xlu0 %1467
  %1469 = vrot.lane.b32.xlu0 %v943, 32
  %v1470 = vpop.permute.xlu0 %1469
  %1471 = vrot.lane.b32.xlu0 %v944, 32
  %v1472 = vpop.permute.xlu0 %1471
  %1473 = vrot.lane.b32.xlu0 %v945, 32
  %v1474 = vpop.permute.xlu0 %1473
  %1507 = vrot.lane.b32.xlu0 %v946, 64
  %v1508 = vpop.permute.xlu0 %1507
  %1509 = vrot.lane.b32.xlu0 %v947, 64
  %v1510 = vpop.permute.xlu0 %1509
  %1511 = vrot.lane.b32.xlu0 %v948, 64
  %v1512 = vpop.permute.xlu0 %1511
  %1513 = vrot.lane.b32.xlu0 %v949, 64
  %v1514 = vpop.permute.xlu0 %1513
  %1515 = vrot.lane.b32.xlu0 %v950, 64
  %v1516 = vpop.permute.xlu0 %1515
  %1517 = vrot.lane.b32.xlu0 %v951, 64
  %v1518 = vpop.permute.xlu0 %1517
  %1519 = vrot.lane.b32.xlu0 %v952, 64
  %v1520 = vpop.permute.xlu0 %1519
  %1521 = vrot.lane.b32.xlu0 %v953, 64
  %v1522 = vpop.permute.xlu0 %1521
  %1523 = vrot.lane.b32.xlu0 %v954, 64
  %v1524 = vpop.permute.xlu0 %1523
  %1525 = vrot.lane.b32.xlu0 %v955, 64
  %v1526 = vpop.permute.xlu0 %1525
  %1527 = vrot.lane.b32.xlu0 %v956, 64
  %v1528 = vpop.permute.xlu0 %1527
  %1529 = vrot.lane.b32.xlu0 %v957, 64
  %v1530 = vpop.permute.xlu0 %1529
  %1531 = vrot.lane.b32.xlu0 %v958, 64
  %v1532 = vpop.permute.xlu0 %1531
  %1533 = vrot.lane.b32.xlu0 %v959, 64
  %v1534 = vpop.permute.xlu0 %1533
  %1535 = vrot.lane.b32.xlu0 %v960, 64
  %v1536 = vpop.permute.xlu0 %1535
  %1537 = vrot.lane.b32.xlu0 %v961, 64
  %v1538 = vpop.permute.xlu0 %1537
  %1571 = vrot.lane.b32.xlu0 %v962, 96
  %v1572 = vpop.permute.xlu0 %1571
  %1573 = vrot.lane.b32.xlu0 %v963, 96
  %v1574 = vpop.permute.xlu0 %1573
  %1575 = vrot.lane.b32.xlu0 %v964, 96
  %v1576 = vpop.permute.xlu0 %1575
  %1577 = vrot.lane.b32.xlu0 %v965, 96
  %v1578 = vpop.permute.xlu0 %1577
  %1579 = vrot.lane.b32.xlu0 %v966, 96
  %v1580 = vpop.permute.xlu0 %1579
  %1581 = vrot.lane.b32.xlu0 %v967, 96
  %v1582 = vpop.permute.xlu0 %1581
  %1583 = vrot.lane.b32.xlu0 %v968, 96
  %v1584 = vpop.permute.xlu0 %1583
  %1585 = vrot.lane.b32.xlu0 %v969, 96
  %v1586 = vpop.permute.xlu0 %1585
  %1587 = vrot.lane.b32.xlu0 %v970, 96
  %v1588 = vpop.permute.xlu0 %1587
  %1589 = vrot.lane.b32.xlu0 %v971, 96
  %v1590 = vpop.permute.xlu0 %1589
  %1591 = vrot.lane.b32.xlu0 %v972, 96
  %v1592 = vpop.permute.xlu0 %1591
  %1593 = vrot.lane.b32.xlu0 %v973, 96
  %v1594 = vpop.permute.xlu0 %1593
  %1595 = vrot.lane.b32.xlu0 %v974, 96
  %v1596 = vpop.permute.xlu0 %1595
  %1597 = vrot.lane.b32.xlu0 %v975, 96
  %v1598 = vpop.permute.xlu0 %1597
  %1599 = vrot.lane.b32.xlu0 %v976, 96
  %v1600 = vpop.permute.xlu0 %1599
  %1601 = vrot.lane.b32.xlu0 %v977, 96
  %v1602 = vpop.permute.xlu0 %1601
  %1635 = vrot.lane.b32.xlu0 %v995, 32
  %v1636 = vpop.permute.xlu0 %1635
  %1637 = vrot.lane.b32.xlu0 %v996, 32
  %v1638 = vpop.permute.xlu0 %1637
  %1639 = vrot.lane.b32.xlu0 %v997, 32
  %v1640 = vpop.permute.xlu0 %1639
  %1641 = vrot.lane.b32.xlu0 %v998, 32
  %v1642 = vpop.permute.xlu0 %1641
  %1643 = vrot.lane.b32.xlu0 %v999, 32
  %v1644 = vpop.permute.xlu0 %1643
  %1645 = vrot.lane.b32.xlu0 %v1000, 32
  %v1646 = vpop.permute.xlu0 %1645
  %1647 = vrot.lane.b32.xlu0 %v1001, 32
  %v1648 = vpop.permute.xlu0 %1647
  %1649 = vrot.lane.b32.xlu0 %v1002, 32
  %v1650 = vpop.permute.xlu0 %1649
  %1651 = vrot.lane.b32.xlu0 %v1003, 32
  %v1652 = vpop.permute.xlu0 %1651
  %1653 = vrot.lane.b32.xlu0 %v1004, 32
  %v1654 = vpop.permute.xlu0 %1653
  %1655 = vrot.lane.b32.xlu0 %v1005, 32
  %v1656 = vpop.permute.xlu0 %1655
  %1657 = vrot.lane.b32.xlu0 %v1006, 32
  %v1658 = vpop.permute.xlu0 %1657
  %1659 = vrot.lane.b32.xlu0 %v1007, 32
  %v1660 = vpop.permute.xlu0 %1659
  %1661 = vrot.lane.b32.xlu0 %v1008, 32
  %v1662 = vpop.permute.xlu0 %1661
  %1663 = vrot.lane.b32.xlu0 %v1009, 32
  %v1664 = vpop.permute.xlu0 %1663
  %1665 = vrot.lane.b32.xlu0 %v1010, 32
  %v1666 = vpop.permute.xlu0 %1665
  %1699 = vrot.lane.b32.xlu0 %v1011, 64
  %v1700 = vpop.permute.xlu0 %1699
  %1701 = vrot.lane.b32.xlu0 %v1012, 64
  %v1702 = vpop.permute.xlu0 %1701
  %1703 = vrot.lane.b32.xlu0 %v1013, 64
  %v1704 = vpop.permute.xlu0 %1703
  %1705 = vrot.lane.b32.xlu0 %v1014, 64
  %v1706 = vpop.permute.xlu0 %1705
  %1707 = vrot.lane.b32.xlu0 %v1015, 64
  %v1708 = vpop.permute.xlu0 %1707
  %1709 = vrot.lane.b32.xlu0 %v1016, 64
  %v1710 = vpop.permute.xlu0 %1709
  %1711 = vrot.lane.b32.xlu0 %v1017, 64
  %v1712 = vpop.permute.xlu0 %1711
  %1713 = vrot.lane.b32.xlu0 %v1018, 64
  %v1714 = vpop.permute.xlu0 %1713
  %1715 = vrot.lane.b32.xlu0 %v1019, 64
  %v1716 = vpop.permute.xlu0 %1715
  %1717 = vrot.lane.b32.xlu0 %v1020, 64
  %v1718 = vpop.permute.xlu0 %1717
  %1719 = vrot.lane.b32.xlu0 %v1021, 64
  %v1720 = vpop.permute.xlu0 %1719
  %1721 = vrot.lane.b32.xlu0 %v1022, 64
  %v1722 = vpop.permute.xlu0 %1721
  %1723 = vrot.lane.b32.xlu0 %v1023, 64
  %v1724 = vpop.permute.xlu0 %1723
  %1725 = vrot.lane.b32.xlu0 %v1024, 64
  %v1726 = vpop.permute.xlu0 %1725
  %1727 = vrot.lane.b32.xlu0 %v1025, 64
  %v1728 = vpop.permute.xlu0 %1727
  %1729 = vrot.lane.b32.xlu0 %v1026, 64
  %v1730 = vpop.permute.xlu0 %1729
  %1763 = vrot.lane.b32.xlu0 %v1027, 96
  %v1764 = vpop.permute.xlu0 %1763
  %1765 = vrot.lane.b32.xlu0 %v1028, 96
  %v1766 = vpop.permute.xlu0 %1765
  %1767 = vrot.lane.b32.xlu0 %v1029, 96
  %v1768 = vpop.permute.xlu0 %1767
  %1769 = vrot.lane.b32.xlu0 %v1030, 96
  %v1770 = vpop.permute.xlu0 %1769
  %1771 = vrot.lane.b32.xlu0 %v1031, 96
  %v1772 = vpop.permute.xlu0 %1771
  %1773 = vrot.lane.b32.xlu0 %v1032, 96
  %v1774 = vpop.permute.xlu0 %1773
  %1775 = vrot.lane.b32.xlu0 %v1033, 96
  %v1776 = vpop.permute.xlu0 %1775
  %1777 = vrot.lane.b32.xlu0 %v1034, 96
  %v1778 = vpop.permute.xlu0 %1777
  %1779 = vrot.lane.b32.xlu0 %v1035, 96
  %v1780 = vpop.permute.xlu0 %1779
  %1781 = vrot.lane.b32.xlu0 %v1036, 96
  %v1782 = vpop.permute.xlu0 %1781
  %1783 = vrot.lane.b32.xlu0 %v1037, 96
  %v1784 = vpop.permute.xlu0 %1783
  %1785 = vrot.lane.b32.xlu0 %v1038, 96
  %v1786 = vpop.permute.xlu0 %1785
  %1787 = vrot.lane.b32.xlu0 %v1039, 96
  %v1788 = vpop.permute.xlu0 %1787
  %1789 = vrot.lane.b32.xlu0 %v1040, 96
  %v1790 = vpop.permute.xlu0 %1789
  %1791 = vrot.lane.b32.xlu0 %v1041, 96
  %v1792 = vpop.permute.xlu0 %1791
  %1793 = vrot.lane.b32.xlu0 %v1042, 96
  %v1794 = vpop.permute.xlu0 %1793
  %v1811 = vsel %vm498, %v785, %v1060
  %v1812 = vsel %vm498, %v786, %v1062
  %v1813 = vsel %vm498, %v787, %v1064
  %v1814 = vsel %vm498, %v788, %v1066
  %v1815 = vsel %vm498, %v789, %v1068
  %v1816 = vsel %vm498, %v790, %v1070
  %v1817 = vsel %vm498, %v791, %v1072
  %v1818 = vsel %vm498, %v792, %v1074
  %v1819 = vsel %vm498, %v793, %v1076
  %v1820 = vsel %vm498, %v794, %v1078
  %v1821 = vsel %vm498, %v795, %v1080
  %v1822 = vsel %vm498, %v796, %v1082
  %v1823 = vsel %vm498, %v797, %v1084
  %v1824 = vsel %vm498, %v798, %v1086
  %v1825 = vsel %vm498, %v799, %v1088
  %v1826 = vsel %vm498, %v800, %v1090
  %vm1827 = vcmask 523264
  %v1828 = vsel %vm1827, %v1811, %v1124
  %v1829 = vsel %vm1827, %v1812, %v1126
  %v1830 = vsel %vm1827, %v1813, %v1128
  %v1831 = vsel %vm1827, %v1814, %v1130
  %v1832 = vsel %vm1827, %v1815, %v1132
  %v1833 = vsel %vm1827, %v1816, %v1134
  %v1834 = vsel %vm1827, %v1817, %v1136
  %v1835 = vsel %vm1827, %v1818, %v1138
  %v1836 = vsel %vm1827, %v1819, %v1140
  %v1837 = vsel %vm1827, %v1820, %v1142
  %v1838 = vsel %vm1827, %v1821, %v1144
  %v1839 = vsel %vm1827, %v1822, %v1146
  %v1840 = vsel %vm1827, %v1823, %v1148
  %v1841 = vsel %vm1827, %v1824, %v1150
  %v1842 = vsel %vm1827, %v1825, %v1152
  %v1843 = vsel %vm1827, %v1826, %v1154
  %vm1844 = vcmask 785408
  %v1845 = vsel %vm1844, %v1828, %v1188
  %v1846 = vsel %vm1844, %v1829, %v1190
  %v1847 = vsel %vm1844, %v1830, %v1192
  %v1848 = vsel %vm1844, %v1831, %v1194
  %v1849 = vsel %vm1844, %v1832, %v1196
  %v1850 = vsel %vm1844, %v1833, %v1198
  %v1851 = vsel %vm1844, %v1834, %v1200
  %v1852 = vsel %vm1844, %v1835, %v1202
  %v1853 = vsel %vm1844, %v1836, %v1204
  %v1854 = vsel %vm1844, %v1837, %v1206
  %v1855 = vsel %vm1844, %v1838, %v1208
  %v1856 = vsel %vm1844, %v1839, %v1210
  %v1857 = vsel %vm1844, %v1840, %v1212
  %v1858 = vsel %vm1844, %v1841, %v1214
  %v1859 = vsel %vm1844, %v1842, %v1216
  %v1860 = vsel %vm1844, %v1843, %v1218
  %v1861 = vsel %vm498, %v850, %v1252
  %v1862 = vsel %vm498, %v851, %v1254
  %v1863 = vsel %vm498, %v852, %v1256
  %v1864 = vsel %vm498, %v853, %v1258
  %v1865 = vsel %vm498, %v854, %v1260
  %v1866 = vsel %vm498, %v855, %v1262
  %v1867 = vsel %vm498, %v856, %v1264
  %v1868 = vsel %vm498, %v857, %v1266
  %v1869 = vsel %vm498, %v858, %v1268
  %v1870 = vsel %vm498, %v859, %v1270
  %v1871 = vsel %vm498, %v860, %v1272
  %v1872 = vsel %vm498, %v861, %v1274
  %v1873 = vsel %vm498, %v862, %v1276
  %v1874 = vsel %vm498, %v863, %v1278
  %v1875 = vsel %vm498, %v864, %v1280
  %v1876 = vsel %vm498, %v865, %v1282
  %v1877 = vsel %vm1827, %v1861, %v1316
  %v1878 = vsel %vm1827, %v1862, %v1318
  %v1879 = vsel %vm1827, %v1863, %v1320
  %v1880 = vsel %vm1827, %v1864, %v1322
  %v1881 = vsel %vm1827, %v1865, %v1324
  %v1882 = vsel %vm1827, %v1866, %v1326
  %v1883 = vsel %vm1827, %v1867, %v1328
  %v1884 = vsel %vm1827, %v1868, %v1330
  %v1885 = vsel %vm1827, %v1869, %v1332
  %v1886 = vsel %vm1827, %v1870, %v1334
  %v1887 = vsel %vm1827, %v1871, %v1336
  %v1888 = vsel %vm1827, %v1872, %v1338
  %v1889 = vsel %vm1827, %v1873, %v1340
  %v1890 = vsel %vm1827, %v1874, %v1342
  %v1891 = vsel %vm1827, %v1875, %v1344
  %v1892 = vsel %vm1827, %v1876, %v1346
  %v1893 = vsel %vm1844, %v1877, %v1380
  %v1894 = vsel %vm1844, %v1878, %v1382
  %v1895 = vsel %vm1844, %v1879, %v1384
  %v1896 = vsel %vm1844, %v1880, %v1386
  %v1897 = vsel %vm1844, %v1881, %v1388
  %v1898 = vsel %vm1844, %v1882, %v1390
  %v1899 = vsel %vm1844, %v1883, %v1392
  %v1900 = vsel %vm1844, %v1884, %v1394
  %v1901 = vsel %vm1844, %v1885, %v1396
  %v1902 = vsel %vm1844, %v1886, %v1398
  %v1903 = vsel %vm1844, %v1887, %v1400
  %v1904 = vsel %vm1844, %v1888, %v1402
  %v1905 = vsel %vm1844, %v1889, %v1404
  %v1906 = vsel %vm1844, %v1890, %v1406
  %v1907 = vsel %vm1844, %v1891, %v1408
  %v1908 = vsel %vm1844, %v1892, %v1410
  %v1909 = vsel %vm498, %v914, %v1444
  %v1910 = vsel %vm498, %v915, %v1446
  %v1911 = vsel %vm498, %v916, %v1448
  %v1912 = vsel %vm498, %v917, %v1450
  %v1913 = vsel %vm498, %v918, %v1452
  %v1914 = vsel %vm498, %v919, %v1454
  %v1915 = vsel %vm498, %v920, %v1456
  %v1916 = vsel %vm498, %v921, %v1458
  %v1917 = vsel %vm498, %v922, %v1460
  %v1918 = vsel %vm498, %v923, %v1462
  %v1919 = vsel %vm498, %v924, %v1464
  %v1920 = vsel %vm498, %v925, %v1466
  %v1921 = vsel %vm498, %v926, %v1468
  %v1922 = vsel %vm498, %v927, %v1470
  %v1923 = vsel %vm498, %v928, %v1472
  %v1924 = vsel %vm498, %v929, %v1474
  %v1925 = vsel %vm1827, %v1909, %v1508
  %v1926 = vsel %vm1827, %v1910, %v1510
  %v1927 = vsel %vm1827, %v1911, %v1512
  %v1928 = vsel %vm1827, %v1912, %v1514
  %v1929 = vsel %vm1827, %v1913, %v1516
  %v1930 = vsel %vm1827, %v1914, %v1518
  %v1931 = vsel %vm1827, %v1915, %v1520
  %v1932 = vsel %vm1827, %v1916, %v1522
  %v1933 = vsel %vm1827, %v1917, %v1524
  %v1934 = vsel %vm1827, %v1918, %v1526
  %v1935 = vsel %vm1827, %v1919, %v1528
  %v1936 = vsel %vm1827, %v1920, %v1530
  %v1937 = vsel %vm1827, %v1921, %v1532
  %v1938 = vsel %vm1827, %v1922, %v1534
  %v1939 = vsel %vm1827, %v1923, %v1536
  %v1940 = vsel %vm1827, %v1924, %v1538
  %v1941 = vsel %vm1844, %v1925, %v1572
  %v1942 = vsel %vm1844, %v1926, %v1574
  %v1943 = vsel %vm1844, %v1927, %v1576
  %v1944 = vsel %vm1844, %v1928, %v1578
  %v1945 = vsel %vm1844, %v1929, %v1580
  %v1946 = vsel %vm1844, %v1930, %v1582
  %v1947 = vsel %vm1844, %v1931, %v1584
  %v1948 = vsel %vm1844, %v1932, %v1586
  %v1949 = vsel %vm1844, %v1933, %v1588
  %v1950 = vsel %vm1844, %v1934, %v1590
  %v1951 = vsel %vm1844, %v1935, %v1592
  %v1952 = vsel %vm1844, %v1936, %v1594
  %v1953 = vsel %vm1844, %v1937, %v1596
  %v1954 = vsel %vm1844, %v1938, %v1598
  %v1955 = vsel %vm1844, %v1939, %v1600
  %v1956 = vsel %vm1844, %v1940, %v1602
  %v1957 = vsel %vm498, %v979, %v1636
  %v1958 = vsel %vm498, %v980, %v1638
  %v1959 = vsel %vm498, %v981, %v1640
  %v1960 = vsel %vm498, %v982, %v1642
  %v1961 = vsel %vm498, %v983, %v1644
  %v1962 = vsel %vm498, %v984, %v1646
  %v1963 = vsel %vm498, %v985, %v1648
  %v1964 = vsel %vm498, %v986, %v1650
  %v1965 = vsel %vm498, %v987, %v1652
  %v1966 = vsel %vm498, %v988, %v1654
  %v1967 = vsel %vm498, %v989, %v1656
  %v1968 = vsel %vm498, %v990, %v1658
  %v1969 = vsel %vm498, %v991, %v1660
  %v1970 = vsel %vm498, %v992, %v1662
  %v1971 = vsel %vm498, %v993, %v1664
  %v1972 = vsel %vm498, %v994, %v1666
  %v1973 = vsel %vm1827, %v1957, %v1700
  %v1974 = vsel %vm1827, %v1958, %v1702
  %v1975 = vsel %vm1827, %v1959, %v1704
  %v1976 = vsel %vm1827, %v1960, %v1706
  %v1977 = vsel %vm1827, %v1961, %v1708
  %v1978 = vsel %vm1827, %v1962, %v1710
  %v1979 = vsel %vm1827, %v1963, %v1712
  %v1980 = vsel %vm1827, %v1964, %v1714
  %v1981 = vsel %vm1827, %v1965, %v1716
  %v1982 = vsel %vm1827, %v1966, %v1718
  %v1983 = vsel %vm1827, %v1967, %v1720
  %v1984 = vsel %vm1827, %v1968, %v1722
  %v1985 = vsel %vm1827, %v1969, %v1724
  %v1986 = vsel %vm1827, %v1970, %v1726
  %v1987 = vsel %vm1827, %v1971, %v1728
  %v1988 = vsel %vm1827, %v1972, %v1730
  %v1989 = vsel %vm1844, %v1973, %v1764
  %v1990 = vsel %vm1844, %v1974, %v1766
  %v1991 = vsel %vm1844, %v1975, %v1768
  %v1992 = vsel %vm1844, %v1976, %v1770
  %v1993 = vsel %vm1844, %v1977, %v1772
  %v1994 = vsel %vm1844, %v1978, %v1774
  %v1995 = vsel %vm1844, %v1979, %v1776
  %v1996 = vsel %vm1844, %v1980, %v1778
  %v1997 = vsel %vm1844, %v1981, %v1780
  %v1998 = vsel %vm1844, %v1982, %v1782
  %v1999 = vsel %vm1844, %v1983, %v1784
  %v2000 = vsel %vm1844, %v1984, %v1786
  %v2001 = vsel %vm1844, %v1985, %v1788
  %v2002 = vsel %vm1844, %v1986, %v1790
  %v2003 = vsel %vm1844, %v1987, %v1792
  %v2004 = vsel %vm1844, %v1988, %v1794
  %v2005 = vld [vmem:[%s4] sm:$0xff]
  %v2006 = vld [vmem:[%s4 + $0x8] sm:$0xff]
  %v2007 = vld [vmem:[%s4 + $0x10] sm:$0xff]
  %v2008 = vld [vmem:[%s4 + $0x18] sm:$0xff]
  %v2009 = vld [vmem:[%s4 + $0x20] sm:$0xff]
  %v2010 = vld [vmem:[%s4 + $0x28] sm:$0xff]
  %v2011 = vld [vmem:[%s4 + $0x30] sm:$0xff]
  %v2012 = vld [vmem:[%s4 + $0x38] sm:$0xff]
  %v2013 = vld [vmem:[%s4 + $0x40] sm:$0xff]
  %v2014 = vld [vmem:[%s4 + $0x48] sm:$0xff]
  %v2015 = vld [vmem:[%s4 + $0x50] sm:$0xff]
  %v2016 = vld [vmem:[%s4 + $0x58] sm:$0xff]
  %v2017 = vld [vmem:[%s4 + $0x60] sm:$0xff]
  %v2018 = vld [vmem:[%s4 + $0x68] sm:$0xff]
  %v2019 = vld [vmem:[%s4 + $0x70] sm:$0xff]
  %v2020 = vld [vmem:[%s4 + $0x78] sm:$0xff]
  %v2021 = vld [vmem:[%s4 + $0x80] sm:$0xff]
  %v2022 = vld [vmem:[%s4 + $0x88] sm:$0xff]
  %v2023 = vld [vmem:[%s4 + $0x90] sm:$0xff]
  %v2024 = vld [vmem:[%s4 + $0x98] sm:$0xff]
  %v2025 = vld [vmem:[%s4 + $0xa0] sm:$0xff]
  %v2026 = vld [vmem:[%s4 + $0xa8] sm:$0xff]
  %v2027 = vld [vmem:[%s4 + $0xb0] sm:$0xff]
  %v2028 = vld [vmem:[%s4 + $0xb8] sm:$0xff]
  %v2029 = vld [vmem:[%s4 + $0xc0] sm:$0xff]
  %v2030 = vld [vmem:[%s4 + $0xc8] sm:$0xff]
  %v2031 = vld [vmem:[%s4 + $0xd0] sm:$0xff]
  %v2032 = vld [vmem:[%s4 + $0xd8] sm:$0xff]
  %v2033 = vld [vmem:[%s4 + $0xe0] sm:$0xff]
  %v2034 = vld [vmem:[%s4 + $0xe8] sm:$0xff]
  %v2035 = vld [vmem:[%s4 + $0xf0] sm:$0xff]
  %v2036 = vld [vmem:[%s4 + $0xf8] sm:$0xff]
  %v2037 = vld [vmem:[%s4 + $0x100] sm:$0xff]
  %v2038 = vld [vmem:[%s4 + $0x108] sm:$0xff]
  %v2039 = vld [vmem:[%s4 + $0x110] sm:$0xff]
  %v2040 = vld [vmem:[%s4 + $0x118] sm:$0xff]
  %v2041 = vld [vmem:[%s4 + $0x120] sm:$0xff]
  %v2042 = vld [vmem:[%s4 + $0x128] sm:$0xff]
  %v2043 = vld [vmem:[%s4 + $0x130] sm:$0xff]
  %v2044 = vld [vmem:[%s4 + $0x138] sm:$0xff]
  %v2045 = vld [vmem:[%s4 + $0x140] sm:$0xff]
  %v2046 = vld [vmem:[%s4 + $0x148] sm:$0xff]
  %v2047 = vld [vmem:[%s4 + $0x150] sm:$0xff]
  %v2048 = vld [vmem:[%s4 + $0x158] sm:$0xff]
  %v2049 = vld [vmem:[%s4 + $0x160] sm:$0xff]
  %v2050 = vld [vmem:[%s4 + $0x168] sm:$0xff]
  %v2051 = vld [vmem:[%s4 + $0x170] sm:$0xff]
  %v2052 = vld [vmem:[%s4 + $0x178] sm:$0xff]
  %v2053 = vld [vmem:[%s4 + $0x180] sm:$0xff]
  %v2054 = vld [vmem:[%s4 + $0x188] sm:$0xff]
  %v2055 = vld [vmem:[%s4 + $0x190] sm:$0xff]
  %v2056 = vld [vmem:[%s4 + $0x198] sm:$0xff]
  %v2057 = vld [vmem:[%s4 + $0x1a0] sm:$0xff]
  %v2058 = vld [vmem:[%s4 + $0x1a8] sm:$0xff]
  %v2059 = vld [vmem:[%s4 + $0x1b0] sm:$0xff]
  %v2060 = vld [vmem:[%s4 + $0x1b8] sm:$0xff]
  %v2061 = vld [vmem:[%s4 + $0x1c0] sm:$0xff]
  %v2062 = vld [vmem:[%s4 + $0x1c8] sm:$0xff]
  %v2063 = vld [vmem:[%s4 + $0x1d0] sm:$0xff]
  %v2064 = vld [vmem:[%s4 + $0x1d8] sm:$0xff]
  %v2065 = vld [vmem:[%s4 + $0x1e0] sm:$0xff]
  %v2066 = vld [vmem:[%s4 + $0x1e8] sm:$0xff]
  %v2067 = vld [vmem:[%s4 + $0x1f0] sm:$0xff]
  %v2068 = vld [vmem:[%s4 + $0x1f8] sm:$0xff]
  %2069 = vmatpush.msra.mxu0 %v2020
  %2070 = vmatpush.msra.mxu0 %v2019
  %2071 = vmatpush.msra.mxu0 %v2018
  %2072 = vmatpush.msra.mxu0 %v2017
  %2073 = vmatpush.msra.mxu0 %v2016
  %2074 = vmatpush.msra.mxu0 %v2015
  %2075 = vmatpush.msra.mxu0 %v2014
  %2076 = vmatpush.msra.mxu0 %v2013
  %2077 = vmatpush.msra.mxu0 %v2012
  %2078 = vmatpush.msra.mxu0 %v2011
  %2079 = vmatpush.msra.mxu0 %v2010
  %2080 = vmatpush.msra.mxu0 %v2009
  %2081 = vmatpush.msra.mxu0 %v2008
  %2082 = vmatpush.msra.mxu0 %v2007
  %2083 = vmatpush.msra.mxu0 %v2006
  %2084 = vmatpush.msra.mxu0 %v2005
  %2085 = vmatmul.f32.gmra.mxu0 %v1845
  %v2086 = vpop.f32.mrf.mxu0
  %v2087 = vadd.f32 0.0, %v2086
  %2088 = vmatmul.f32.gmra.mxu0 %v1846
  %v2089 = vpop.f32.mrf.mxu0
  %v2090 = vadd.f32 0.0, %v2089
  %2091 = vmatmul.f32.gmra.mxu0 %v1847
  %v2092 = vpop.f32.mrf.mxu0
  %v2093 = vadd.f32 0.0, %v2092
  %2094 = vmatmul.f32.gmra.mxu0 %v1848
  %v2095 = vpop.f32.mrf.mxu0
  %v2096 = vadd.f32 0.0, %v2095
  %2097 = vmatmul.f32.gmra.mxu0 %v1849
  %v2098 = vpop.f32.mrf.mxu0
  %v2099 = vadd.f32 0.0, %v2098
  %2100 = vmatmul.f32.gmra.mxu0 %v1850
  %v2101 = vpop.f32.mrf.mxu0
  %v2102 = vadd.f32 0.0, %v2101
  %2103 = vmatmul.f32.gmra.mxu0 %v1851
  %v2104 = vpop.f32.mrf.mxu0
  %v2105 = vadd.f32 0.0, %v2104
  %2106 = vmatmul.f32.gmra.mxu0 %v1852
  %v2107 = vpop.f32.mrf.mxu0
  %v2108 = vadd.f32 0.0, %v2107
  %2109 = vmatmul.f32.gmra.mxu0 %v1853
  %v2110 = vpop.f32.mrf.mxu0
  %v2111 = vadd.f32 0.0, %v2110
  %2112 = vmatmul.f32.gmra.mxu0 %v1854
  %v2113 = vpop.f32.mrf.mxu0
  %v2114 = vadd.f32 0.0, %v2113
  %2115 = vmatmul.f32.gmra.mxu0 %v1855
  %v2116 = vpop.f32.mrf.mxu0
  %v2117 = vadd.f32 0.0, %v2116
  %2118 = vmatmul.f32.gmra.mxu0 %v1856
  %v2119 = vpop.f32.mrf.mxu0
  %v2120 = vadd.f32 0.0, %v2119
  %2121 = vmatmul.f32.gmra.mxu0 %v1857
  %v2122 = vpop.f32.mrf.mxu0
  %v2123 = vadd.f32 0.0, %v2122
  %2124 = vmatmul.f32.gmra.mxu0 %v1858
  %v2125 = vpop.f32.mrf.mxu0
  %v2126 = vadd.f32 0.0, %v2125
  %2127 = vmatmul.f32.gmra.mxu0 %v1859
  %v2128 = vpop.f32.mrf.mxu0
  %v2129 = vadd.f32 0.0, %v2128
  %2130 = vmatmul.f32.gmra.mxu0 %v1860
  %v2131 = vpop.f32.mrf.mxu0
  %v2132 = vadd.f32 0.0, %v2131
  %2133 = vdwg.mxu0
  %2134 = vmatpush.msra.mxu0 %v2036
  %2135 = vmatpush.msra.mxu0 %v2035
  %2136 = vmatpush.msra.mxu0 %v2034
  %2137 = vmatpush.msra.mxu0 %v2033
  %2138 = vmatpush.msra.mxu0 %v2032
  %2139 = vmatpush.msra.mxu0 %v2031
  %2140 = vmatpush.msra.mxu0 %v2030
  %2141 = vmatpush.msra.mxu0 %v2029
  %2142 = vmatpush.msra.mxu0 %v2028
  %2143 = vmatpush.msra.mxu0 %v2027
  %2144 = vmatpush.msra.mxu0 %v2026
  %2145 = vmatpush.msra.mxu0 %v2025
  %2146 = vmatpush.msra.mxu0 %v2024
  %2147 = vmatpush.msra.mxu0 %v2023
  %2148 = vmatpush.msra.mxu0 %v2022
  %2149 = vmatpush.msra.mxu0 %v2021
  %2150 = vmatmul.f32.gmra.mxu0 %v1893
  %v2151 = vpop.f32.mrf.mxu0
  %v2152 = vadd.f32 %v2087, %v2151
  %2153 = vmatmul.f32.gmra.mxu0 %v1894
  %v2154 = vpop.f32.mrf.mxu0
  %v2155 = vadd.f32 %v2090, %v2154
  %2156 = vmatmul.f32.gmra.mxu0 %v1895
  %v2157 = vpop.f32.mrf.mxu0
  %v2158 = vadd.f32 %v2093, %v2157
  %2159 = vmatmul.f32.gmra.mxu0 %v1896
  %v2160 = vpop.f32.mrf.mxu0
  %v2161 = vadd.f32 %v2096, %v2160
  %2162 = vmatmul.f32.gmra.mxu0 %v1897
  %v2163 = vpop.f32.mrf.mxu0
  %v2164 = vadd.f32 %v2099, %v2163
  %2165 = vmatmul.f32.gmra.mxu0 %v1898
  %v2166 = vpop.f32.mrf.mxu0
  %v2167 = vadd.f32 %v2102, %v2166
  %2168 = vmatmul.f32.gmra.mxu0 %v1899
  %v2169 = vpop.f32.mrf.mxu0
  %v2170 = vadd.f32 %v2105, %v2169
  %2171 = vmatmul.f32.gmra.mxu0 %v1900
  %v2172 = vpop.f32.mrf.mxu0
  %v2173 = vadd.f32 %v2108, %v2172
  %2174 = vmatmul.f32.gmra.mxu0 %v1901
  %v2175 = vpop.f32.mrf.mxu0
  %v2176 = vadd.f32 %v2111, %v2175
  %2177 = vmatmul.f32.gmra.mxu0 %v1902
  %v2178 = vpop.f32.mrf.mxu0
  %v2179 = vadd.f32 %v2114, %v2178
  %2180 = vmatmul.f32.gmra.mxu0 %v1903
  %v2181 = vpop.f32.mrf.mxu0
  %v2182 = vadd.f32 %v2117, %v2181
  %2183 = vmatmul.f32.gmra.mxu0 %v1904
  %v2184 = vpop.f32.mrf.mxu0
  %v2185 = vadd.f32 %v2120, %v2184
  %2186 = vmatmul.f32.gmra.mxu0 %v1905
  %v2187 = vpop.f32.mrf.mxu0
  %v2188 = vadd.f32 %v2123, %v2187
  %2189 = vmatmul.f32.gmra.mxu0 %v1906
  %v2190 = vpop.f32.mrf.mxu0
  %v2191 = vadd.f32 %v2126, %v2190
  %2192 = vmatmul.f32.gmra.mxu0 %v1907
  %v2193 = vpop.f32.mrf.mxu0
  %v2194 = vadd.f32 %v2129, %v2193
  %2195 = vmatmul.f32.gmra.mxu0 %v1908
  %v2196 = vpop.f32.mrf.mxu0
  %v2197 = vadd.f32 %v2132, %v2196
  %2198 = vdwg.mxu0
  %2199 = vmatpush.msra.mxu0 %v2052
  %2200 = vmatpush.msra.mxu0 %v2051
  %2201 = vmatpush.msra.mxu0 %v2050
  %2202 = vmatpush.msra.mxu0 %v2049
  %2203 = vmatpush.msra.mxu0 %v2048
  %2204 = vmatpush.msra.mxu0 %v2047
  %2205 = vmatpush.msra.mxu0 %v2046
  %2206 = vmatpush.msra.mxu0 %v2045
  %2207 = vmatpush.msra.mxu0 %v2044
  %2208 = vmatpush.msra.mxu0 %v2043
  %2209 = vmatpush.msra.mxu0 %v2042
  %2210 = vmatpush.msra.mxu0 %v2041
  %2211 = vmatpush.msra.mxu0 %v2040
  %2212 = vmatpush.msra.mxu0 %v2039
  %2213 = vmatpush.msra.mxu0 %v2038
  %2214 = vmatpush.msra.mxu0 %v2037
  %2215 = vmatmul.f32.gmra.mxu0 %v1941
  %v2216 = vpop.f32.mrf.mxu0
  %v2217 = vadd.f32 %v2152, %v2216
  %2218 = vmatmul.f32.gmra.mxu0 %v1942
  %v2219 = vpop.f32.mrf.mxu0
  %v2220 = vadd.f32 %v2155, %v2219
  %2221 = vmatmul.f32.gmra.mxu0 %v1943
  %v2222 = vpop.f32.mrf.mxu0
  %v2223 = vadd.f32 %v2158, %v2222
  %2224 = vmatmul.f32.gmra.mxu0 %v1944
  %v2225 = vpop.f32.mrf.mxu0
  %v2226 = vadd.f32 %v2161, %v2225
  %2227 = vmatmul.f32.gmra.mxu0 %v1945
  %v2228 = vpop.f32.mrf.mxu0
  %v2229 = vadd.f32 %v2164, %v2228
  %2230 = vmatmul.f32.gmra.mxu0 %v1946
  %v2231 = vpop.f32.mrf.mxu0
  %v2232 = vadd.f32 %v2167, %v2231
  %2233 = vmatmul.f32.gmra.mxu0 %v1947
  %v2234 = vpop.f32.mrf.mxu0
  %v2235 = vadd.f32 %v2170, %v2234
  %2236 = vmatmul.f32.gmra.mxu0 %v1948
  %v2237 = vpop.f32.mrf.mxu0
  %v2238 = vadd.f32 %v2173, %v2237
  %2239 = vmatmul.f32.gmra.mxu0 %v1949
  %v2240 = vpop.f32.mrf.mxu0
  %v2241 = vadd.f32 %v2176, %v2240
  %2242 = vmatmul.f32.gmra.mxu0 %v1950
  %v2243 = vpop.f32.mrf.mxu0
  %v2244 = vadd.f32 %v2179, %v2243
  %2245 = vmatmul.f32.gmra.mxu0 %v1951
  %v2246 = vpop.f32.mrf.mxu0
  %v2247 = vadd.f32 %v2182, %v2246
  %2248 = vmatmul.f32.gmra.mxu0 %v1952
  %v2249 = vpop.f32.mrf.mxu0
  %v2250 = vadd.f32 %v2185, %v2249
  %2251 = vmatmul.f32.gmra.mxu0 %v1953
  %v2252 = vpop.f32.mrf.mxu0
  %v2253 = vadd.f32 %v2188, %v2252
  %2254 = vmatmul.f32.gmra.mxu0 %v1954
  %v2255 = vpop.f32.mrf.mxu0
  %v2256 = vadd.f32 %v2191, %v2255
  %2257 = vmatmul.f32.gmra.mxu0 %v1955
  %v2258 = vpop.f32.mrf.mxu0
  %v2259 = vadd.f32 %v2194, %v2258
  %2260 = vmatmul.f32.gmra.mxu0 %v1956
  %v2261 = vpop.f32.mrf.mxu0
  %v2262 = vadd.f32 %v2197, %v2261
  %2263 = vdwg.mxu0
  %2264 = vmatpush.msra.mxu0 %v2068
  %2265 = vmatpush.msra.mxu0 %v2067
  %2266 = vmatpush.msra.mxu0 %v2066
  %2267 = vmatpush.msra.mxu0 %v2065
  %2268 = vmatpush.msra.mxu0 %v2064
  %2269 = vmatpush.msra.mxu0 %v2063
  %2270 = vmatpush.msra.mxu0 %v2062
  %2271 = vmatpush.msra.mxu0 %v2061
  %2272 = vmatpush.msra.mxu0 %v2060
  %2273 = vmatpush.msra.mxu0 %v2059
  %2274 = vmatpush.msra.mxu0 %v2058
  %2275 = vmatpush.msra.mxu0 %v2057
  %2276 = vmatpush.msra.mxu0 %v2056
  %2277 = vmatpush.msra.mxu0 %v2055
  %2278 = vmatpush.msra.mxu0 %v2054
  %2279 = vmatpush.msra.mxu0 %v2053
  %2280 = vmatmul.f32.gmra.mxu0 %v1989
  %v2281 = vpop.f32.mrf.mxu0
  %v2282 = vadd.f32 %v2217, %v2281
  %2283 = vmatmul.f32.gmra.mxu0 %v1990
  %v2284 = vpop.f32.mrf.mxu0
  %v2285 = vadd.f32 %v2220, %v2284
  %2286 = vmatmul.f32.gmra.mxu0 %v1991
  %v2287 = vpop.f32.mrf.mxu0
  %v2288 = vadd.f32 %v2223, %v2287
  %2289 = vmatmul.f32.gmra.mxu0 %v1992
  %v2290 = vpop.f32.mrf.mxu0
  %v2291 = vadd.f32 %v2226, %v2290
  %2292 = vmatmul.f32.gmra.mxu0 %v1993
  %v2293 = vpop.f32.mrf.mxu0
  %v2294 = vadd.f32 %v2229, %v2293
  %2295 = vmatmul.f32.gmra.mxu0 %v1994
  %v2296 = vpop.f32.mrf.mxu0
  %v2297 = vadd.f32 %v2232, %v2296
  %2298 = vmatmul.f32.gmra.mxu0 %v1995
  %v2299 = vpop.f32.mrf.mxu0
  %v2300 = vadd.f32 %v2235, %v2299
  %2301 = vmatmul.f32.gmra.mxu0 %v1996
  %v2302 = vpop.f32.mrf.mxu0
  %v2303 = vadd.f32 %v2238, %v2302
  %2304 = vmatmul.f32.gmra.mxu0 %v1997
  %v2305 = vpop.f32.mrf.mxu0
  %v2306 = vadd.f32 %v2241, %v2305
  %2307 = vmatmul.f32.gmra.mxu0 %v1998
  %v2308 = vpop.f32.mrf.mxu0
  %v2309 = vadd.f32 %v2244, %v2308
  %2310 = vmatmul.f32.gmra.mxu0 %v1999
  %v2311 = vpop.f32.mrf.mxu0
  %v2312 = vadd.f32 %v2247, %v2311
  %2313 = vmatmul.f32.gmra.mxu0 %v2000
  %v2314 = vpop.f32.mrf.mxu0
  %v2315 = vadd.f32 %v2250, %v2314
  %2316 = vmatmul.f32.gmra.mxu0 %v2001
  %v2317 = vpop.f32.mrf.mxu0
  %v2318 = vadd.f32 %v2253, %v2317
  %2319 = vmatmul.f32.gmra.mxu0 %v2002
  %v2320 = vpop.f32.mrf.mxu0
  %v2321 = vadd.f32 %v2256, %v2320
  %2322 = vmatmul.f32.gmra.mxu0 %v2003
  %v2323 = vpop.f32.mrf.mxu0
  %v2324 = vadd.f32 %v2259, %v2323
  %2325 = vmatmul.f32.gmra.mxu0 %v2004
  %v2326 = vpop.f32.mrf.mxu0
  %v2327 = vadd.f32 %v2262, %v2326
  %2328 = vdwg.mxu0
  %vm2329 = vcmask 130048
  %v2330 = vsel %vm2329, %v2282, 0.0
  %v2331 = vsel %vm2329, %v2285, 0.0
  %v2332 = vadd.f32 %v2330, %v2331
  %v2333 = vsel %vm2329, %v2288, 0.0
  %v2334 = vadd.f32 %v2332, %v2333
  %v2335 = vsel %vm2329, %v2291, 0.0
  %v2336 = vadd.f32 %v2334, %v2335
  %v2337 = vsel %vm2329, %v2294, 0.0
  %v2338 = vadd.f32 %v2336, %v2337
  %v2339 = vsel %vm2329, %v2297, 0.0
  %v2340 = vadd.f32 %v2338, %v2339
  %v2341 = vsel %vm2329, %v2300, 0.0
  %v2342 = vadd.f32 %v2340, %v2341
  %v2343 = vsel %vm2329, %v2303, 0.0
  %v2344 = vadd.f32 %v2342, %v2343
  %v2345 = vsel %vm2329, %v2306, 0.0
  %v2346 = vadd.f32 %v2344, %v2345
  %v2347 = vsel %vm2329, %v2309, 0.0
  %v2348 = vadd.f32 %v2346, %v2347
  %v2349 = vsel %vm2329, %v2312, 0.0
  %v2350 = vadd.f32 %v2348, %v2349
  %v2351 = vsel %vm2329, %v2315, 0.0
  %v2352 = vadd.f32 %v2350, %v2351
  %v2353 = vsel %vm2329, %v2318, 0.0
  %v2354 = vadd.f32 %v2352, %v2353
  %v2355 = vsel %vm2329, %v2321, 0.0
  %v2356 = vadd.f32 %v2354, %v2355
  %v2357 = vsel %vm2329, %v2324, 0.0
  %v2358 = vadd.f32 %v2356, %v2357
  %v2359 = vsel %vm2329, %v2327, 0.0
  %v2360 = vadd.f32 %v2358, %v2359
  %v2361 = vrot.slane %v2360, 4
  %v2362 = vadd.f32 %v2360, %v2361
  %v2363 = vrot.slane %v2362, 2
  %v2364 = vadd.f32 %v2362, %v2363
  %v2365 = vrot.slane %v2364, 1
  %v2366 = vadd.f32 %v2364, %v2365
  %v2367 = vmul.f32 %v2366, 0.0078125
  %v2368 = vsub.f32 %v2282, %v2367
  %v2369 = vsub.f32 %v2285, %v2367
  %v2370 = vsub.f32 %v2288, %v2367
  %v2371 = vsub.f32 %v2291, %v2367
  %v2372 = vsub.f32 %v2294, %v2367
  %v2373 = vsub.f32 %v2297, %v2367
  %v2374 = vsub.f32 %v2300, %v2367
  %v2375 = vsub.f32 %v2303, %v2367
  %v2376 = vsub.f32 %v2306, %v2367
  %v2377 = vsub.f32 %v2309, %v2367
  %v2378 = vsub.f32 %v2312, %v2367
  %v2379 = vsub.f32 %v2315, %v2367
  %v2380 = vsub.f32 %v2318, %v2367
  %v2381 = vsub.f32 %v2321, %v2367
  %v2382 = vsub.f32 %v2324, %v2367
  %v2383 = vsub.f32 %v2327, %v2367
  %v2384 = vmul.f32 %v2368, %v2368
  %v2385 = vmul.f32 %v2369, %v2369
  %v2386 = vmul.f32 %v2370, %v2370
  %v2387 = vmul.f32 %v2371, %v2371
  %v2388 = vmul.f32 %v2372, %v2372
  %v2389 = vmul.f32 %v2373, %v2373
  %v2390 = vmul.f32 %v2374, %v2374
  %v2391 = vmul.f32 %v2375, %v2375
  %v2392 = vmul.f32 %v2376, %v2376
  %v2393 = vmul.f32 %v2377, %v2377
  %v2394 = vmul.f32 %v2378, %v2378
  %v2395 = vmul.f32 %v2379, %v2379
  %v2396 = vmul.f32 %v2380, %v2380
  %v2397 = vmul.f32 %v2381, %v2381
  %v2398 = vmul.f32 %v2382, %v2382
  %v2399 = vmul.f32 %v2383, %v2383
  %v2400 = vsel %vm2329, %v2384, 0.0
  %v2401 = vsel %vm2329, %v2385, 0.0
  %v2402 = vadd.f32 %v2400, %v2401
  %v2403 = vsel %vm2329, %v2386, 0.0
  %v2404 = vadd.f32 %v2402, %v2403
  %v2405 = vsel %vm2329, %v2387, 0.0
  %v2406 = vadd.f32 %v2404, %v2405
  %v2407 = vsel %vm2329, %v2388, 0.0
  %v2408 = vadd.f32 %v2406, %v2407
  %v2409 = vsel %vm2329, %v2389, 0.0
  %v2410 = vadd.f32 %v2408, %v2409
  %v2411 = vsel %vm2329, %v2390, 0.0
  %v2412 = vadd.f32 %v2410, %v2411
  %v2413 = vsel %vm2329, %v2391, 0.0
  %v2414 = vadd.f32 %v2412, %v2413
  %v2415 = vsel %vm2329, %v2392, 0.0
  %v2416 = vadd.f32 %v2414, %v2415
  %v2417 = vsel %vm2329, %v2393, 0.0
  %v2418 = vadd.f32 %v2416, %v2417
  %v2419 = vsel %vm2329, %v2394, 0.0
  %v2420 = vadd.f32 %v2418, %v2419
  %v2421 = vsel %vm2329, %v2395, 0.0
  %v2422 = vadd.f32 %v2420, %v2421
  %v2423 = vsel %vm2329, %v2396, 0.0
  %v2424 = vadd.f32 %v2422, %v2423
  %v2425 = vsel %vm2329, %v2397, 0.0
  %v2426 = vadd.f32 %v2424, %v2425
  %v2427 = vsel %vm2329, %v2398, 0.0
  %v2428 = vadd.f32 %v2426, %v2427
  %v2429 = vsel %vm2329, %v2399, 0.0
  %v2430 = vadd.f32 %v2428, %v2429
  %v2431 = vrot.slane %v2430, 4
  %v2432 = vadd.f32 %v2430, %v2431
  %v2433 = vrot.slane %v2432, 2
  %v2434 = vadd.f32 %v2432, %v2433
  %v2435 = vrot.slane %v2434, 1
  %v2436 = vadd.f32 %v2434, %v2435
  %v2437 = vmul.f32 %v2436, 0.0078125
  %v2438 = vld [vmem:[%s5] sm:$0x1]
  %v2439 = vadd.f32 %v2437, 1e-05
  %v2440 = vrsqrt.pop %v2439
  %v2441 = vmul.f32 %v2440, %v2439
  %v2442 = vmul.f32 %v2441, %v2440
  %v2443 = vmul.f32 0.5, %v2442
  %v2444 = vsub.f32 1.5, %v2443
  %v2445 = vmul.f32 %v2440, %v2444
  %vm2446 = vweird.f32 %v2439
  %vm2447 = vweird.f32 %v2440
  %vm2448 = vmor %vm2446, %vm2447
  %v2449 = vsel %vm2448, %v2440, %v2445
  %v2450 = vmul.f32 %v2438, %v2449
  %v2452 = vperm.slane %v2450, 0
  %v2454 = vmul.f32 %v2368, %v2452
  %v2455 = vmul.f32 %v2369, %v2452
  %v2456 = vmul.f32 %v2370, %v2452
  %v2457 = vmul.f32 %v2371, %v2452
  %v2458 = vmul.f32 %v2372, %v2452
  %v2459 = vmul.f32 %v2373, %v2452
  %v2460 = vmul.f32 %v2374, %v2452
  %v2461 = vmul.f32 %v2375, %v2452
  %v2462 = vmul.f32 %v2376, %v2452
  %v2463 = vmul.f32 %v2377, %v2452
  %v2464 = vmul.f32 %v2378, %v2452
  %v2465 = vmul.f32 %v2379, %v2452
  %v2466 = vmul.f32 %v2380, %v2452
  %v2467 = vmul.f32 %v2381, %v2452
  %v2468 = vmul.f32 %v2382, %v2452
  %v2469 = vmul.f32 %v2383, %v2452
  %v2470 = vld [vmem:[%s6] sm:$0x1]
  %v2472 = vperm.slane %v2470, 0
  %v2474 = vadd.f32 %v2454, %v2472
  %v2475 = vadd.f32 %v2455, %v2472
  %v2476 = vadd.f32 %v2456, %v2472
  %v2477 = vadd.f32 %v2457, %v2472
  %v2478 = vadd.f32 %v2458, %v2472
  %v2479 = vadd.f32 %v2459, %v2472
  %v2480 = vadd.f32 %v2460, %v2472
  %v2481 = vadd.f32 %v2461, %v2472
  %v2482 = vadd.f32 %v2462, %v2472
  %v2483 = vadd.f32 %v2463, %v2472
  %v2484 = vadd.f32 %v2464, %v2472
  %v2485 = vadd.f32 %v2465, %v2472
  %v2486 = vadd.f32 %v2466, %v2472
  %v2487 = vadd.f32 %v2467, %v2472
  %v2488 = vadd.f32 %v2468, %v2472
  %v2489 = vadd.f32 %v2469, %v2472
  %v2490 = vmax.f32 %v2474, 0.0
  %v2491 = vmax.f32 %v2475, 0.0
  %v2492 = vmax.f32 %v2476, 0.0
  %v2493 = vmax.f32 %v2477, 0.0
  %v2494 = vmax.f32 %v2478, 0.0
  %v2495 = vmax.f32 %v2479, 0.0
  %v2496 = vmax.f32 %v2480, 0.0
  %v2497 = vmax.f32 %v2481, 0.0
  %v2498 = vmax.f32 %v2482, 0.0
  %v2499 = vmax.f32 %v2483, 0.0
  %v2500 = vmax.f32 %v2484, 0.0
  %v2501 = vmax.f32 %v2485, 0.0
  %v2502 = vmax.f32 %v2486, 0.0
  %v2503 = vmax.f32 %v2487, 0.0
  %v2504 = vmax.f32 %v2488, 0.0
  %v2505 = vmax.f32 %v2489, 0.0
  %2506 = vst.msk [vmem:[#allocation3] sm:$0xff] %vm2329, 0.0
  %vm2507 = vcmask 123904
  %2508 = vst.msk [vmem:[#allocation3 + $0x8] sm:$0x3] %vm2507, 0.0
  %2509 = vst.msk [vmem:[#allocation3 + $0xa0] sm:$0xff] %vm2329, 0.0
  %2510 = vst.msk [vmem:[#allocation3 + $0xa8] sm:$0x3] %vm2507, 0.0
  %s2511 = scalar_lea.vmem [#allocation3], 144
  %2512 = vst.msk [vmem:[%s2511] sm:$0xff] %vm2329, 0.0
  %2513 = vst.msk [vmem:[%s2511 + $0x8] sm:$0x3] %vm2507, 0.0
  %2514 = vst.msk [vmem:[%s2511 + $0xa0] sm:$0xff] %vm2329, 0.0
  %2515 = vst.msk [vmem:[%s2511 + $0xa8] sm:$0x3] %vm2507, 0.0
  %vm2516 = vcmask 122880
  %2517 = vst.msk [vmem:[#allocation3] sm:$0x1] %vm2516, 0.0
  %2518 = vst.msk [vmem:[#allocation3 + $0x10] sm:$0x1] %vm2516, 0.0
  %2519 = vst.msk [vmem:[#allocation3 + $0x20] sm:$0x1] %vm2516, 0.0
  %2520 = vst.msk [vmem:[#allocation3 + $0x30] sm:$0x1] %vm2516, 0.0
  %2521 = vst.msk [vmem:[#allocation3 + $0x40] sm:$0x1] %vm2516, 0.0
  %2522 = vst.msk [vmem:[#allocation3 + $0x50] sm:$0x1] %vm2516, 0.0
  %2523 = vst.msk [vmem:[#allocation3 + $0x60] sm:$0x1] %vm2516, 0.0
  %2524 = vst.msk [vmem:[#allocation3 + $0x70] sm:$0x1] %vm2516, 0.0
  %2525 = vst.msk [vmem:[#allocation3 + $0x80] sm:$0x1] %vm2516, 0.0
  %2526 = vst.msk [vmem:[#allocation3 + $0x90] sm:$0x1] %vm2516, 0.0
  %2527 = vst.msk [vmem:[#allocation3 + $0xa0] sm:$0x1] %vm2516, 0.0
  %2528 = vst.msk [vmem:[#allocation3 + $0xb0] sm:$0x1] %vm2516, 0.0
  %2529 = vst.msk [vmem:[#allocation3 + $0xc0] sm:$0x1] %vm2516, 0.0
  %2530 = vst.msk [vmem:[#allocation3 + $0xd0] sm:$0x1] %vm2516, 0.0
  %2531 = vst.msk [vmem:[#allocation3 + $0xe0] sm:$0x1] %vm2516, 0.0
  %2532 = vst.msk [vmem:[#allocation3 + $0xf0] sm:$0x1] %vm2516, 0.0
  %2533 = vst.msk [vmem:[#allocation3 + $0x100] sm:$0x1] %vm2516, 0.0
  %2534 = vst.msk [vmem:[#allocation3 + $0x110] sm:$0x1] %vm2516, 0.0
  %2535 = vst.msk [vmem:[#allocation3 + $0x120] sm:$0x1] %vm2516, 0.0
  %2536 = vst.msk [vmem:[#allocation3 + $0x130] sm:$0x1] %vm2516, 0.0
  %2537 = vst.msk [vmem:[#allocation3 + $0x9] sm:$0x1] %vm2516, 0.0
  %2538 = vst.msk [vmem:[#allocation3 + $0x19] sm:$0x1] %vm2516, 0.0
  %2539 = vst.msk [vmem:[#allocation3 + $0x29] sm:$0x1] %vm2516, 0.0
  %2540 = vst.msk [vmem:[#allocation3 + $0x39] sm:$0x1] %vm2516, 0.0
  %2541 = vst.msk [vmem:[#allocation3 + $0x49] sm:$0x1] %vm2516, 0.0
  %2542 = vst.msk [vmem:[#allocation3 + $0x59] sm:$0x1] %vm2516, 0.0
  %2543 = vst.msk [vmem:[#allocation3 + $0x69] sm:$0x1] %vm2516, 0.0
  %2544 = vst.msk [vmem:[#allocation3 + $0x79] sm:$0x1] %vm2516, 0.0
  %2545 = vst.msk [vmem:[#allocation3 + $0x89] sm:$0x1] %vm2516, 0.0
  %2546 = vst.msk [vmem:[#allocation3 + $0x99] sm:$0x1] %vm2516, 0.0
  %2547 = vst.msk [vmem:[#allocation3 + $0xa9] sm:$0x1] %vm2516, 0.0
  %2548 = vst.msk [vmem:[#allocation3 + $0xb9] sm:$0x1] %vm2516, 0.0
  %2549 = vst.msk [vmem:[#allocation3 + $0xc9] sm:$0x1] %vm2516, 0.0
  %2550 = vst.msk [vmem:[#allocation3 + $0xd9] sm:$0x1] %vm2516, 0.0
  %2551 = vst.msk [vmem:[#allocation3 + $0xe9] sm:$0x1] %vm2516, 0.0
  %2552 = vst.msk [vmem:[#allocation3 + $0xf9] sm:$0x1] %vm2516, 0.0
  %2553 = vst.msk [vmem:[#allocation3 + $0x109] sm:$0x1] %vm2516, 0.0
  %2554 = vst.msk [vmem:[#allocation3 + $0x119] sm:$0x1] %vm2516, 0.0
  %2555 = vst.msk [vmem:[#allocation3 + $0x129] sm:$0x1] %vm2516, 0.0
  %2556 = vst.msk [vmem:[#allocation3 + $0x139] sm:$0x1] %vm2516, 0.0
  %s2557 = scalar_lea.vmem [#allocation3], 16
  %2558 = vst.msk [vmem:[%s2557 + $0x1] sm:$0xff] %vm2329, %v2490
  %2559 = vst.msk [vmem:[%s2557 + $0x11] sm:$0xff] %vm2329, %v2491
  %2560 = vst.msk [vmem:[%s2557 + $0x21] sm:$0xff] %vm2329, %v2492
  %2561 = vst.msk [vmem:[%s2557 + $0x31] sm:$0xff] %vm2329, %v2493
  %2562 = vst.msk [vmem:[%s2557 + $0x41] sm:$0xff] %vm2329, %v2494
  %2563 = vst.msk [vmem:[%s2557 + $0x51] sm:$0xff] %vm2329, %v2495
  %2564 = vst.msk [vmem:[%s2557 + $0x61] sm:$0xff] %vm2329, %v2496
  %2565 = vst.msk [vmem:[%s2557 + $0x71] sm:$0xff] %vm2329, %v2497
  %2566 = vst.msk [vmem:[%s2557 + $0xa1] sm:$0xff] %vm2329, %v2498
  %2567 = vst.msk [vmem:[%s2557 + $0xb1] sm:$0xff] %vm2329, %v2499
  %2568 = vst.msk [vmem:[%s2557 + $0xc1] sm:$0xff] %vm2329, %v2500
  %2569 = vst.msk [vmem:[%s2557 + $0xd1] sm:$0xff] %vm2329, %v2501
  %2570 = vst.msk [vmem:[%s2557 + $0xe1] sm:$0xff] %vm2329, %v2502
  %2571 = vst.msk [vmem:[%s2557 + $0xf1] sm:$0xff] %vm2329, %v2503
  %2572 = vst.msk [vmem:[%s2557 + $0x101] sm:$0xff] %vm2329, %v2504
  %2573 = vst.msk [vmem:[%s2557 + $0x111] sm:$0xff] %vm2329, %v2505
  %v2574 = vld [vmem:[#allocation3] sm:$0xff]
  %v2575 = vld [vmem:[#allocation3 + $0x10] sm:$0xff]
  %v2576 = vld [vmem:[#allocation3 + $0x20] sm:$0xff]
  %v2577 = vld [vmem:[#allocation3 + $0x30] sm:$0xff]
  %v2578 = vld [vmem:[#allocation3 + $0x40] sm:$0xff]
  %v2579 = vld [vmem:[#allocation3 + $0x50] sm:$0xff]
  %v2580 = vld [vmem:[#allocation3 + $0x60] sm:$0xff]
  %v2581 = vld [vmem:[#allocation3 + $0x70] sm:$0xff]
  %v2582 = vld [vmem:[#allocation3 + $0xa0] sm:$0xff]
  %v2583 = vld [vmem:[#allocation3 + $0xb0] sm:$0xff]
  %v2584 = vld [vmem:[#allocation3 + $0xc0] sm:$0xff]
  %v2585 = vld [vmem:[#allocation3 + $0xd0] sm:$0xff]
  %v2586 = vld [vmem:[#allocation3 + $0xe0] sm:$0xff]
  %v2587 = vld [vmem:[#allocation3 + $0xf0] sm:$0xff]
  %v2588 = vld [vmem:[#allocation3 + $0x100] sm:$0xff]
  %v2589 = vld [vmem:[#allocation3 + $0x110] sm:$0xff]
  %v2590 = vld [vmem:[#allocation3 + $0x1] sm:$0xff]
  %v2591 = vld [vmem:[#allocation3 + $0x11] sm:$0xff]
  %v2592 = vld [vmem:[#allocation3 + $0x21] sm:$0xff]
  %v2593 = vld [vmem:[#allocation3 + $0x31] sm:$0xff]
  %v2594 = vld [vmem:[#allocation3 + $0x41] sm:$0xff]
  %v2595 = vld [vmem:[#allocation3 + $0x51] sm:$0xff]
  %v2596 = vld [vmem:[#allocation3 + $0x61] sm:$0xff]
  %v2597 = vld [vmem:[#allocation3 + $0x71] sm:$0xff]
  %v2598 = vld [vmem:[#allocation3 + $0xa1] sm:$0xff]
  %v2599 = vld [vmem:[#allocation3 + $0xb1] sm:$0xff]
  %v2600 = vld [vmem:[#allocation3 + $0xc1] sm:$0xff]
  %v2601 = vld [vmem:[#allocation3 + $0xd1] sm:$0xff]
  %v2602 = vld [vmem:[#allocation3 + $0xe1] sm:$0xff]
  %v2603 = vld [vmem:[#allocation3 + $0xf1] sm:$0xff]
  %v2604 = vld [vmem:[#allocation3 + $0x101] sm:$0xff]
  %v2605 = vld [vmem:[#allocation3 + $0x111] sm:$0xff]
  %v2606 = vld [vmem:[%s2557] sm:$0xff]
  %v2607 = vld [vmem:[%s2557 + $0x10] sm:$0xff]
  %v2608 = vld [vmem:[%s2557 + $0x20] sm:$0xff]
  %v2609 = vld [vmem:[%s2557 + $0x30] sm:$0xff]
  %v2610 = vld [vmem:[%s2557 + $0x40] sm:$0xff]
  %v2611 = vld [vmem:[%s2557 + $0x50] sm:$0xff]
  %v2612 = vld [vmem:[%s2557 + $0x60] sm:$0xff]
  %v2613 = vld [vmem:[%s2557 + $0x70] sm:$0xff]
  %v2614 = vld [vmem:[%s2557 + $0xa0] sm:$0xff]
  %v2615 = vld [vmem:[%s2557 + $0xb0] sm:$0xff]
  %v2616 = vld [vmem:[%s2557 + $0xc0] sm:$0xff]
  %v2617 = vld [vmem:[%s2557 + $0xd0] sm:$0xff]
  %v2618 = vld [vmem:[%s2557 + $0xe0] sm:$0xff]
  %v2619 = vld [vmem:[%s2557 + $0xf0] sm:$0xff]
  %v2620 = vld [vmem:[%s2557 + $0x100] sm:$0xff]
  %v2621 = vld [vmem:[%s2557 + $0x110] sm:$0xff]
  %v2622 = vld [vmem:[%s2557 + $0x1] sm:$0xff]
  %v2623 = vld [vmem:[%s2557 + $0x11] sm:$0xff]
  %v2624 = vld [vmem:[%s2557 + $0x21] sm:$0xff]
  %v2625 = vld [vmem:[%s2557 + $0x31] sm:$0xff]
  %v2626 = vld [vmem:[%s2557 + $0x41] sm:$0xff]
  %v2627 = vld [vmem:[%s2557 + $0x51] sm:$0xff]
  %v2628 = vld [vmem:[%s2557 + $0x61] sm:$0xff]
  %v2629 = vld [vmem:[%s2557 + $0x71] sm:$0xff]
  %v2630 = vld [vmem:[%s2557 + $0xa1] sm:$0xff]
  %v2631 = vld [vmem:[%s2557 + $0xb1] sm:$0xff]
  %v2632 = vld [vmem:[%s2557 + $0xc1] sm:$0xff]
  %v2633 = vld [vmem:[%s2557 + $0xd1] sm:$0xff]
  %v2634 = vld [vmem:[%s2557 + $0xe1] sm:$0xff]
  %v2635 = vld [vmem:[%s2557 + $0xf1] sm:$0xff]
  %v2636 = vld [vmem:[%s2557 + $0x101] sm:$0xff]
  %v2637 = vld [vmem:[%s2557 + $0x111] sm:$0xff]
  %2654 = vrot.lane.b32.xlu0 %v2590, 16
  %v2655 = vpop.permute.xlu0 %2654
  %2656 = vrot.lane.b32.xlu0 %v2591, 16
  %v2657 = vpop.permute.xlu0 %2656
  %2658 = vrot.lane.b32.xlu0 %v2592, 16
  %v2659 = vpop.permute.xlu0 %2658
  %2660 = vrot.lane.b32.xlu0 %v2593, 16
  %v2661 = vpop.permute.xlu0 %2660
  %2662 = vrot.lane.b32.xlu0 %v2594, 16
  %v2663 = vpop.permute.xlu0 %2662
  %2664 = vrot.lane.b32.xlu0 %v2595, 16
  %v2665 = vpop.permute.xlu0 %2664
  %2666 = vrot.lane.b32.xlu0 %v2596, 16
  %v2667 = vpop.permute.xlu0 %2666
  %2668 = vrot.lane.b32.xlu0 %v2597, 16
  %v2669 = vpop.permute.xlu0 %2668
  %2670 = vrot.lane.b32.xlu0 %v2598, 16
  %v2671 = vpop.permute.xlu0 %2670
  %2672 = vrot.lane.b32.xlu0 %v2599, 16
  %v2673 = vpop.permute.xlu0 %2672
  %2674 = vrot.lane.b32.xlu0 %v2600, 16
  %v2675 = vpop.permute.xlu0 %2674
  %2676 = vrot.lane.b32.xlu0 %v2601, 16
  %v2677 = vpop.permute.xlu0 %2676
  %2678 = vrot.lane.b32.xlu0 %v2602, 16
  %v2679 = vpop.permute.xlu0 %2678
  %2680 = vrot.lane.b32.xlu0 %v2603, 16
  %v2681 = vpop.permute.xlu0 %2680
  %2682 = vrot.lane.b32.xlu0 %v2604, 16
  %v2683 = vpop.permute.xlu0 %2682
  %2684 = vrot.lane.b32.xlu0 %v2605, 16
  %v2685 = vpop.permute.xlu0 %2684
  %2718 = vrot.lane.b32.xlu0 %v2606, 32
  %v2719 = vpop.permute.xlu0 %2718
  %2720 = vrot.lane.b32.xlu0 %v2607, 32
  %v2721 = vpop.permute.xlu0 %2720
  %2722 = vrot.lane.b32.xlu0 %v2608, 32
  %v2723 = vpop.permute.xlu0 %2722
  %2724 = vrot.lane.b32.xlu0 %v2609, 32
  %v2725 = vpop.permute.xlu0 %2724
  %2726 = vrot.lane.b32.xlu0 %v2610, 32
  %v2727 = vpop.permute.xlu0 %2726
  %2728 = vrot.lane.b32.xlu0 %v2611, 32
  %v2729 = vpop.permute.xlu0 %2728
  %2730 = vrot.lane.b32.xlu0 %v2612, 32
  %v2731 = vpop.permute.xlu0 %2730
  %2732 = vrot.lane.b32.xlu0 %v2613, 32
  %v2733 = vpop.permute.xlu0 %2732
  %2734 = vrot.lane.b32.xlu0 %v2614, 32
  %v2735 = vpop.permute.xlu0 %2734
  %2736 = vrot.lane.b32.xlu0 %v2615, 32
  %v2737 = vpop.permute.xlu0 %2736
  %2738 = vrot.lane.b32.xlu0 %v2616, 32
  %v2739 = vpop.permute.xlu0 %2738
  %2740 = vrot.lane.b32.xlu0 %v2617, 32
  %v2741 = vpop.permute.xlu0 %2740
  %2742 = vrot.lane.b32.xlu0 %v2618, 32
  %v2743 = vpop.permute.xlu0 %2742
  %2744 = vrot.lane.b32.xlu0 %v2619, 32
  %v2745 = vpop.permute.xlu0 %2744
  %2746 = vrot.lane.b32.xlu0 %v2620, 32
  %v2747 = vpop.permute.xlu0 %2746
  %2748 = vrot.lane.b32.xlu0 %v2621, 32
  %v2749 = vpop.permute.xlu0 %2748
  %2782 = vrot.lane.b32.xlu0 %v2622, 48
  %v2783 = vpop.permute.xlu0 %2782
  %2784 = vrot.lane.b32.xlu0 %v2623, 48
  %v2785 = vpop.permute.xlu0 %2784
  %2786 = vrot.lane.b32.xlu0 %v2624, 48
  %v2787 = vpop.permute.xlu0 %2786
  %2788 = vrot.lane.b32.xlu0 %v2625, 48
  %v2789 = vpop.permute.xlu0 %2788
  %2790 = vrot.lane.b32.xlu0 %v2626, 48
  %v2791 = vpop.permute.xlu0 %2790
  %2792 = vrot.lane.b32.xlu0 %v2627, 48
  %v2793 = vpop.permute.xlu0 %2792
  %2794 = vrot.lane.b32.xlu0 %v2628, 48
  %v2795 = vpop.permute.xlu0 %2794
  %2796 = vrot.lane.b32.xlu0 %v2629, 48
  %v2797 = vpop.permute.xlu0 %2796
  %2798 = vrot.lane.b32.xlu0 %v2630, 48
  %v2799 = vpop.permute.xlu0 %2798
  %2800 = vrot.lane.b32.xlu0 %v2631, 48
  %v2801 = vpop.permute.xlu0 %2800
  %2802 = vrot.lane.b32.xlu0 %v2632, 48
  %v2803 = vpop.permute.xlu0 %2802
  %2804 = vrot.lane.b32.xlu0 %v2633, 48
  %v2805 = vpop.permute.xlu0 %2804
  %2806 = vrot.lane.b32.xlu0 %v2634, 48
  %v2807 = vpop.permute.xlu0 %2806
  %2808 = vrot.lane.b32.xlu0 %v2635, 48
  %v2809 = vpop.permute.xlu0 %2808
  %2810 = vrot.lane.b32.xlu0 %v2636, 48
  %v2811 = vpop.permute.xlu0 %2810
  %2812 = vrot.lane.b32.xlu0 %v2637, 48
  %v2813 = vpop.permute.xlu0 %2812
  %v2830 = vsel %vm2329, %v2574, %v2655
  %v2831 = vsel %vm2329, %v2575, %v2657
  %v2832 = vsel %vm2329, %v2576, %v2659
  %v2833 = vsel %vm2329, %v2577, %v2661
  %v2834 = vsel %vm2329, %v2578, %v2663
  %v2835 = vsel %vm2329, %v2579, %v2665
  %v2836 = vsel %vm2329, %v2580, %v2667
  %v2837 = vsel %vm2329, %v2581, %v2669
  %v2838 = vsel %vm2329, %v2582, %v2671
  %v2839 = vsel %vm2329, %v2583, %v2673
  %v2840 = vsel %vm2329, %v2584, %v2675
  %v2841 = vsel %vm2329, %v2585, %v2677
  %v2842 = vsel %vm2329, %v2586, %v2679
  %v2843 = vsel %vm2329, %v2587, %v2681
  %v2844 = vsel %vm2329, %v2588, %v2683
  %v2845 = vsel %vm2329, %v2589, %v2685
  %v2846 = vsel %vm498, %v2830, %v2719
  %v2847 = vsel %vm498, %v2831, %v2721
  %v2848 = vsel %vm498, %v2832, %v2723
  %v2849 = vsel %vm498, %v2833, %v2725
  %v2850 = vsel %vm498, %v2834, %v2727
  %v2851 = vsel %vm498, %v2835, %v2729
  %v2852 = vsel %vm498, %v2836, %v2731
  %v2853 = vsel %vm498, %v2837, %v2733
  %v2854 = vsel %vm498, %v2838, %v2735
  %v2855 = vsel %vm498, %v2839, %v2737
  %v2856 = vsel %vm498, %v2840, %v2739
  %v2857 = vsel %vm498, %v2841, %v2741
  %v2858 = vsel %vm498, %v2842, %v2743
  %v2859 = vsel %vm498, %v2843, %v2745
  %v2860 = vsel %vm498, %v2844, %v2747
  %v2861 = vsel %vm498, %v2845, %v2749
  %vm2862 = vcmask 392192
  %v2863 = vsel %vm2862, %v2846, %v2783
  %v2864 = vsel %vm2862, %v2847, %v2785
  %v2865 = vsel %vm2862, %v2848, %v2787
  %v2866 = vsel %vm2862, %v2849, %v2789
  %v2867 = vsel %vm2862, %v2850, %v2791
  %v2868 = vsel %vm2862, %v2851, %v2793
  %v2869 = vsel %vm2862, %v2852, %v2795
  %v2870 = vsel %vm2862, %v2853, %v2797
  %v2871 = vsel %vm2862, %v2854, %v2799
  %v2872 = vsel %vm2862, %v2855, %v2801
  %v2873 = vsel %vm2862, %v2856, %v2803
  %v2874 = vsel %vm2862, %v2857, %v2805
  %v2875 = vsel %vm2862, %v2858, %v2807
  %v2876 = vsel %vm2862, %v2859, %v2809
  %v2877 = vsel %vm2862, %v2860, %v2811
  %v2878 = vsel %vm2862, %v2861, %v2813
  %v2879 = vld [vmem:[%s7] sm:$0xff]
  %v2880 = vld [vmem:[%s7 + $0x8] sm:$0xff]
  %v2881 = vld [vmem:[%s7 + $0x10] sm:$0xff]
  %v2882 = vld [vmem:[%s7 + $0x18] sm:$0xff]
  %v2883 = vld [vmem:[%s7 + $0x20] sm:$0xff]
  %v2884 = vld [vmem:[%s7 + $0x28] sm:$0xff]
  %v2885 = vld [vmem:[%s7 + $0x30] sm:$0xff]
  %v2886 = vld [vmem:[%s7 + $0x38] sm:$0xff]
  %v2888 = vsel %vm1827, %v2863, 0
  %v2891 = vsel %vm1827, %v2864, 0
  %v2894 = vsel %vm1827, %v2865, 0
  %v2897 = vsel %vm1827, %v2866, 0
  %v2900 = vsel %vm1827, %v2867, 0
  %v2903 = vsel %vm1827, %v2868, 0
  %v2906 = vsel %vm1827, %v2869, 0
  %v2909 = vsel %vm1827, %v2870, 0
  %v2912 = vsel %vm1827, %v2871, 0
  %v2915 = vsel %vm1827, %v2872, 0
  %v2918 = vsel %vm1827, %v2873, 0
  %v2921 = vsel %vm1827, %v2874, 0
  %v2924 = vsel %vm1827, %v2875, 0
  %v2927 = vsel %vm1827, %v2876, 0
  %v2930 = vsel %vm1827, %v2877, 0
  %v2933 = vsel %vm1827, %v2878, 0
  %2935 = vmatpush.msra.mxu0 0.0
  %2936 = vmatpush.msra.mxu0 0.0
  %2937 = vmatpush.msra.mxu0 0.0
  %2938 = vmatpush.msra.mxu0 0.0
  %2939 = vmatpush.msra.mxu0 0.0
  %2940 = vmatpush.msra.mxu0 0.0
  %2941 = vmatpush.msra.mxu0 0.0
  %2942 = vmatpush.msra.mxu0 0.0
  %2943 = vmatpush.msra.mxu0 %v2886
  %2944 = vmatpush.msra.mxu0 %v2885
  %2945 = vmatpush.msra.mxu0 %v2884
  %2946 = vmatpush.msra.mxu0 %v2883
  %2947 = vmatpush.msra.mxu0 %v2882
  %2948 = vmatpush.msra.mxu0 %v2881
  %2949 = vmatpush.msra.mxu0 %v2880
  %2950 = vmatpush.msra.mxu0 %v2879
  %2951 = vmatmul.f32.gmra.mxu0 %v2888
  %v2952 = vpop.f32.mrf.mxu0
  %v2953 = vadd.f32 0.0, %v2952
  %2954 = vmatmul.f32.gmra.mxu0 %v2891
  %v2955 = vpop.f32.mrf.mxu0
  %v2956 = vadd.f32 0.0, %v2955
  %2957 = vmatmul.f32.gmra.mxu0 %v2894
  %v2958 = vpop.f32.mrf.mxu0
  %v2959 = vadd.f32 0.0, %v2958
  %2960 = vmatmul.f32.gmra.mxu0 %v2897
  %v2961 = vpop.f32.mrf.mxu0
  %v2962 = vadd.f32 0.0, %v2961
  %2963 = vmatmul.f32.gmra.mxu0 %v2900
  %v2964 = vpop.f32.mrf.mxu0
  %v2965 = vadd.f32 0.0, %v2964
  %2966 = vmatmul.f32.gmra.mxu0 %v2903
  %v2967 = vpop.f32.mrf.mxu0
  %v2968 = vadd.f32 0.0, %v2967
  %2969 = vmatmul.f32.gmra.mxu0 %v2906
  %v2970 = vpop.f32.mrf.mxu0
  %v2971 = vadd.f32 0.0, %v2970
  %2972 = vmatmul.f32.gmra.mxu0 %v2909
  %v2973 = vpop.f32.mrf.mxu0
  %v2974 = vadd.f32 0.0, %v2973
  %2975 = vmatmul.f32.gmra.mxu0 %v2912
  %v2976 = vpop.f32.mrf.mxu0
  %v2977 = vadd.f32 0.0, %v2976
  %2978 = vmatmul.f32.gmra.mxu0 %v2915
  %v2979 = vpop.f32.mrf.mxu0
  %v2980 = vadd.f32 0.0, %v2979
  %2981 = vmatmul.f32.gmra.mxu0 %v2918
  %v2982 = vpop.f32.mrf.mxu0
  %v2983 = vadd.f32 0.0, %v2982
  %2984 = vmatmul.f32.gmra.mxu0 %v2921
  %v2985 = vpop.f32.mrf.mxu0
  %v2986 = vadd.f32 0.0, %v2985
  %2987 = vmatmul.f32.gmra.mxu0 %v2924
  %v2988 = vpop.f32.mrf.mxu0
  %v2989 = vadd.f32 0.0, %v2988
  %2990 = vmatmul.f32.gmra.mxu0 %v2927
  %v2991 = vpop.f32.mrf.mxu0
  %v2992 = vadd.f32 0.0, %v2991
  %2993 = vmatmul.f32.gmra.mxu0 %v2930
  %v2994 = vpop.f32.mrf.mxu0
  %v2995 = vadd.f32 0.0, %v2994
  %2996 = vmatmul.f32.gmra.mxu0 %v2933
  %v2997 = vpop.f32.mrf.mxu0
  %v2998 = vadd.f32 0.0, %v2997
  %2999 = vdwg.mxu0
  %v3000 = vld [vmem:[#allocation3 + $0x2] sm:$0xff]
  %v3001 = vld [vmem:[#allocation3 + $0x12] sm:$0xff]
  %v3002 = vld [vmem:[#allocation3 + $0x22] sm:$0xff]
  %v3003 = vld [vmem:[#allocation3 + $0x32] sm:$0xff]
  %v3004 = vld [vmem:[#allocation3 + $0x42] sm:$0xff]
  %v3005 = vld [vmem:[#allocation3 + $0x52] sm:$0xff]
  %v3006 = vld [vmem:[#allocation3 + $0x62] sm:$0xff]
  %v3007 = vld [vmem:[#allocation3 + $0x72] sm:$0xff]
  %v3008 = vld [vmem:[#allocation3 + $0xa2] sm:$0xff]
  %v3009 = vld [vmem:[#allocation3 + $0xb2] sm:$0xff]
  %v3010 = vld [vmem:[#allocation3 + $0xc2] sm:$0xff]
  %v3011 = vld [vmem:[#allocation3 + $0xd2] sm:$0xff]
  %v3012 = vld [vmem:[#allocation3 + $0xe2] sm:$0xff]
  %v3013 = vld [vmem:[#allocation3 + $0xf2] sm:$0xff]
  %v3014 = vld [vmem:[#allocation3 + $0x102] sm:$0xff]
  %v3015 = vld [vmem:[#allocation3 + $0x112] sm:$0xff]
  %v3016 = vld [vmem:[%s2557 + $0x2] sm:$0xff]
  %v3017 = vld [vmem:[%s2557 + $0x12] sm:$0xff]
  %v3018 = vld [vmem:[%s2557 + $0x22] sm:$0xff]
  %v3019 = vld [vmem:[%s2557 + $0x32] sm:$0xff]
  %v3020 = vld [vmem:[%s2557 + $0x42] sm:$0xff]
  %v3021 = vld [vmem:[%s2557 + $0x52] sm:$0xff]
  %v3022 = vld [vmem:[%s2557 + $0x62] sm:$0xff]
  %v3023 = vld [vmem:[%s2557 + $0x72] sm:$0xff]
  %v3024 = vld [vmem:[%s2557 + $0xa2] sm:$0xff]
  %v3025 = vld [vmem:[%s2557 + $0xb2] sm:$0xff]
  %v3026 = vld [vmem:[%s2557 + $0xc2] sm:$0xff]
  %v3027 = vld [vmem:[%s2557 + $0xd2] sm:$0xff]
  %v3028 = vld [vmem:[%s2557 + $0xe2] sm:$0xff]
  %v3029 = vld [vmem:[%s2557 + $0xf2] sm:$0xff]
  %v3030 = vld [vmem:[%s2557 + $0x102] sm:$0xff]
  %v3031 = vld [vmem:[%s2557 + $0x112] sm:$0xff]
  %3048 = vrot.lane.b32.xlu0 %v3000, 16
  %v3049 = vpop.permute.xlu0 %3048
  %3050 = vrot.lane.b32.xlu0 %v3001, 16
  %v3051 = vpop.permute.xlu0 %3050
  %3052 = vrot.lane.b32.xlu0 %v3002, 16
  %v3053 = vpop.permute.xlu0 %3052
  %3054 = vrot.lane.b32.xlu0 %v3003, 16
  %v3055 = vpop.permute.xlu0 %3054
  %3056 = vrot.lane.b32.xlu0 %v3004, 16
  %v3057 = vpop.permute.xlu0 %3056
  %3058 = vrot.lane.b32.xlu0 %v3005, 16
  %v3059 = vpop.permute.xlu0 %3058
  %3060 = vrot.lane.b32.xlu0 %v3006, 16
  %v3061 = vpop.permute.xlu0 %3060
  %3062 = vrot.lane.b32.xlu0 %v3007, 16
  %v3063 = vpop.permute.xlu0 %3062
  %3064 = vrot.lane.b32.xlu0 %v3008, 16
  %v3065 = vpop.permute.xlu0 %3064
  %3066 = vrot.lane.b32.xlu0 %v3009, 16
  %v3067 = vpop.permute.xlu0 %3066
  %3068 = vrot.lane.b32.xlu0 %v3010, 16
  %v3069 = vpop.permute.xlu0 %3068
  %3070 = vrot.lane.b32.xlu0 %v3011, 16
  %v3071 = vpop.permute.xlu0 %3070
  %3072 = vrot.lane.b32.xlu0 %v3012, 16
  %v3073 = vpop.permute.xlu0 %3072
  %3074 = vrot.lane.b32.xlu0 %v3013, 16
  %v3075 = vpop.permute.xlu0 %3074
  %3076 = vrot.lane.b32.xlu0 %v3014, 16
  %v3077 = vpop.permute.xlu0 %3076
  %3078 = vrot.lane.b32.xlu0 %v3015, 16
  %v3079 = vpop.permute.xlu0 %3078
  %3096 = vrot.lane.b32.xlu0 %v2622, 32
  %v3097 = vpop.permute.xlu0 %3096
  %3098 = vrot.lane.b32.xlu0 %v2623, 32
  %v3099 = vpop.permute.xlu0 %3098
  %3100 = vrot.lane.b32.xlu0 %v2624, 32
  %v3101 = vpop.permute.xlu0 %3100
  %3102 = vrot.lane.b32.xlu0 %v2625, 32
  %v3103 = vpop.permute.xlu0 %3102
  %3104 = vrot.lane.b32.xlu0 %v2626, 32
  %v3105 = vpop.permute.xlu0 %3104
  %3106 = vrot.lane.b32.xlu0 %v2627, 32
  %v3107 = vpop.permute.xlu0 %3106
  %3108 = vrot.lane.b32.xlu0 %v2628, 32
  %v3109 = vpop.permute.xlu0 %3108
  %3110 = vrot.lane.b32.xlu0 %v2629, 32
  %v3111 = vpop.permute.xlu0 %3110
  %3112 = vrot.lane.b32.xlu0 %v2630, 32
  %v3113 = vpop.permute.xlu0 %3112
  %3114 = vrot.lane.b32.xlu0 %v2631, 32
  %v3115 = vpop.permute.xlu0 %3114
  %3116 = vrot.lane.b32.xlu0 %v2632, 32
  %v3117 = vpop.permute.xlu0 %3116
  %3118 = vrot.lane.b32.xlu0 %v2633, 32
  %v3119 = vpop.permute.xlu0 %3118
  %3120 = vrot.lane.b32.xlu0 %v2634, 32
  %v3121 = vpop.permute.xlu0 %3120
  %3122 = vrot.lane.b32.xlu0 %v2635, 32
  %v3123 = vpop.permute.xlu0 %3122
  %3124 = vrot.lane.b32.xlu0 %v2636, 32
  %v3125 = vpop.permute.xlu0 %3124
  %3126 = vrot.lane.b32.xlu0 %v2637, 32
  %v3127 = vpop.permute.xlu0 %3126
  %3160 = vrot.lane.b32.xlu0 %v3016, 48
  %v3161 = vpop.permute.xlu0 %3160
  %3162 = vrot.lane.b32.xlu0 %v3017, 48
  %v3163 = vpop.permute.xlu0 %3162
  %3164 = vrot.lane.b32.xlu0 %v3018, 48
  %v3165 = vpop.permute.xlu0 %3164
  %3166 = vrot.lane.b32.xlu0 %v3019, 48
  %v3167 = vpop.permute.xlu0 %3166
  %3168 = vrot.lane.b32.xlu0 %v3020, 48
  %v3169 = vpop.permute.xlu0 %3168
  %3170 = vrot.lane.b32.xlu0 %v3021, 48
  %v3171 = vpop.permute.xlu0 %3170
  %3172 = vrot.lane.b32.xlu0 %v3022, 48
  %v3173 = vpop.permute.xlu0 %3172
  %3174 = vrot.lane.b32.xlu0 %v3023, 48
  %v3175 = vpop.permute.xlu0 %3174
  %3176 = vrot.lane.b32.xlu0 %v3024, 48
  %v3177 = vpop.permute.xlu0 %3176
  %3178 = vrot.lane.b32.xlu0 %v3025, 48
  %v3179 = vpop.permute.xlu0 %3178
  %3180 = vrot.lane.b32.xlu0 %v3026, 48
  %v3181 = vpop.permute.xlu0 %3180
  %3182 = vrot.lane.b32.xlu0 %v3027, 48
  %v3183 = vpop.permute.xlu0 %3182
  %3184 = vrot.lane.b32.xlu0 %v3028, 48
  %v3185 = vpop.permute.xlu0 %3184
  %3186 = vrot.lane.b32.xlu0 %v3029, 48
  %v3187 = vpop.permute.xlu0 %3186
  %3188 = vrot.lane.b32.xlu0 %v3030, 48
  %v3189 = vpop.permute.xlu0 %3188
  %3190 = vrot.lane.b32.xlu0 %v3031, 48
  %v3191 = vpop.permute.xlu0 %3190
  %v3208 = vsel %vm2329, %v2590, %v3049
  %v3209 = vsel %vm2329, %v2591, %v3051
  %v3210 = vsel %vm2329, %v2592, %v3053
  %v3211 = vsel %vm2329, %v2593, %v3055
  %v3212 = vsel %vm2329, %v2594, %v3057
  %v3213 = vsel %vm2329, %v2595, %v3059
  %v3214 = vsel %vm2329, %v2596, %v3061
  %v3215 = vsel %vm2329, %v2597, %v3063
  %v3216 = vsel %vm2329, %v2598, %v3065
  %v3217 = vsel %vm2329, %v2599, %v3067
  %v3218 = vsel %vm2329, %v2600, %v3069
  %v3219 = vsel %vm2329, %v2601, %v3071
  %v3220 = vsel %vm2329, %v2602, %v3073
  %v3221 = vsel %vm2329, %v2603, %v3075
  %v3222 = vsel %vm2329, %v2604, %v3077
  %v3223 = vsel %vm2329, %v2605, %v3079
  %v3224 = vsel %vm498, %v3208, %v3097
  %v3225 = vsel %vm498, %v3209, %v3099
  %v3226 = vsel %vm498, %v3210, %v3101
  %v3227 = vsel %vm498, %v3211, %v3103
  %v3228 = vsel %vm498, %v3212, %v3105
  %v3229 = vsel %vm498, %v3213, %v3107
  %v3230 = vsel %vm498, %v3214, %v3109
  %v3231 = vsel %vm498, %v3215, %v3111
  %v3232 = vsel %vm498, %v3216, %v3113
  %v3233 = vsel %vm498, %v3217, %v3115
  %v3234 = vsel %vm498, %v3218, %v3117
  %v3235 = vsel %vm498, %v3219, %v3119
  %v3236 = vsel %vm498, %v3220, %v3121
  %v3237 = vsel %vm498, %v3221, %v3123
  %v3238 = vsel %vm498, %v3222, %v3125
  %v3239 = vsel %vm498, %v3223, %v3127
  %v3240 = vsel %vm2862, %v3224, %v3161
  %v3241 = vsel %vm2862, %v3225, %v3163
  %v3242 = vsel %vm2862, %v3226, %v3165
  %v3243 = vsel %vm2862, %v3227, %v3167
  %v3244 = vsel %vm2862, %v3228, %v3169
  %v3245 = vsel %vm2862, %v3229, %v3171
  %v3246 = vsel %vm2862, %v3230, %v3173
  %v3247 = vsel %vm2862, %v3231, %v3175
  %v3248 = vsel %vm2862, %v3232, %v3177
  %v3249 = vsel %vm2862, %v3233, %v3179
  %v3250 = vsel %vm2862, %v3234, %v3181
  %v3251 = vsel %vm2862, %v3235, %v3183
  %v3252 = vsel %vm2862, %v3236, %v3185
  %v3253 = vsel %vm2862, %v3237, %v3187
  %v3254 = vsel %vm2862, %v3238, %v3189
  %v3255 = vsel %vm2862, %v3239, %v3191
  %s3256 = scalar_lea.vmem %s7, 64
  %v3257 = vld [vmem:[%s3256] sm:$0xff]
  %v3258 = vld [vmem:[%s3256 + $0x8] sm:$0xff]
  %v3259 = vld [vmem:[%s3256 + $0x10] sm:$0xff]
  %v3260 = vld [vmem:[%s3256 + $0x18] sm:$0xff]
  %v3261 = vld [vmem:[%s3256 + $0x20] sm:$0xff]
  %v3262 = vld [vmem:[%s3256 + $0x28] sm:$0xff]
  %v3263 = vld [vmem:[%s3256 + $0x30] sm:$0xff]
  %v3264 = vld [vmem:[%s3256 + $0x38] sm:$0xff]
  %v3266 = vsel %vm1827, %v3240, 0
  %v3269 = vsel %vm1827, %v3241, 0
  %v3272 = vsel %vm1827, %v3242, 0
  %v3275 = vsel %vm1827, %v3243, 0
  %v3278 = vsel %vm1827, %v3244, 0
  %v3281 = vsel %vm1827, %v3245, 0
  %v3284 = vsel %vm1827, %v3246, 0
  %v3287 = vsel %vm1827, %v3247, 0
  %v3290 = vsel %vm1827, %v3248, 0
  %v3293 = vsel %vm1827, %v3249, 0
  %v3296 = vsel %vm1827, %v3250, 0
  %v3299 = vsel %vm1827, %v3251, 0
  %v3302 = vsel %vm1827, %v3252, 0
  %v3305 = vsel %vm1827, %v3253, 0
  %v3308 = vsel %vm1827, %v3254, 0
  %v3311 = vsel %vm1827, %v3255, 0
  %3313 = vmatpush.msra.mxu0 0.0
  %3314 = vmatpush.msra.mxu0 0.0
  %3315 = vmatpush.msra.mxu0 0.0
  %3316 = vmatpush.msra.mxu0 0.0
  %3317 = vmatpush.msra.mxu0 0.0
  %3318 = vmatpush.msra.mxu0 0.0
  %3319 = vmatpush.msra.mxu0 0.0
  %3320 = vmatpush.msra.mxu0 0.0
  %3321 = vmatpush.msra.mxu0 %v3264
  %3322 = vmatpush.msra.mxu0 %v3263
  %3323 = vmatpush.msra.mxu0 %v3262
  %3324 = vmatpush.msra.mxu0 %v3261
  %3325 = vmatpush.msra.mxu0 %v3260
  %3326 = vmatpush.msra.mxu0 %v3259
  %3327 = vmatpush.msra.mxu0 %v3258
  %3328 = vmatpush.msra.mxu0 %v3257
  %3329 = vmatmul.f32.gmra.mxu0 %v3266
  %v3330 = vpop.f32.mrf.mxu0
  %v3331 = vadd.f32 0.0, %v3330
  %3332 = vmatmul.f32.gmra.mxu0 %v3269
  %v3333 = vpop.f32.mrf.mxu0
  %v3334 = vadd.f32 0.0, %v3333
  %3335 = vmatmul.f32.gmra.mxu0 %v3272
  %v3336 = vpop.f32.mrf.mxu0
  %v3337 = vadd.f32 0.0, %v3336
  %3338 = vmatmul.f32.gmra.mxu0 %v3275
  %v3339 = vpop.f32.mrf.mxu0
  %v3340 = vadd.f32 0.0, %v3339
  %3341 = vmatmul.f32.gmra.mxu0 %v3278
  %v3342 = vpop.f32.mrf.mxu0
  %v3343 = vadd.f32 0.0, %v3342
  %3344 = vmatmul.f32.gmra.mxu0 %v3281
  %v3345 = vpop.f32.mrf.mxu0
  %v3346 = vadd.f32 0.0, %v3345
  %3347 = vmatmul.f32.gmra.mxu0 %v3284
  %v3348 = vpop.f32.mrf.mxu0
  %v3349 = vadd.f32 0.0, %v3348
  %3350 = vmatmul.f32.gmra.mxu0 %v3287
  %v3351 = vpop.f32.mrf.mxu0
  %v3352 = vadd.f32 0.0, %v3351
  %3353 = vmatmul.f32.gmra.mxu0 %v3290
  %v3354 = vpop.f32.mrf.mxu0
  %v3355 = vadd.f32 0.0, %v3354
  %3356 = vmatmul.f32.gmra.mxu0 %v3293
  %v3357 = vpop.f32.mrf.mxu0
  %v3358 = vadd.f32 0.0, %v3357
  %3359 = vmatmul.f32.gmra.mxu0 %v3296
  %v3360 = vpop.f32.mrf.mxu0
  %v3361 = vadd.f32 0.0, %v3360
  %3362 = vmatmul.f32.gmra.mxu0 %v3299
  %v3363 = vpop.f32.mrf.mxu0
  %v3364 = vadd.f32 0.0, %v3363
  %3365 = vmatmul.f32.gmra.mxu0 %v3302
  %v3366 = vpop.f32.mrf.mxu0
  %v3367 = vadd.f32 0.0, %v3366
  %3368 = vmatmul.f32.gmra.mxu0 %v3305
  %v3369 = vpop.f32.mrf.mxu0
  %v3370 = vadd.f32 0.0, %v3369
  %3371 = vmatmul.f32.gmra.mxu0 %v3308
  %v3372 = vpop.f32.mrf.mxu0
  %v3373 = vadd.f32 0.0, %v3372
  %3374 = vmatmul.f32.gmra.mxu0 %v3311
  %v3375 = vpop.f32.mrf.mxu0
  %v3376 = vadd.f32 0.0, %v3375
  %3377 = vdwg.mxu0
  %s3378 = scalar_lea.vmem [#allocation3], 32
  %v3379 = vld [vmem:[%s3378] sm:$0xff]
  %v3380 = vld [vmem:[%s3378 + $0x10] sm:$0xff]
  %v3381 = vld [vmem:[%s3378 + $0x20] sm:$0xff]
  %v3382 = vld [vmem:[%s3378 + $0x30] sm:$0xff]
  %v3383 = vld [vmem:[%s3378 + $0x40] sm:$0xff]
  %v3384 = vld [vmem:[%s3378 + $0x50] sm:$0xff]
  %v3385 = vld [vmem:[%s3378 + $0x60] sm:$0xff]
  %v3386 = vld [vmem:[%s3378 + $0x70] sm:$0xff]
  %v3387 = vld [vmem:[%s3378 + $0xa0] sm:$0xff]
  %v3388 = vld [vmem:[%s3378 + $0xb0] sm:$0xff]
  %v3389 = vld [vmem:[%s3378 + $0xc0] sm:$0xff]
  %v3390 = vld [vmem:[%s3378 + $0xd0] sm:$0xff]
  %v3391 = vld [vmem:[%s3378 + $0xe0] sm:$0xff]
  %v3392 = vld [vmem:[%s3378 + $0xf0] sm:$0xff]
  %v3393 = vld [vmem:[%s3378 + $0x100] sm:$0xff]
  %v3394 = vld [vmem:[%s3378 + $0x110] sm:$0xff]
  %v3395 = vld [vmem:[%s3378 + $0x1] sm:$0xff]
  %v3396 = vld [vmem:[%s3378 + $0x11] sm:$0xff]
  %v3397 = vld [vmem:[%s3378 + $0x21] sm:$0xff]
  %v3398 = vld [vmem:[%s3378 + $0x31] sm:$0xff]
  %v3399 = vld [vmem:[%s3378 + $0x41] sm:$0xff]
  %v3400 = vld [vmem:[%s3378 + $0x51] sm:$0xff]
  %v3401 = vld [vmem:[%s3378 + $0x61] sm:$0xff]
  %v3402 = vld [vmem:[%s3378 + $0x71] sm:$0xff]
  %v3403 = vld [vmem:[%s3378 + $0xa1] sm:$0xff]
  %v3404 = vld [vmem:[%s3378 + $0xb1] sm:$0xff]
  %v3405 = vld [vmem:[%s3378 + $0xc1] sm:$0xff]
  %v3406 = vld [vmem:[%s3378 + $0xd1] sm:$0xff]
  %v3407 = vld [vmem:[%s3378 + $0xe1] sm:$0xff]
  %v3408 = vld [vmem:[%s3378 + $0xf1] sm:$0xff]
  %v3409 = vld [vmem:[%s3378 + $0x101] sm:$0xff]
  %v3410 = vld [vmem:[%s3378 + $0x111] sm:$0xff]
  %3411 = vrot.lane.b32.xlu0 %v2622, 16
  %v3412 = vpop.permute.xlu0 %3411
  %3413 = vrot.lane.b32.xlu0 %v2623, 16
  %v3414 = vpop.permute.xlu0 %3413
  %3415 = vrot.lane.b32.xlu0 %v2624, 16
  %v3416 = vpop.permute.xlu0 %3415
  %3417 = vrot.lane.b32.xlu0 %v2625, 16
  %v3418 = vpop.permute.xlu0 %3417
  %3419 = vrot.lane.b32.xlu0 %v2626, 16
  %v3420 = vpop.permute.xlu0 %3419
  %3421 = vrot.lane.b32.xlu0 %v2627, 16
  %v3422 = vpop.permute.xlu0 %3421
  %3423 = vrot.lane.b32.xlu0 %v2628, 16
  %v3424 = vpop.permute.xlu0 %3423
  %3425 = vrot.lane.b32.xlu0 %v2629, 16
  %v3426 = vpop.permute.xlu0 %3425
  %3427 = vrot.lane.b32.xlu0 %v2630, 16
  %v3428 = vpop.permute.xlu0 %3427
  %3429 = vrot.lane.b32.xlu0 %v2631, 16
  %v3430 = vpop.permute.xlu0 %3429
  %3431 = vrot.lane.b32.xlu0 %v2632, 16
  %v3432 = vpop.permute.xlu0 %3431
  %3433 = vrot.lane.b32.xlu0 %v2633, 16
  %v3434 = vpop.permute.xlu0 %3433
  %3435 = vrot.lane.b32.xlu0 %v2634, 16
  %v3436 = vpop.permute.xlu0 %3435
  %3437 = vrot.lane.b32.xlu0 %v2635, 16
  %v3438 = vpop.permute.xlu0 %3437
  %3439 = vrot.lane.b32.xlu0 %v2636, 16
  %v3440 = vpop.permute.xlu0 %3439
  %3441 = vrot.lane.b32.xlu0 %v2637, 16
  %v3442 = vpop.permute.xlu0 %3441
  %3475 = vrot.lane.b32.xlu0 %v3379, 32
  %v3476 = vpop.permute.xlu0 %3475
  %3477 = vrot.lane.b32.xlu0 %v3380, 32
  %v3478 = vpop.permute.xlu0 %3477
  %3479 = vrot.lane.b32.xlu0 %v3381, 32
  %v3480 = vpop.permute.xlu0 %3479
  %3481 = vrot.lane.b32.xlu0 %v3382, 32
  %v3482 = vpop.permute.xlu0 %3481
  %3483 = vrot.lane.b32.xlu0 %v3383, 32
  %v3484 = vpop.permute.xlu0 %3483
  %3485 = vrot.lane.b32.xlu0 %v3384, 32
  %v3486 = vpop.permute.xlu0 %3485
  %3487 = vrot.lane.b32.xlu0 %v3385, 32
  %v3488 = vpop.permute.xlu0 %3487
  %3489 = vrot.lane.b32.xlu0 %v3386, 32
  %v3490 = vpop.permute.xlu0 %3489
  %3491 = vrot.lane.b32.xlu0 %v3387, 32
  %v3492 = vpop.permute.xlu0 %3491
  %3493 = vrot.lane.b32.xlu0 %v3388, 32
  %v3494 = vpop.permute.xlu0 %3493
  %3495 = vrot.lane.b32.xlu0 %v3389, 32
  %v3496 = vpop.permute.xlu0 %3495
  %3497 = vrot.lane.b32.xlu0 %v3390, 32
  %v3498 = vpop.permute.xlu0 %3497
  %3499 = vrot.lane.b32.xlu0 %v3391, 32
  %v3500 = vpop.permute.xlu0 %3499
  %3501 = vrot.lane.b32.xlu0 %v3392, 32
  %v3502 = vpop.permute.xlu0 %3501
  %3503 = vrot.lane.b32.xlu0 %v3393, 32
  %v3504 = vpop.permute.xlu0 %3503
  %3505 = vrot.lane.b32.xlu0 %v3394, 32
  %v3506 = vpop.permute.xlu0 %3505
  %3539 = vrot.lane.b32.xlu0 %v3395, 48
  %v3540 = vpop.permute.xlu0 %3539
  %3541 = vrot.lane.b32.xlu0 %v3396, 48
  %v3542 = vpop.permute.xlu0 %3541
  %3543 = vrot.lane.b32.xlu0 %v3397, 48
  %v3544 = vpop.permute.xlu0 %3543
  %3545 = vrot.lane.b32.xlu0 %v3398, 48
  %v3546 = vpop.permute.xlu0 %3545
  %3547 = vrot.lane.b32.xlu0 %v3399, 48
  %v3548 = vpop.permute.xlu0 %3547
  %3549 = vrot.lane.b32.xlu0 %v3400, 48
  %v3550 = vpop.permute.xlu0 %3549
  %3551 = vrot.lane.b32.xlu0 %v3401, 48
  %v3552 = vpop.permute.xlu0 %3551
  %3553 = vrot.lane.b32.xlu0 %v3402, 48
  %v3554 = vpop.permute.xlu0 %3553
  %3555 = vrot.lane.b32.xlu0 %v3403, 48
  %v3556 = vpop.permute.xlu0 %3555
  %3557 = vrot.lane.b32.xlu0 %v3404, 48
  %v3558 = vpop.permute.xlu0 %3557
  %3559 = vrot.lane.b32.xlu0 %v3405, 48
  %v3560 = vpop.permute.xlu0 %3559
  %3561 = vrot.lane.b32.xlu0 %v3406, 48
  %v3562 = vpop.permute.xlu0 %3561
  %3563 = vrot.lane.b32.xlu0 %v3407, 48
  %v3564 = vpop.permute.xlu0 %3563
  %3565 = vrot.lane.b32.xlu0 %v3408, 48
  %v3566 = vpop.permute.xlu0 %3565
  %3567 = vrot.lane.b32.xlu0 %v3409, 48
  %v3568 = vpop.permute.xlu0 %3567
  %3569 = vrot.lane.b32.xlu0 %v3410, 48
  %v3570 = vpop.permute.xlu0 %3569
  %v3587 = vsel %vm2329, %v2606, %v3412
  %v3588 = vsel %vm2329, %v2607, %v3414
  %v3589 = vsel %vm2329, %v2608, %v3416
  %v3590 = vsel %vm2329, %v2609, %v3418
  %v3591 = vsel %vm2329, %v2610, %v3420
  %v3592 = vsel %vm2329, %v2611, %v3422
  %v3593 = vsel %vm2329, %v2612, %v3424
  %v3594 = vsel %vm2329, %v2613, %v3426
  %v3595 = vsel %vm2329, %v2614, %v3428
  %v3596 = vsel %vm2329, %v2615, %v3430
  %v3597 = vsel %vm2329, %v2616, %v3432
  %v3598 = vsel %vm2329, %v2617, %v3434
  %v3599 = vsel %vm2329, %v2618, %v3436
  %v3600 = vsel %vm2329, %v2619, %v3438
  %v3601 = vsel %vm2329, %v2620, %v3440
  %v3602 = vsel %vm2329, %v2621, %v3442
  %v3603 = vsel %vm498, %v3587, %v3476
  %v3604 = vsel %vm498, %v3588, %v3478
  %v3605 = vsel %vm498, %v3589, %v3480
  %v3606 = vsel %vm498, %v3590, %v3482
  %v3607 = vsel %vm498, %v3591, %v3484
  %v3608 = vsel %vm498, %v3592, %v3486
  %v3609 = vsel %vm498, %v3593, %v3488
  %v3610 = vsel %vm498, %v3594, %v3490
  %v3611 = vsel %vm498, %v3595, %v3492
  %v3612 = vsel %vm498, %v3596, %v3494
  %v3613 = vsel %vm498, %v3597, %v3496
  %v3614 = vsel %vm498, %v3598, %v3498
  %v3615 = vsel %vm498, %v3599, %v3500
  %v3616 = vsel %vm498, %v3600, %v3502
  %v3617 = vsel %vm498, %v3601, %v3504
  %v3618 = vsel %vm498, %v3602, %v3506
  %v3619 = vsel %vm2862, %v3603, %v3540
  %v3620 = vsel %vm2862, %v3604, %v3542
  %v3621 = vsel %vm2862, %v3605, %v3544
  %v3622 = vsel %vm2862, %v3606, %v3546
  %v3623 = vsel %vm2862, %v3607, %v3548
  %v3624 = vsel %vm2862, %v3608, %v3550
  %v3625 = vsel %vm2862, %v3609, %v3552
  %v3626 = vsel %vm2862, %v3610, %v3554
  %v3627 = vsel %vm2862, %v3611, %v3556
  %v3628 = vsel %vm2862, %v3612, %v3558
  %v3629 = vsel %vm2862, %v3613, %v3560
  %v3630 = vsel %vm2862, %v3614, %v3562
  %v3631 = vsel %vm2862, %v3615, %v3564
  %v3632 = vsel %vm2862, %v3616, %v3566
  %v3633 = vsel %vm2862, %v3617, %v3568
  %v3634 = vsel %vm2862, %v3618, %v3570
  %s3635 = scalar_lea.vmem %s7, 128
  %v3636 = vld [vmem:[%s3635] sm:$0xff]
  %v3637 = vld [vmem:[%s3635 + $0x8] sm:$0xff]
  %v3638 = vld [vmem:[%s3635 + $0x10] sm:$0xff]
  %v3639 = vld [vmem:[%s3635 + $0x18] sm:$0xff]
  %v3640 = vld [vmem:[%s3635 + $0x20] sm:$0xff]
  %v3641 = vld [vmem:[%s3635 + $0x28] sm:$0xff]
  %v3642 = vld [vmem:[%s3635 + $0x30] sm:$0xff]
  %v3643 = vld [vmem:[%s3635 + $0x38] sm:$0xff]
  %v3645 = vsel %vm1827, %v3619, 0
  %v3648 = vsel %vm1827, %v3620, 0
  %v3651 = vsel %vm1827, %v3621, 0
  %v3654 = vsel %vm1827, %v3622, 0
  %v3657 = vsel %vm1827, %v3623, 0
  %v3660 = vsel %vm1827, %v3624, 0
  %v3663 = vsel %vm1827, %v3625, 0
  %v3666 = vsel %vm1827, %v3626, 0
  %v3669 = vsel %vm1827, %v3627, 0
  %v3672 = vsel %vm1827, %v3628, 0
  %v3675 = vsel %vm1827, %v3629, 0
  %v3678 = vsel %vm1827, %v3630, 0
  %v3681 = vsel %vm1827, %v3631, 0
  %v3684 = vsel %vm1827, %v3632, 0
  %v3687 = vsel %vm1827, %v3633, 0
  %v3690 = vsel %vm1827, %v3634, 0
  %3692 = vmatpush.msra.mxu0 0.0
  %3693 = vmatpush.msra.mxu0 0.0
  %3694 = vmatpush.msra.mxu0 0.0
  %3695 = vmatpush.msra.mxu0 0.0
  %3696 = vmatpush.msra.mxu0 0.0
  %3697 = vmatpush.msra.mxu0 0.0
  %3698 = vmatpush.msra.mxu0 0.0
  %3699 = vmatpush.msra.mxu0 0.0
  %3700 = vmatpush.msra.mxu0 %v3643
  %3701 = vmatpush.msra.mxu0 %v3642
  %3702 = vmatpush.msra.mxu0 %v3641
  %3703 = vmatpush.msra.mxu0 %v3640
  %3704 = vmatpush.msra.mxu0 %v3639
  %3705 = vmatpush.msra.mxu0 %v3638
  %3706 = vmatpush.msra.mxu0 %v3637
  %3707 = vmatpush.msra.mxu0 %v3636
  %3708 = vmatmul.f32.gmra.mxu0 %v3645
  %v3709 = vpop.f32.mrf.mxu0
  %v3710 = vadd.f32 0.0, %v3709
  %3711 = vmatmul.f32.gmra.mxu0 %v3648
  %v3712 = vpop.f32.mrf.mxu0
  %v3713 = vadd.f32 0.0, %v3712
  %3714 = vmatmul.f32.gmra.mxu0 %v3651
  %v3715 = vpop.f32.mrf.mxu0
  %v3716 = vadd.f32 0.0, %v3715
  %3717 = vmatmul.f32.gmra.mxu0 %v3654
  %v3718 = vpop.f32.mrf.mxu0
  %v3719 = vadd.f32 0.0, %v3718
  %3720 = vmatmul.f32.gmra.mxu0 %v3657
  %v3721 = vpop.f32.mrf.mxu0
  %v3722 = vadd.f32 0.0, %v3721
  %3723 = vmatmul.f32.gmra.mxu0 %v3660
  %v3724 = vpop.f32.mrf.mxu0
  %v3725 = vadd.f32 0.0, %v3724
  %3726 = vmatmul.f32.gmra.mxu0 %v3663
  %v3727 = vpop.f32.mrf.mxu0
  %v3728 = vadd.f32 0.0, %v3727
  %3729 = vmatmul.f32.gmra.mxu0 %v3666
  %v3730 = vpop.f32.mrf.mxu0
  %v3731 = vadd.f32 0.0, %v3730
  %3732 = vmatmul.f32.gmra.mxu0 %v3669
  %v3733 = vpop.f32.mrf.mxu0
  %v3734 = vadd.f32 0.0, %v3733
  %3735 = vmatmul.f32.gmra.mxu0 %v3672
  %v3736 = vpop.f32.mrf.mxu0
  %v3737 = vadd.f32 0.0, %v3736
  %3738 = vmatmul.f32.gmra.mxu0 %v3675
  %v3739 = vpop.f32.mrf.mxu0
  %v3740 = vadd.f32 0.0, %v3739
  %3741 = vmatmul.f32.gmra.mxu0 %v3678
  %v3742 = vpop.f32.mrf.mxu0
  %v3743 = vadd.f32 0.0, %v3742
  %3744 = vmatmul.f32.gmra.mxu0 %v3681
  %v3745 = vpop.f32.mrf.mxu0
  %v3746 = vadd.f32 0.0, %v3745
  %3747 = vmatmul.f32.gmra.mxu0 %v3684
  %v3748 = vpop.f32.mrf.mxu0
  %v3749 = vadd.f32 0.0, %v3748
  %3750 = vmatmul.f32.gmra.mxu0 %v3687
  %v3751 = vpop.f32.mrf.mxu0
  %v3752 = vadd.f32 0.0, %v3751
  %3753 = vmatmul.f32.gmra.mxu0 %v3690
  %v3754 = vpop.f32.mrf.mxu0
  %v3755 = vadd.f32 0.0, %v3754
  %3756 = vdwg.mxu0
  %v3757 = vld [vmem:[%s3378 + $0x2] sm:$0xff]
  %v3758 = vld [vmem:[%s3378 + $0x12] sm:$0xff]
  %v3759 = vld [vmem:[%s3378 + $0x22] sm:$0xff]
  %v3760 = vld [vmem:[%s3378 + $0x32] sm:$0xff]
  %v3761 = vld [vmem:[%s3378 + $0x42] sm:$0xff]
  %v3762 = vld [vmem:[%s3378 + $0x52] sm:$0xff]
  %v3763 = vld [vmem:[%s3378 + $0x62] sm:$0xff]
  %v3764 = vld [vmem:[%s3378 + $0x72] sm:$0xff]
  %v3765 = vld [vmem:[%s3378 + $0xa2] sm:$0xff]
  %v3766 = vld [vmem:[%s3378 + $0xb2] sm:$0xff]
  %v3767 = vld [vmem:[%s3378 + $0xc2] sm:$0xff]
  %v3768 = vld [vmem:[%s3378 + $0xd2] sm:$0xff]
  %v3769 = vld [vmem:[%s3378 + $0xe2] sm:$0xff]
  %v3770 = vld [vmem:[%s3378 + $0xf2] sm:$0xff]
  %v3771 = vld [vmem:[%s3378 + $0x102] sm:$0xff]
  %v3772 = vld [vmem:[%s3378 + $0x112] sm:$0xff]
  %3773 = vrot.lane.b32.xlu0 %v3016, 16
  %v3774 = vpop.permute.xlu0 %3773
  %3775 = vrot.lane.b32.xlu0 %v3017, 16
  %v3776 = vpop.permute.xlu0 %3775
  %3777 = vrot.lane.b32.xlu0 %v3018, 16
  %v3778 = vpop.permute.xlu0 %3777
  %3779 = vrot.lane.b32.xlu0 %v3019, 16
  %v3780 = vpop.permute.xlu0 %3779
  %3781 = vrot.lane.b32.xlu0 %v3020, 16
  %v3782 = vpop.permute.xlu0 %3781
  %3783 = vrot.lane.b32.xlu0 %v3021, 16
  %v3784 = vpop.permute.xlu0 %3783
  %3785 = vrot.lane.b32.xlu0 %v3022, 16
  %v3786 = vpop.permute.xlu0 %3785
  %3787 = vrot.lane.b32.xlu0 %v3023, 16
  %v3788 = vpop.permute.xlu0 %3787
  %3789 = vrot.lane.b32.xlu0 %v3024, 16
  %v3790 = vpop.permute.xlu0 %3789
  %3791 = vrot.lane.b32.xlu0 %v3025, 16
  %v3792 = vpop.permute.xlu0 %3791
  %3793 = vrot.lane.b32.xlu0 %v3026, 16
  %v3794 = vpop.permute.xlu0 %3793
  %3795 = vrot.lane.b32.xlu0 %v3027, 16
  %v3796 = vpop.permute.xlu0 %3795
  %3797 = vrot.lane.b32.xlu0 %v3028, 16
  %v3798 = vpop.permute.xlu0 %3797
  %3799 = vrot.lane.b32.xlu0 %v3029, 16
  %v3800 = vpop.permute.xlu0 %3799
  %3801 = vrot.lane.b32.xlu0 %v3030, 16
  %v3802 = vpop.permute.xlu0 %3801
  %3803 = vrot.lane.b32.xlu0 %v3031, 16
  %v3804 = vpop.permute.xlu0 %3803
  %3821 = vrot.lane.b32.xlu0 %v3395, 32
  %v3822 = vpop.permute.xlu0 %3821
  %3823 = vrot.lane.b32.xlu0 %v3396, 32
  %v3824 = vpop.permute.xlu0 %3823
  %3825 = vrot.lane.b32.xlu0 %v3397, 32
  %v3826 = vpop.permute.xlu0 %3825
  %3827 = vrot.lane.b32.xlu0 %v3398, 32
  %v3828 = vpop.permute.xlu0 %3827
  %3829 = vrot.lane.b32.xlu0 %v3399, 32
  %v3830 = vpop.permute.xlu0 %3829
  %3831 = vrot.lane.b32.xlu0 %v3400, 32
  %v3832 = vpop.permute.xlu0 %3831
  %3833 = vrot.lane.b32.xlu0 %v3401, 32
  %v3834 = vpop.permute.xlu0 %3833
  %3835 = vrot.lane.b32.xlu0 %v3402, 32
  %v3836 = vpop.permute.xlu0 %3835
  %3837 = vrot.lane.b32.xlu0 %v3403, 32
  %v3838 = vpop.permute.xlu0 %3837
  %3839 = vrot.lane.b32.xlu0 %v3404, 32
  %v3840 = vpop.permute.xlu0 %3839
  %3841 = vrot.lane.b32.xlu0 %v3405, 32
  %v3842 = vpop.permute.xlu0 %3841
  %3843 = vrot.lane.b32.xlu0 %v3406, 32
  %v3844 = vpop.permute.xlu0 %3843
  %3845 = vrot.lane.b32.xlu0 %v3407, 32
  %v3846 = vpop.permute.xlu0 %3845
  %3847 = vrot.lane.b32.xlu0 %v3408, 32
  %v3848 = vpop.permute.xlu0 %3847
  %3849 = vrot.lane.b32.xlu0 %v3409, 32
  %v3850 = vpop.permute.xlu0 %3849
  %3851 = vrot.lane.b32.xlu0 %v3410, 32
  %v3852 = vpop.permute.xlu0 %3851
  %3885 = vrot.lane.b32.xlu0 %v3757, 48
  %v3886 = vpop.permute.xlu0 %3885
  %3887 = vrot.lane.b32.xlu0 %v3758, 48
  %v3888 = vpop.permute.xlu0 %3887
  %3889 = vrot.lane.b32.xlu0 %v3759, 48
  %v3890 = vpop.permute.xlu0 %3889
  %3891 = vrot.lane.b32.xlu0 %v3760, 48
  %v3892 = vpop.permute.xlu0 %3891
  %3893 = vrot.lane.b32.xlu0 %v3761, 48
  %v3894 = vpop.permute.xlu0 %3893
  %3895 = vrot.lane.b32.xlu0 %v3762, 48
  %v3896 = vpop.permute.xlu0 %3895
  %3897 = vrot.lane.b32.xlu0 %v3763, 48
  %v3898 = vpop.permute.xlu0 %3897
  %3899 = vrot.lane.b32.xlu0 %v3764, 48
  %v3900 = vpop.permute.xlu0 %3899
  %3901 = vrot.lane.b32.xlu0 %v3765, 48
  %v3902 = vpop.permute.xlu0 %3901
  %3903 = vrot.lane.b32.xlu0 %v3766, 48
  %v3904 = vpop.permute.xlu0 %3903
  %3905 = vrot.lane.b32.xlu0 %v3767, 48
  %v3906 = vpop.permute.xlu0 %3905
  %3907 = vrot.lane.b32.xlu0 %v3768, 48
  %v3908 = vpop.permute.xlu0 %3907
  %3909 = vrot.lane.b32.xlu0 %v3769, 48
  %v3910 = vpop.permute.xlu0 %3909
  %3911 = vrot.lane.b32.xlu0 %v3770, 48
  %v3912 = vpop.permute.xlu0 %3911
  %3913 = vrot.lane.b32.xlu0 %v3771, 48
  %v3914 = vpop.permute.xlu0 %3913
  %3915 = vrot.lane.b32.xlu0 %v3772, 48
  %v3916 = vpop.permute.xlu0 %3915
  %v3933 = vsel %vm2329, %v2622, %v3774
  %v3934 = vsel %vm2329, %v2623, %v3776
  %v3935 = vsel %vm2329, %v2624, %v3778
  %v3936 = vsel %vm2329, %v2625, %v3780
  %v3937 = vsel %vm2329, %v2626, %v3782
  %v3938 = vsel %vm2329, %v2627, %v3784
  %v3939 = vsel %vm2329, %v2628, %v3786
  %v3940 = vsel %vm2329, %v2629, %v3788
  %v3941 = vsel %vm2329, %v2630, %v3790
  %v3942 = vsel %vm2329, %v2631, %v3792
  %v3943 = vsel %vm2329, %v2632, %v3794
  %v3944 = vsel %vm2329, %v2633, %v3796
  %v3945 = vsel %vm2329, %v2634, %v3798
  %v3946 = vsel %vm2329, %v2635, %v3800
  %v3947 = vsel %vm2329, %v2636, %v3802
  %v3948 = vsel %vm2329, %v2637, %v3804
  %v3949 = vsel %vm498, %v3933, %v3822
  %v3950 = vsel %vm498, %v3934, %v3824
  %v3951 = vsel %vm498, %v3935, %v3826
  %v3952 = vsel %vm498, %v3936, %v3828
  %v3953 = vsel %vm498, %v3937, %v3830
  %v3954 = vsel %vm498, %v3938, %v3832
  %v3955 = vsel %vm498, %v3939, %v3834
  %v3956 = vsel %vm498, %v3940, %v3836
  %v3957 = vsel %vm498, %v3941, %v3838
  %v3958 = vsel %vm498, %v3942, %v3840
  %v3959 = vsel %vm498, %v3943, %v3842
  %v3960 = vsel %vm498, %v3944, %v3844
  %v3961 = vsel %vm498, %v3945, %v3846
  %v3962 = vsel %vm498, %v3946, %v3848
  %v3963 = vsel %vm498, %v3947, %v3850
  %v3964 = vsel %vm498, %v3948, %v3852
  %v3965 = vsel %vm2862, %v3949, %v3886
  %v3966 = vsel %vm2862, %v3950, %v3888
  %v3967 = vsel %vm2862, %v3951, %v3890
  %v3968 = vsel %vm2862, %v3952, %v3892
  %v3969 = vsel %vm2862, %v3953, %v3894
  %v3970 = vsel %vm2862, %v3954, %v3896
  %v3971 = vsel %vm2862, %v3955, %v3898
  %v3972 = vsel %vm2862, %v3956, %v3900
  %v3973 = vsel %vm2862, %v3957, %v3902
  %v3974 = vsel %vm2862, %v3958, %v3904
  %v3975 = vsel %vm2862, %v3959, %v3906
  %v3976 = vsel %vm2862, %v3960, %v3908
  %v3977 = vsel %vm2862, %v3961, %v3910
  %v3978 = vsel %vm2862, %v3962, %v3912
  %v3979 = vsel %vm2862, %v3963, %v3914
  %v3980 = vsel %vm2862, %v3964, %v3916
  %s3981 = scalar_lea.vmem %s7, 192
  %v3982 = vld [vmem:[%s3981] sm:$0xff]
  %v3983 = vld [vmem:[%s3981 + $0x8] sm:$0xff]
  %v3984 = vld [vmem:[%s3981 + $0x10] sm:$0xff]
  %v3985 = vld [vmem:[%s3981 + $0x18] sm:$0xff]
  %v3986 = vld [vmem:[%s3981 + $0x20] sm:$0xff]
  %v3987 = vld [vmem:[%s3981 + $0x28] sm:$0xff]
  %v3988 = vld [vmem:[%s3981 + $0x30] sm:$0xff]
  %v3989 = vld [vmem:[%s3981 + $0x38] sm:$0xff]
  %v3991 = vsel %vm1827, %v3965, 0
  %v3994 = vsel %vm1827, %v3966, 0
  %v3997 = vsel %vm1827, %v3967, 0
  %v4000 = vsel %vm1827, %v3968, 0
  %v4003 = vsel %vm1827, %v3969, 0
  %v4006 = vsel %vm1827, %v3970, 0
  %v4009 = vsel %vm1827, %v3971, 0
  %v4012 = vsel %vm1827, %v3972, 0
  %v4015 = vsel %vm1827, %v3973, 0
  %v4018 = vsel %vm1827, %v3974, 0
  %v4021 = vsel %vm1827, %v3975, 0
  %v4024 = vsel %vm1827, %v3976, 0
  %v4027 = vsel %vm1827, %v3977, 0
  %v4030 = vsel %vm1827, %v3978, 0
  %v4033 = vsel %vm1827, %v3979, 0
  %v4036 = vsel %vm1827, %v3980, 0
  %4038 = vmatpush.msra.mxu0 0.0
  %4039 = vmatpush.msra.mxu0 0.0
  %4040 = vmatpush.msra.mxu0 0.0
  %4041 = vmatpush.msra.mxu0 0.0
  %4042 = vmatpush.msra.mxu0 0.0
  %4043 = vmatpush.msra.mxu0 0.0
  %4044 = vmatpush.msra.mxu0 0.0
  %4045 = vmatpush.msra.mxu0 0.0
  %4046 = vmatpush.msra.mxu0 %v3989
  %4047 = vmatpush.msra.mxu0 %v3988
  %4048 = vmatpush.msra.mxu0 %v3987
  %4049 = vmatpush.msra.mxu0 %v3986
  %4050 = vmatpush.msra.mxu0 %v3985
  %4051 = vmatpush.msra.mxu0 %v3984
  %4052 = vmatpush.msra.mxu0 %v3983
  %4053 = vmatpush.msra.mxu0 %v3982
  %4054 = vmatmul.f32.gmra.mxu0 %v3991
  %v4055 = vpop.f32.mrf.mxu0
  %v4056 = vadd.f32 0.0, %v4055
  %4057 = vmatmul.f32.gmra.mxu0 %v3994
  %v4058 = vpop.f32.mrf.mxu0
  %v4059 = vadd.f32 0.0, %v4058
  %4060 = vmatmul.f32.gmra.mxu0 %v3997
  %v4061 = vpop.f32.mrf.mxu0
  %v4062 = vadd.f32 0.0, %v4061
  %4063 = vmatmul.f32.gmra.mxu0 %v4000
  %v4064 = vpop.f32.mrf.mxu0
  %v4065 = vadd.f32 0.0, %v4064
  %4066 = vmatmul.f32.gmra.mxu0 %v4003
  %v4067 = vpop.f32.mrf.mxu0
  %v4068 = vadd.f32 0.0, %v4067
  %4069 = vmatmul.f32.gmra.mxu0 %v4006
  %v4070 = vpop.f32.mrf.mxu0
  %v4071 = vadd.f32 0.0, %v4070
  %4072 = vmatmul.f32.gmra.mxu0 %v4009
  %v4073 = vpop.f32.mrf.mxu0
  %v4074 = vadd.f32 0.0, %v4073
  %4075 = vmatmul.f32.gmra.mxu0 %v4012
  %v4076 = vpop.f32.mrf.mxu0
  %v4077 = vadd.f32 0.0, %v4076
  %4078 = vmatmul.f32.gmra.mxu0 %v4015
  %v4079 = vpop.f32.mrf.mxu0
  %v4080 = vadd.f32 0.0, %v4079
  %4081 = vmatmul.f32.gmra.mxu0 %v4018
  %v4082 = vpop.f32.mrf.mxu0
  %v4083 = vadd.f32 0.0, %v4082
  %4084 = vmatmul.f32.gmra.mxu0 %v4021
  %v4085 = vpop.f32.mrf.mxu0
  %v4086 = vadd.f32 0.0, %v4085
  %4087 = vmatmul.f32.gmra.mxu0 %v4024
  %v4088 = vpop.f32.mrf.mxu0
  %v4089 = vadd.f32 0.0, %v4088
  %4090 = vmatmul.f32.gmra.mxu0 %v4027
  %v4091 = vpop.f32.mrf.mxu0
  %v4092 = vadd.f32 0.0, %v4091
  %4093 = vmatmul.f32.gmra.mxu0 %v4030
  %v4094 = vpop.f32.mrf.mxu0
  %v4095 = vadd.f32 0.0, %v4094
  %4096 = vmatmul.f32.gmra.mxu0 %v4033
  %v4097 = vpop.f32.mrf.mxu0
  %v4098 = vadd.f32 0.0, %v4097
  %4099 = vmatmul.f32.gmra.mxu0 %v4036
  %v4100 = vpop.f32.mrf.mxu0
  %v4101 = vadd.f32 0.0, %v4100
  %4102 = vdwg.mxu0
  %4119 = vrot.lane.b32.xlu0 %v3331, 32
  %v4120 = vpop.permute.xlu0 %4119
  %4121 = vrot.lane.b32.xlu0 %v3334, 32
  %v4122 = vpop.permute.xlu0 %4121
  %4123 = vrot.lane.b32.xlu0 %v3337, 32
  %v4124 = vpop.permute.xlu0 %4123
  %4125 = vrot.lane.b32.xlu0 %v3340, 32
  %v4126 = vpop.permute.xlu0 %4125
  %4127 = vrot.lane.b32.xlu0 %v3343, 32
  %v4128 = vpop.permute.xlu0 %4127
  %4129 = vrot.lane.b32.xlu0 %v3346, 32
  %v4130 = vpop.permute.xlu0 %4129
  %4131 = vrot.lane.b32.xlu0 %v3349, 32
  %v4132 = vpop.permute.xlu0 %4131
  %4133 = vrot.lane.b32.xlu0 %v3352, 32
  %v4134 = vpop.permute.xlu0 %4133
  %4135 = vrot.lane.b32.xlu0 %v3355, 32
  %v4136 = vpop.permute.xlu0 %4135
  %4137 = vrot.lane.b32.xlu0 %v3358, 32
  %v4138 = vpop.permute.xlu0 %4137
  %4139 = vrot.lane.b32.xlu0 %v3361, 32
  %v4140 = vpop.permute.xlu0 %4139
  %4141 = vrot.lane.b32.xlu0 %v3364, 32
  %v4142 = vpop.permute.xlu0 %4141
  %4143 = vrot.lane.b32.xlu0 %v3367, 32
  %v4144 = vpop.permute.xlu0 %4143
  %4145 = vrot.lane.b32.xlu0 %v3370, 32
  %v4146 = vpop.permute.xlu0 %4145
  %4147 = vrot.lane.b32.xlu0 %v3373, 32
  %v4148 = vpop.permute.xlu0 %4147
  %4149 = vrot.lane.b32.xlu0 %v3376, 32
  %v4150 = vpop.permute.xlu0 %4149
  %4183 = vrot.lane.b32.xlu0 %v3710, 64
  %v4184 = vpop.permute.xlu0 %4183
  %4185 = vrot.lane.b32.xlu0 %v3713, 64
  %v4186 = vpop.permute.xlu0 %4185
  %4187 = vrot.lane.b32.xlu0 %v3716, 64
  %v4188 = vpop.permute.xlu0 %4187
  %4189 = vrot.lane.b32.xlu0 %v3719, 64
  %v4190 = vpop.permute.xlu0 %4189
  %4191 = vrot.lane.b32.xlu0 %v3722, 64
  %v4192 = vpop.permute.xlu0 %4191
  %4193 = vrot.lane.b32.xlu0 %v3725, 64
  %v4194 = vpop.permute.xlu0 %4193
  %4195 = vrot.lane.b32.xlu0 %v3728, 64
  %v4196 = vpop.permute.xlu0 %4195
  %4197 = vrot.lane.b32.xlu0 %v3731, 64
  %v4198 = vpop.permute.xlu0 %4197
  %4199 = vrot.lane.b32.xlu0 %v3734, 64
  %v4200 = vpop.permute.xlu0 %4199
  %4201 = vrot.lane.b32.xlu0 %v3737, 64
  %v4202 = vpop.permute.xlu0 %4201
  %4203 = vrot.lane.b32.xlu0 %v3740, 64
  %v4204 = vpop.permute.xlu0 %4203
  %4205 = vrot.lane.b32.xlu0 %v3743, 64
  %v4206 = vpop.permute.xlu0 %4205
  %4207 = vrot.lane.b32.xlu0 %v3746, 64
  %v4208 = vpop.permute.xlu0 %4207
  %4209 = vrot.lane.b32.xlu0 %v3749, 64
  %v4210 = vpop.permute.xlu0 %4209
  %4211 = vrot.lane.b32.xlu0 %v3752, 64
  %v4212 = vpop.permute.xlu0 %4211
  %4213 = vrot.lane.b32.xlu0 %v3755, 64
  %v4214 = vpop.permute.xlu0 %4213
  %4247 = vrot.lane.b32.xlu0 %v4056, 96
  %v4248 = vpop.permute.xlu0 %4247
  %4249 = vrot.lane.b32.xlu0 %v4059, 96
  %v4250 = vpop.permute.xlu0 %4249
  %4251 = vrot.lane.b32.xlu0 %v4062, 96
  %v4252 = vpop.permute.xlu0 %4251
  %4253 = vrot.lane.b32.xlu0 %v4065, 96
  %v4254 = vpop.permute.xlu0 %4253
  %4255 = vrot.lane.b32.xlu0 %v4068, 96
  %v4256 = vpop.permute.xlu0 %4255
  %4257 = vrot.lane.b32.xlu0 %v4071, 96
  %v4258 = vpop.permute.xlu0 %4257
  %4259 = vrot.lane.b32.xlu0 %v4074, 96
  %v4260 = vpop.permute.xlu0 %4259
  %4261 = vrot.lane.b32.xlu0 %v4077, 96
  %v4262 = vpop.permute.xlu0 %4261
  %4263 = vrot.lane.b32.xlu0 %v4080, 96
  %v4264 = vpop.permute.xlu0 %4263
  %4265 = vrot.lane.b32.xlu0 %v4083, 96
  %v4266 = vpop.permute.xlu0 %4265
  %4267 = vrot.lane.b32.xlu0 %v4086, 96
  %v4268 = vpop.permute.xlu0 %4267
  %4269 = vrot.lane.b32.xlu0 %v4089, 96
  %v4270 = vpop.permute.xlu0 %4269
  %4271 = vrot.lane.b32.xlu0 %v4092, 96
  %v4272 = vpop.permute.xlu0 %4271
  %4273 = vrot.lane.b32.xlu0 %v4095, 96
  %v4274 = vpop.permute.xlu0 %4273
  %4275 = vrot.lane.b32.xlu0 %v4098, 96
  %v4276 = vpop.permute.xlu0 %4275
  %4277 = vrot.lane.b32.xlu0 %v4101, 96
  %v4278 = vpop.permute.xlu0 %4277
  %v4295 = vsel %vm498, %v2953, %v4120
  %v4296 = vsel %vm498, %v2956, %v4122
  %v4297 = vsel %vm498, %v2959, %v4124
  %v4298 = vsel %vm498, %v2962, %v4126
  %v4299 = vsel %vm498, %v2965, %v4128
  %v4300 = vsel %vm498, %v2968, %v4130
  %v4301 = vsel %vm498, %v2971, %v4132
  %v4302 = vsel %vm498, %v2974, %v4134
  %v4303 = vsel %vm498, %v2977, %v4136
  %v4304 = vsel %vm498, %v2980, %v4138
  %v4305 = vsel %vm498, %v2983, %v4140
  %v4306 = vsel %vm498, %v2986, %v4142
  %v4307 = vsel %vm498, %v2989, %v4144
  %v4308 = vsel %vm498, %v2992, %v4146
  %v4309 = vsel %vm498, %v2995, %v4148
  %v4310 = vsel %vm498, %v2998, %v4150
  %v4311 = vsel %vm1827, %v4295, %v4184
  %v4312 = vsel %vm1827, %v4296, %v4186
  %v4313 = vsel %vm1827, %v4297, %v4188
  %v4314 = vsel %vm1827, %v4298, %v4190
  %v4315 = vsel %vm1827, %v4299, %v4192
  %v4316 = vsel %vm1827, %v4300, %v4194
  %v4317 = vsel %vm1827, %v4301, %v4196
  %v4318 = vsel %vm1827, %v4302, %v4198
  %v4319 = vsel %vm1827, %v4303, %v4200
  %v4320 = vsel %vm1827, %v4304, %v4202
  %v4321 = vsel %vm1827, %v4305, %v4204
  %v4322 = vsel %vm1827, %v4306, %v4206
  %v4323 = vsel %vm1827, %v4307, %v4208
  %v4324 = vsel %vm1827, %v4308, %v4210
  %v4325 = vsel %vm1827, %v4309, %v4212
  %v4326 = vsel %vm1827, %v4310, %v4214
  %v4327 = vsel %vm1844, %v4311, %v4248
  %v4328 = vsel %vm1844, %v4312, %v4250
  %v4329 = vsel %vm1844, %v4313, %v4252
  %v4330 = vsel %vm1844, %v4314, %v4254
  %v4331 = vsel %vm1844, %v4315, %v4256
  %v4332 = vsel %vm1844, %v4316, %v4258
  %v4333 = vsel %vm1844, %v4317, %v4260
  %v4334 = vsel %vm1844, %v4318, %v4262
  %v4335 = vsel %vm1844, %v4319, %v4264
  %v4336 = vsel %vm1844, %v4320, %v4266
  %v4337 = vsel %vm1844, %v4321, %v4268
  %v4338 = vsel %vm1844, %v4322, %v4270
  %v4339 = vsel %vm1844, %v4323, %v4272
  %v4340 = vsel %vm1844, %v4324, %v4274
  %v4341 = vsel %vm1844, %v4325, %v4276
  %v4342 = vsel %vm1844, %v4326, %v4278
  %v4343 = vtanh.pop %v4327
  %v4344 = vtanh.pop %v4328
  %v4345 = vtanh.pop %v4329
  %v4346 = vtanh.pop %v4330
  %v4347 = vtanh.pop %v4331
  %v4348 = vtanh.pop %v4332
  %v4349 = vtanh.pop %v4333
  %v4350 = vtanh.pop %v4334
  %v4351 = vtanh.pop %v4335
  %v4352 = vtanh.pop %v4336
  %v4353 = vtanh.pop %v4337
  %v4354 = vtanh.pop %v4338
  %v4355 = vtanh.pop %v4339
  %v4356 = vtanh.pop %v4340
  %v4357 = vtanh.pop %v4341
  %v4358 = vtanh.pop %v4342
  %4359 = vst [vmem:[%s8] sm:$0xff] %v4343
  %4360 = vst [vmem:[%s8 + $0x8] sm:$0xff] %v4344
  %4361 = vst [vmem:[%s8 + $0x10] sm:$0xff] %v4345
  %4362 = vst [vmem:[%s8 + $0x18] sm:$0xff] %v4346
  %4363 = vst [vmem:[%s8 + $0x20] sm:$0xff] %v4347
  %4364 = vst [vmem:[%s8 + $0x28] sm:$0xff] %v4348
  %4365 = vst [vmem:[%s8 + $0x30] sm:$0xff] %v4349
  %4366 = vst [vmem:[%s8 + $0x38] sm:$0xff] %v4350
  %4367 = vst [vmem:[%s8 + $0x40] sm:$0xff] %v4351
  %4368 = vst [vmem:[%s8 + $0x48] sm:$0xff] %v4352
  %4369 = vst [vmem:[%s8 + $0x50] sm:$0xff] %v4353
  %4370 = vst [vmem:[%s8 + $0x58] sm:$0xff] %v4354
  %4371 = vst [vmem:[%s8 + $0x60] sm:$0xff] %v4355
  %4372 = vst [vmem:[%s8 + $0x68] sm:$0xff] %v4356
  %4373 = vst [vmem:[%s8 + $0x70] sm:$0xff] %v4357
  %4374 = vst [vmem:[%s8 + $0x78] sm:$0xff] %v4358
  // Predicated region
  $region34: #{generator_forward.1} parent=0 // pred_check
    _
  $region35: #{generator_forward.1} parent=0 // pred_check_branch
    %4376 = sbr.rel (0) target = $region37
  $region36: #{generator_forward.1} parent=0 // pred_region
    _
  $region37: #{generator_forward.1} parent=0 // pred_fallthru
    _
  // Predicated region
  $region38: #{generator_forward.1} parent=0 // pred_check
    _
  $region39: #{generator_forward.1} parent=0 // pred_check_branch
    %4378 = sbr.rel (0) target = $region41
  $region40: #{generator_forward.1} parent=0 // pred_region
    _
  $region41: #{generator_forward.1} parent=0 // pred_fallthru
    _

</llo_original>
